<compile_context>
chip_gen: v7x
topology: tpu7x:2x2x1
jax: 0.10.0
libtpu: 0.0.40
codegen_flags: <defaults>
</compile_context>

<pallas_src>
import jax
import jax.numpy as jnp
from jax import lax
from jax.experimental import pallas as pl
from jax.experimental.pallas import tpu as pltpu


_TAPS = tuple((dy, dx) for dy in (-1, 0, 1) for dx in (-1, 0, 1))  # t == (dy+1)*3+(dx+1)


def _make_resblock_kernel(H, W, C):
    HW = H * W
    w_pow2 = (W & (W - 1)) == 0

    def conv3x3(rows, w_ref, masks):
        # rows : list of C (B, HW) f32 slabs (one per input channel), in vregs
        # w_ref: (9*C*C,) f32 in SMEM, HWIO flattened: w[t*C*C + ci*C + co]
        # masks: per-tap (1, HW) boundary masks (None for the centre tap)
        acc = [jnp.zeros_like(rows[0]) for _ in range(C)]
        for t, (dy, dx) in enumerate(_TAPS):
            off = dy * W + dx
            base = t * C * C
            for ci in range(C):
                if off == 0:
                    sh = rows[ci]
                else:
                    sh = pltpu.roll(rows[ci], shift=(-off) % HW, axis=1)  # XLU
                    sh = jnp.where(masks[t], sh, 0.0)
                for co in range(C):
                    acc[co] = acc[co] + w_ref[base + ci * C + co] * sh     # VPU MAC
        return acc

    def kernel(x_ref, w1_ref, w2_ref, out_ref):
        # x_ref/out_ref: (C, B, HW) blocks -- channel-major so each per-channel
        # slab x_ref[ci] is a contiguous (B, HW) tile (B sublanes, HW lanes).

        # --- boundary-validity masks, built once per block -----------------
        p = lax.broadcasted_iota(jnp.int32, (1, HW), 1)
        if w_pow2:
            shift = (W - 1).bit_length()
            h_idx = p >> shift
            w_idx = p & (W - 1)
        else:
            h_idx = p // W
            w_idx = p % W
        up_ok = h_idx >= 1          # valid when dy == -1
        down_ok = h_idx < (H - 1)   # valid when dy == +1
        left_ok = w_idx >= 1        # valid when dx == -1
        right_ok = w_idx < (W - 1)  # valid when dx == +1
        masks = []
        for dy, dx in _TAPS:
            m = None
            if dy == -1:
                m = up_ok
            elif dy == 1:
                m = down_ok
            if dx == -1:
                m = left_ok if m is None else (m & left_ok)
            elif dx == 1:
                m = right_ok if m is None else (m & right_ok)
            masks.append(m)

        # --- conv1 -> ReLU -> conv2 -> + residual ---------------------------
        x_rows = [x_ref[ci].astype(jnp.float32) for ci in range(C)]   # C x (B, HW)
        h_rows = [jnp.maximum(r, 0.0) for r in conv3x3(x_rows, w1_ref, masks)]
        y_rows = conv3x3(h_rows, w2_ref, masks)
        for co in range(C):
            out_ref[co] = (y_rows[co] + x_rows[co]).astype(out_ref.dtype)

    return kernel


def _pick_block_images(N, C, HW):
    """Images per grid step: must divide N and satisfy the (8,128) sublane rule
    (block sublane dim a multiple of 8, or equal to the full array dim)."""
    cands = [b for b in range(1, N + 1) if N % b == 0 and (b % 8 == 0 or b == N)]
    # Keep double-buffered input+output blocks comfortably inside the VMEM budget.
    budget = 8 * 1024 * 1024
    fitting = [b for b in cands if 2 * 2 * C * b * HW * 4 <= budget]
    cands = fitting or [min(cands)]
    # Prefer >=2 grid steps when possible (v7x: 2 TensorCores) while keeping the
    # largest possible sublane packing.
    multi = [b for b in cands if N // b >= 2]
    return max(multi) if multi else max(cands)


def resblock_forward(x_nchw, w1_hwio, w2_hwio, block_images=None):
    """x_nchw: (N, C, H, W); weights in HWIO = (3, 3, Cin, Cout); no bias."""
    N, C, H, W = x_nchw.shape
    HW = H * W
    B = _pick_block_images(N, C, HW) if block_images is None else block_images
    assert N % B == 0 and (B % 8 == 0 or B == N), "invalid image block size"

    # Channel-major, lane-dense layout (C, N, HW).  Wrapper-side layout plumbing
    # only; the kernel reads each image from HBM exactly once.
    x_cnhw = jnp.transpose(x_nchw.reshape(N, C, HW), (1, 0, 2))
    w1f = w1_hwio.reshape(-1)              # 9*C*C scalars -> SMEM
    w2f = w2_hwio.reshape(-1)

    kernel = _make_resblock_kernel(H, W, C)
    out = pl.pallas_call(
        kernel,
        out_shape=jax.ShapeDtypeStruct((C, N, HW), x_nchw.dtype),
        grid=(N // B,),
        in_specs=[
            pl.BlockSpec((C, B, HW), lambda n: (0, n, 0)),
            pl.BlockSpec(memory_space=pltpu.MemorySpace.SMEM),
            pl.BlockSpec(memory_space=pltpu.MemorySpace.SMEM),
        ],
        out_specs=pl.BlockSpec((C, B, HW), lambda n: (0, n, 0)),
        compiler_params=pltpu.CompilerParams(
            dimension_semantics=("parallel",),
            vmem_limit_bytes=32 * 1024 * 1024,
        ),
    )(x_cnhw, w1f, w2f)
    return jnp.transpose(out, (1, 0, 2)).reshape(N, C, H, W)


def resblock_ref(x_nchw, w1_hwio, w2_hwio):
    """Pure-JAX reference with the same semantics as the PyTorch module."""
    dn = ('NCHW', 'HWIO', 'NCHW')
    h = lax.conv_general_dilated(x_nchw, w1_hwio, (1, 1), 'SAME',
                                 dimension_numbers=dn)
    h = jnp.maximum(h, 0.0)
    o = lax.conv_general_dilated(h, w2_hwio, (1, 1), 'SAME',
                                 dimension_numbers=dn)
    return o + x_nchw


if __name__ == "__main__":
    base = 4                      # ResBlock(base)
    N, H, W = 2, 16, 16

    key = jax.random.PRNGKey(0)
    kx, k1, k2 = jax.random.split(key, 3)

    # deterministic "PyTorch-like" init: scale 1/sqrt(fan_in)
    fan_in = base * 3 * 3
    x_nchw = jax.random.normal(kx, (N, base, H, W), jnp.float32)
    w1 = jax.random.normal(k1, (3, 3, base, base), jnp.float32) / jnp.sqrt(fan_in)
    w2 = jax.random.normal(k2, (3, 3, base, base), jnp.float32) / jnp.sqrt(fan_in)

    out = resblock_forward(x_nchw, w1, w2)
    out = jax.block_until_ready(out)

    ref = resblock_ref(x_nchw, w1, w2)
    assert out.shape == (N, base, H, W), f"bad output shape {out.shape}"
    assert jnp.allclose(out, ref, atol=1e-4, rtol=1e-4), "mismatch vs JAX reference"

    print("KERNEL_OK")
</pallas_src>

<mosaic_0001>
module attributes {stable_mosaic.version = 11 : i64} {
  func.func @kernel(%arg0: i32, %arg1: memref<4x2x256xf32, #tpu.memory_space<vmem>>, %arg2: memref<144xf32, #tpu.memory_space<smem>>, %arg3: memref<144xf32, #tpu.memory_space<smem>>, %arg4: memref<4x2x256xf32, #tpu.memory_space<vmem>>) attributes {dimension_semantics = [#tpu.dimension_semantics<parallel>], iteration_bounds = array<i64: 1>, scalar_prefetch = 0 : i64, scratch_operands = 0 : i64, tpu.core_type = #tpu.core_type<tc>, window_params = [{transform_indices = @transform_0, window_bounds = array<i64: 4, 2, 256>}, {transform_indices = @transform_1, window_bounds = array<i64: 144>}, {transform_indices = @transform_2, window_bounds = array<i64: 144>}, {transform_indices = @transform_3, window_bounds = array<i64: 4, 2, 256>}]} {
    %0 = tpu.iota {dimensions = array<i32: 1>} : vector<1x256xi32>
    %c4_i32 = arith.constant 4 : i32
    %1 = vector.broadcast %c4_i32 : i32 to vector<1x256xi32>
    %2 = arith.shrsi %0, %1 : vector<1x256xi32>
    %c15_i32 = arith.constant 15 : i32
    %3 = vector.broadcast %c15_i32 : i32 to vector<1x256xi32>
    %4 = arith.andi %0, %3 : vector<1x256xi32>
    %c1_i32 = arith.constant 1 : i32
    %5 = vector.broadcast %c1_i32 : i32 to vector<1x256xi32>
    %6 = arith.cmpi sge, %2, %5 : vector<1x256xi32>
    %c15_i32_0 = arith.constant 15 : i32
    %7 = vector.broadcast %c15_i32_0 : i32 to vector<1x256xi32>
    %8 = arith.cmpi slt, %2, %7 : vector<1x256xi32>
    %c1_i32_1 = arith.constant 1 : i32
    %9 = vector.broadcast %c1_i32_1 : i32 to vector<1x256xi32>
    %10 = arith.cmpi sge, %4, %9 : vector<1x256xi32>
    %c15_i32_2 = arith.constant 15 : i32
    %11 = vector.broadcast %c15_i32_2 : i32 to vector<1x256xi32>
    %12 = arith.cmpi slt, %4, %11 : vector<1x256xi32>
    %13 = arith.andi %6, %10 : vector<1x256xi1>
    %14 = arith.andi %6, %12 : vector<1x256xi1>
    %15 = arith.andi %8, %10 : vector<1x256xi1>
    %16 = arith.andi %8, %12 : vector<1x256xi1>
    %c0 = arith.constant 0 : index
    %c0_3 = arith.constant 0 : index
    %c0_4 = arith.constant 0 : index
    %17 = vector.load %arg1[%c0, %c0_3, %c0_4] : memref<4x2x256xf32, #tpu.memory_space<vmem>>, vector<1x2x256xf32>
    %18 = vector.shape_cast %17 : vector<1x2x256xf32> to vector<2x256xf32>
    %c1 = arith.constant 1 : index
    %c0_5 = arith.constant 0 : index
    %c0_6 = arith.constant 0 : index
    %19 = vector.load %arg1[%c1, %c0_5, %c0_6] : memref<4x2x256xf32, #tpu.memory_space<vmem>>, vector<1x2x256xf32>
    %20 = vector.shape_cast %19 : vector<1x2x256xf32> to vector<2x256xf32>
    %c2 = arith.constant 2 : index
    %c0_7 = arith.constant 0 : index
    %c0_8 = arith.constant 0 : index
    %21 = vector.load %arg1[%c2, %c0_7, %c0_8] : memref<4x2x256xf32, #tpu.memory_space<vmem>>, vector<1x2x256xf32>
    %22 = vector.shape_cast %21 : vector<1x2x256xf32> to vector<2x256xf32>
    %c3 = arith.constant 3 : index
    %c0_9 = arith.constant 0 : index
    %c0_10 = arith.constant 0 : index
    %23 = vector.load %arg1[%c3, %c0_9, %c0_10] : memref<4x2x256xf32, #tpu.memory_space<vmem>>, vector<1x2x256xf32>
    %24 = vector.shape_cast %23 : vector<1x2x256xf32> to vector<2x256xf32>
    %cst = arith.constant 0.000000e+00 : f32
    %25 = vector.broadcast %cst : f32 to vector<2x256xf32>
    %cst_11 = arith.constant 0.000000e+00 : f32
    %26 = vector.broadcast %cst_11 : f32 to vector<2x256xf32>
    %cst_12 = arith.constant 0.000000e+00 : f32
    %27 = vector.broadcast %cst_12 : f32 to vector<2x256xf32>
    %cst_13 = arith.constant 0.000000e+00 : f32
    %28 = vector.broadcast %cst_13 : f32 to vector<2x256xf32>
    %c17_i32 = arith.constant 17 : i32
    %29 = tpu.dynamic_rotate %18 by %c17_i32 dim 1 : vector<2x256xf32>, i32 -> vector<2x256xf32>
    %cst_14 = arith.constant 0.000000e+00 : f32
    %30 = vector.shape_cast %13 : vector<1x256xi1> to vector<1x256xi1>
    %31 = vector.broadcast %30 : vector<1x256xi1> to vector<2x256xi1>
    %32 = vector.broadcast %cst_14 : f32 to vector<2x256xf32>
    %33 = arith.select %31, %29, %32 : vector<2x256xi1>, vector<2x256xf32>
    %c0_15 = arith.constant 0 : index
    %34 = memref.load %arg2[%c0_15] : memref<144xf32, #tpu.memory_space<smem>>
    %35 = vector.broadcast %34 : f32 to vector<2x256xf32>
    %36 = arith.mulf %35, %33 : vector<2x256xf32>
    %37 = arith.addf %25, %36 : vector<2x256xf32>
    %c1_16 = arith.constant 1 : index
    %38 = memref.load %arg2[%c1_16] : memref<144xf32, #tpu.memory_space<smem>>
    %39 = vector.broadcast %38 : f32 to vector<2x256xf32>
    %40 = arith.mulf %39, %33 : vector<2x256xf32>
    %41 = arith.addf %26, %40 : vector<2x256xf32>
    %c2_17 = arith.constant 2 : index
    %42 = memref.load %arg2[%c2_17] : memref<144xf32, #tpu.memory_space<smem>>
    %43 = vector.broadcast %42 : f32 to vector<2x256xf32>
    %44 = arith.mulf %43, %33 : vector<2x256xf32>
    %45 = arith.addf %27, %44 : vector<2x256xf32>
    %c3_18 = arith.constant 3 : index
    %46 = memref.load %arg2[%c3_18] : memref<144xf32, #tpu.memory_space<smem>>
    %47 = vector.broadcast %46 : f32 to vector<2x256xf32>
    %48 = arith.mulf %47, %33 : vector<2x256xf32>
    %49 = arith.addf %28, %48 : vector<2x256xf32>
    %c17_i32_19 = arith.constant 17 : i32
    %50 = tpu.dynamic_rotate %20 by %c17_i32_19 dim 1 : vector<2x256xf32>, i32 -> vector<2x256xf32>
    %cst_20 = arith.constant 0.000000e+00 : f32
    %51 = vector.shape_cast %13 : vector<1x256xi1> to vector<1x256xi1>
    %52 = vector.broadcast %51 : vector<1x256xi1> to vector<2x256xi1>
    %53 = vector.broadcast %cst_20 : f32 to vector<2x256xf32>
    %54 = arith.select %52, %50, %53 : vector<2x256xi1>, vector<2x256xf32>
    %c4 = arith.constant 4 : index
    %55 = memref.load %arg2[%c4] : memref<144xf32, #tpu.memory_space<smem>>
    %56 = vector.broadcast %55 : f32 to vector<2x256xf32>
    %57 = arith.mulf %56, %54 : vector<2x256xf32>
    %58 = arith.addf %37, %57 : vector<2x256xf32>
    %c5 = arith.constant 5 : index
    %59 = memref.load %arg2[%c5] : memref<144xf32, #tpu.memory_space<smem>>
    %60 = vector.broadcast %59 : f32 to vector<2x256xf32>
    %61 = arith.mulf %60, %54 : vector<2x256xf32>
    %62 = arith.addf %41, %61 : vector<2x256xf32>
    %c6 = arith.constant 6 : index
    %63 = memref.load %arg2[%c6] : memref<144xf32, #tpu.memory_space<smem>>
    %64 = vector.broadcast %63 : f32 to vector<2x256xf32>
    %65 = arith.mulf %64, %54 : vector<2x256xf32>
    %66 = arith.addf %45, %65 : vector<2x256xf32>
    %c7 = arith.constant 7 : index
    %67 = memref.load %arg2[%c7] : memref<144xf32, #tpu.memory_space<smem>>
    %68 = vector.broadcast %67 : f32 to vector<2x256xf32>
    %69 = arith.mulf %68, %54 : vector<2x256xf32>
    %70 = arith.addf %49, %69 : vector<2x256xf32>
    %c17_i32_21 = arith.constant 17 : i32
    %71 = tpu.dynamic_rotate %22 by %c17_i32_21 dim 1 : vector<2x256xf32>, i32 -> vector<2x256xf32>
    %cst_22 = arith.constant 0.000000e+00 : f32
    %72 = vector.shape_cast %13 : vector<1x256xi1> to vector<1x256xi1>
    %73 = vector.broadcast %72 : vector<1x256xi1> to vector<2x256xi1>
    %74 = vector.broadcast %cst_22 : f32 to vector<2x256xf32>
    %75 = arith.select %73, %71, %74 : vector<2x256xi1>, vector<2x256xf32>
    %c8 = arith.constant 8 : index
    %76 = memref.load %arg2[%c8] : memref<144xf32, #tpu.memory_space<smem>>
    %77 = vector.broadcast %76 : f32 to vector<2x256xf32>
    %78 = arith.mulf %77, %75 : vector<2x256xf32>
    %79 = arith.addf %58, %78 : vector<2x256xf32>
    %c9 = arith.constant 9 : index
    %80 = memref.load %arg2[%c9] : memref<144xf32, #tpu.memory_space<smem>>
    %81 = vector.broadcast %80 : f32 to vector<2x256xf32>
    %82 = arith.mulf %81, %75 : vector<2x256xf32>
    %83 = arith.addf %62, %82 : vector<2x256xf32>
    %c10 = arith.constant 10 : index
    %84 = memref.load %arg2[%c10] : memref<144xf32, #tpu.memory_space<smem>>
    %85 = vector.broadcast %84 : f32 to vector<2x256xf32>
    %86 = arith.mulf %85, %75 : vector<2x256xf32>
    %87 = arith.addf %66, %86 : vector<2x256xf32>
    %c11 = arith.constant 11 : index
    %88 = memref.load %arg2[%c11] : memref<144xf32, #tpu.memory_space<smem>>
    %89 = vector.broadcast %88 : f32 to vector<2x256xf32>
    %90 = arith.mulf %89, %75 : vector<2x256xf32>
    %91 = arith.addf %70, %90 : vector<2x256xf32>
    %c17_i32_23 = arith.constant 17 : i32
    %92 = tpu.dynamic_rotate %24 by %c17_i32_23 dim 1 : vector<2x256xf32>, i32 -> vector<2x256xf32>
    %cst_24 = arith.constant 0.000000e+00 : f32
    %93 = vector.shape_cast %13 : vector<1x256xi1> to vector<1x256xi1>
    %94 = vector.broadcast %93 : vector<1x256xi1> to vector<2x256xi1>
    %95 = vector.broadcast %cst_24 : f32 to vector<2x256xf32>
    %96 = arith.select %94, %92, %95 : vector<2x256xi1>, vector<2x256xf32>
    %c12 = arith.constant 12 : index
    %97 = memref.load %arg2[%c12] : memref<144xf32, #tpu.memory_space<smem>>
    %98 = vector.broadcast %97 : f32 to vector<2x256xf32>
    %99 = arith.mulf %98, %96 : vector<2x256xf32>
    %100 = arith.addf %79, %99 : vector<2x256xf32>
    %c13 = arith.constant 13 : index
    %101 = memref.load %arg2[%c13] : memref<144xf32, #tpu.memory_space<smem>>
    %102 = vector.broadcast %101 : f32 to vector<2x256xf32>
    %103 = arith.mulf %102, %96 : vector<2x256xf32>
    %104 = arith.addf %83, %103 : vector<2x256xf32>
    %c14 = arith.constant 14 : index
    %105 = memref.load %arg2[%c14] : memref<144xf32, #tpu.memory_space<smem>>
    %106 = vector.broadcast %105 : f32 to vector<2x256xf32>
    %107 = arith.mulf %106, %96 : vector<2x256xf32>
    %108 = arith.addf %87, %107 : vector<2x256xf32>
    %c15 = arith.constant 15 : index
    %109 = memref.load %arg2[%c15] : memref<144xf32, #tpu.memory_space<smem>>
    %110 = vector.broadcast %109 : f32 to vector<2x256xf32>
    %111 = arith.mulf %110, %96 : vector<2x256xf32>
    %112 = arith.addf %91, %111 : vector<2x256xf32>
    %c16_i32 = arith.constant 16 : i32
    %113 = tpu.dynamic_rotate %18 by %c16_i32 dim 1 : vector<2x256xf32>, i32 -> vector<2x256xf32>
    %cst_25 = arith.constant 0.000000e+00 : f32
    %114 = vector.shape_cast %6 : vector<1x256xi1> to vector<1x256xi1>
    %115 = vector.broadcast %114 : vector<1x256xi1> to vector<2x256xi1>
    %116 = vector.broadcast %cst_25 : f32 to vector<2x256xf32>
    %117 = arith.select %115, %113, %116 : vector<2x256xi1>, vector<2x256xf32>
    %c16 = arith.constant 16 : index
    %118 = memref.load %arg2[%c16] : memref<144xf32, #tpu.memory_space<smem>>
    %119 = vector.broadcast %118 : f32 to vector<2x256xf32>
    %120 = arith.mulf %119, %117 : vector<2x256xf32>
    %121 = arith.addf %100, %120 : vector<2x256xf32>
    %c17 = arith.constant 17 : index
    %122 = memref.load %arg2[%c17] : memref<144xf32, #tpu.memory_space<smem>>
    %123 = vector.broadcast %122 : f32 to vector<2x256xf32>
    %124 = arith.mulf %123, %117 : vector<2x256xf32>
    %125 = arith.addf %104, %124 : vector<2x256xf32>
    %c18 = arith.constant 18 : index
    %126 = memref.load %arg2[%c18] : memref<144xf32, #tpu.memory_space<smem>>
    %127 = vector.broadcast %126 : f32 to vector<2x256xf32>
    %128 = arith.mulf %127, %117 : vector<2x256xf32>
    %129 = arith.addf %108, %128 : vector<2x256xf32>
    %c19 = arith.constant 19 : index
    %130 = memref.load %arg2[%c19] : memref<144xf32, #tpu.memory_space<smem>>
    %131 = vector.broadcast %130 : f32 to vector<2x256xf32>
    %132 = arith.mulf %131, %117 : vector<2x256xf32>
    %133 = arith.addf %112, %132 : vector<2x256xf32>
    %c16_i32_26 = arith.constant 16 : i32
    %134 = tpu.dynamic_rotate %20 by %c16_i32_26 dim 1 : vector<2x256xf32>, i32 -> vector<2x256xf32>
    %cst_27 = arith.constant 0.000000e+00 : f32
    %135 = vector.shape_cast %6 : vector<1x256xi1> to vector<1x256xi1>
    %136 = vector.broadcast %135 : vector<1x256xi1> to vector<2x256xi1>
    %137 = vector.broadcast %cst_27 : f32 to vector<2x256xf32>
    %138 = arith.select %136, %134, %137 : vector<2x256xi1>, vector<2x256xf32>
    %c20 = arith.constant 20 : index
    %139 = memref.load %arg2[%c20] : memref<144xf32, #tpu.memory_space<smem>>
    %140 = vector.broadcast %139 : f32 to vector<2x256xf32>
    %141 = arith.mulf %140, %138 : vector<2x256xf32>
    %142 = arith.addf %121, %141 : vector<2x256xf32>
    %c21 = arith.constant 21 : index
    %143 = memref.load %arg2[%c21] : memref<144xf32, #tpu.memory_space<smem>>
    %144 = vector.broadcast %143 : f32 to vector<2x256xf32>
    %145 = arith.mulf %144, %138 : vector<2x256xf32>
    %146 = arith.addf %125, %145 : vector<2x256xf32>
    %c22 = arith.constant 22 : index
    %147 = memref.load %arg2[%c22] : memref<144xf32, #tpu.memory_space<smem>>
    %148 = vector.broadcast %147 : f32 to vector<2x256xf32>
    %149 = arith.mulf %148, %138 : vector<2x256xf32>
    %150 = arith.addf %129, %149 : vector<2x256xf32>
    %c23 = arith.constant 23 : index
    %151 = memref.load %arg2[%c23] : memref<144xf32, #tpu.memory_space<smem>>
    %152 = vector.broadcast %151 : f32 to vector<2x256xf32>
    %153 = arith.mulf %152, %138 : vector<2x256xf32>
    %154 = arith.addf %133, %153 : vector<2x256xf32>
    %c16_i32_28 = arith.constant 16 : i32
    %155 = tpu.dynamic_rotate %22 by %c16_i32_28 dim 1 : vector<2x256xf32>, i32 -> vector<2x256xf32>
    %cst_29 = arith.constant 0.000000e+00 : f32
    %156 = vector.shape_cast %6 : vector<1x256xi1> to vector<1x256xi1>
    %157 = vector.broadcast %156 : vector<1x256xi1> to vector<2x256xi1>
    %158 = vector.broadcast %cst_29 : f32 to vector<2x256xf32>
    %159 = arith.select %157, %155, %158 : vector<2x256xi1>, vector<2x256xf32>
    %c24 = arith.constant 24 : index
    %160 = memref.load %arg2[%c24] : memref<144xf32, #tpu.memory_space<smem>>
    %161 = vector.broadcast %160 : f32 to vector<2x256xf32>
    %162 = arith.mulf %161, %159 : vector<2x256xf32>
    %163 = arith.addf %142, %162 : vector<2x256xf32>
    %c25 = arith.constant 25 : index
    %164 = memref.load %arg2[%c25] : memref<144xf32, #tpu.memory_space<smem>>
    %165 = vector.broadcast %164 : f32 to vector<2x256xf32>
    %166 = arith.mulf %165, %159 : vector<2x256xf32>
    %167 = arith.addf %146, %166 : vector<2x256xf32>
    %c26 = arith.constant 26 : index
    %168 = memref.load %arg2[%c26] : memref<144xf32, #tpu.memory_space<smem>>
    %169 = vector.broadcast %168 : f32 to vector<2x256xf32>
    %170 = arith.mulf %169, %159 : vector<2x256xf32>
    %171 = arith.addf %150, %170 : vector<2x256xf32>
    %c27 = arith.constant 27 : index
    %172 = memref.load %arg2[%c27] : memref<144xf32, #tpu.memory_space<smem>>
    %173 = vector.broadcast %172 : f32 to vector<2x256xf32>
    %174 = arith.mulf %173, %159 : vector<2x256xf32>
    %175 = arith.addf %154, %174 : vector<2x256xf32>
    %c16_i32_30 = arith.constant 16 : i32
    %176 = tpu.dynamic_rotate %24 by %c16_i32_30 dim 1 : vector<2x256xf32>, i32 -> vector<2x256xf32>
    %cst_31 = arith.constant 0.000000e+00 : f32
    %177 = vector.shape_cast %6 : vector<1x256xi1> to vector<1x256xi1>
    %178 = vector.broadcast %177 : vector<1x256xi1> to vector<2x256xi1>
    %179 = vector.broadcast %cst_31 : f32 to vector<2x256xf32>
    %180 = arith.select %178, %176, %179 : vector<2x256xi1>, vector<2x256xf32>
    %c28 = arith.constant 28 : index
    %181 = memref.load %arg2[%c28] : memref<144xf32, #tpu.memory_space<smem>>
    %182 = vector.broadcast %181 : f32 to vector<2x256xf32>
    %183 = arith.mulf %182, %180 : vector<2x256xf32>
    %184 = arith.addf %163, %183 : vector<2x256xf32>
    %c29 = arith.constant 29 : index
    %185 = memref.load %arg2[%c29] : memref<144xf32, #tpu.memory_space<smem>>
    %186 = vector.broadcast %185 : f32 to vector<2x256xf32>
    %187 = arith.mulf %186, %180 : vector<2x256xf32>
    %188 = arith.addf %167, %187 : vector<2x256xf32>
    %c30 = arith.constant 30 : index
    %189 = memref.load %arg2[%c30] : memref<144xf32, #tpu.memory_space<smem>>
    %190 = vector.broadcast %189 : f32 to vector<2x256xf32>
    %191 = arith.mulf %190, %180 : vector<2x256xf32>
    %192 = arith.addf %171, %191 : vector<2x256xf32>
    %c31 = arith.constant 31 : index
    %193 = memref.load %arg2[%c31] : memref<144xf32, #tpu.memory_space<smem>>
    %194 = vector.broadcast %193 : f32 to vector<2x256xf32>
    %195 = arith.mulf %194, %180 : vector<2x256xf32>
    %196 = arith.addf %175, %195 : vector<2x256xf32>
    %c15_i32_32 = arith.constant 15 : i32
    %197 = tpu.dynamic_rotate %18 by %c15_i32_32 dim 1 : vector<2x256xf32>, i32 -> vector<2x256xf32>
    %cst_33 = arith.constant 0.000000e+00 : f32
    %198 = vector.shape_cast %14 : vector<1x256xi1> to vector<1x256xi1>
    %199 = vector.broadcast %198 : vector<1x256xi1> to vector<2x256xi1>
    %200 = vector.broadcast %cst_33 : f32 to vector<2x256xf32>
    %201 = arith.select %199, %197, %200 : vector<2x256xi1>, vector<2x256xf32>
    %c32 = arith.constant 32 : index
    %202 = memref.load %arg2[%c32] : memref<144xf32, #tpu.memory_space<smem>>
    %203 = vector.broadcast %202 : f32 to vector<2x256xf32>
    %204 = arith.mulf %203, %201 : vector<2x256xf32>
    %205 = arith.addf %184, %204 : vector<2x256xf32>
    %c33 = arith.constant 33 : index
    %206 = memref.load %arg2[%c33] : memref<144xf32, #tpu.memory_space<smem>>
    %207 = vector.broadcast %206 : f32 to vector<2x256xf32>
    %208 = arith.mulf %207, %201 : vector<2x256xf32>
    %209 = arith.addf %188, %208 : vector<2x256xf32>
    %c34 = arith.constant 34 : index
    %210 = memref.load %arg2[%c34] : memref<144xf32, #tpu.memory_space<smem>>
    %211 = vector.broadcast %210 : f32 to vector<2x256xf32>
    %212 = arith.mulf %211, %201 : vector<2x256xf32>
    %213 = arith.addf %192, %212 : vector<2x256xf32>
    %c35 = arith.constant 35 : index
    %214 = memref.load %arg2[%c35] : memref<144xf32, #tpu.memory_space<smem>>
    %215 = vector.broadcast %214 : f32 to vector<2x256xf32>
    %216 = arith.mulf %215, %201 : vector<2x256xf32>
    %217 = arith.addf %196, %216 : vector<2x256xf32>
    %c15_i32_34 = arith.constant 15 : i32
    %218 = tpu.dynamic_rotate %20 by %c15_i32_34 dim 1 : vector<2x256xf32>, i32 -> vector<2x256xf32>
    %cst_35 = arith.constant 0.000000e+00 : f32
    %219 = vector.shape_cast %14 : vector<1x256xi1> to vector<1x256xi1>
    %220 = vector.broadcast %219 : vector<1x256xi1> to vector<2x256xi1>
    %221 = vector.broadcast %cst_35 : f32 to vector<2x256xf32>
    %222 = arith.select %220, %218, %221 : vector<2x256xi1>, vector<2x256xf32>
    %c36 = arith.constant 36 : index
    %223 = memref.load %arg2[%c36] : memref<144xf32, #tpu.memory_space<smem>>
    %224 = vector.broadcast %223 : f32 to vector<2x256xf32>
    %225 = arith.mulf %224, %222 : vector<2x256xf32>
    %226 = arith.addf %205, %225 : vector<2x256xf32>
    %c37 = arith.constant 37 : index
    %227 = memref.load %arg2[%c37] : memref<144xf32, #tpu.memory_space<smem>>
    %228 = vector.broadcast %227 : f32 to vector<2x256xf32>
    %229 = arith.mulf %228, %222 : vector<2x256xf32>
    %230 = arith.addf %209, %229 : vector<2x256xf32>
    %c38 = arith.constant 38 : index
    %231 = memref.load %arg2[%c38] : memref<144xf32, #tpu.memory_space<smem>>
    %232 = vector.broadcast %231 : f32 to vector<2x256xf32>
    %233 = arith.mulf %232, %222 : vector<2x256xf32>
    %234 = arith.addf %213, %233 : vector<2x256xf32>
    %c39 = arith.constant 39 : index
    %235 = memref.load %arg2[%c39] : memref<144xf32, #tpu.memory_space<smem>>
    %236 = vector.broadcast %235 : f32 to vector<2x256xf32>
    %237 = arith.mulf %236, %222 : vector<2x256xf32>
    %238 = arith.addf %217, %237 : vector<2x256xf32>
    %c15_i32_36 = arith.constant 15 : i32
    %239 = tpu.dynamic_rotate %22 by %c15_i32_36 dim 1 : vector<2x256xf32>, i32 -> vector<2x256xf32>
    %cst_37 = arith.constant 0.000000e+00 : f32
    %240 = vector.shape_cast %14 : vector<1x256xi1> to vector<1x256xi1>
    %241 = vector.broadcast %240 : vector<1x256xi1> to vector<2x256xi1>
    %242 = vector.broadcast %cst_37 : f32 to vector<2x256xf32>
    %243 = arith.select %241, %239, %242 : vector<2x256xi1>, vector<2x256xf32>
    %c40 = arith.constant 40 : index
    %244 = memref.load %arg2[%c40] : memref<144xf32, #tpu.memory_space<smem>>
    %245 = vector.broadcast %244 : f32 to vector<2x256xf32>
    %246 = arith.mulf %245, %243 : vector<2x256xf32>
    %247 = arith.addf %226, %246 : vector<2x256xf32>
    %c41 = arith.constant 41 : index
    %248 = memref.load %arg2[%c41] : memref<144xf32, #tpu.memory_space<smem>>
    %249 = vector.broadcast %248 : f32 to vector<2x256xf32>
    %250 = arith.mulf %249, %243 : vector<2x256xf32>
    %251 = arith.addf %230, %250 : vector<2x256xf32>
    %c42 = arith.constant 42 : index
    %252 = memref.load %arg2[%c42] : memref<144xf32, #tpu.memory_space<smem>>
    %253 = vector.broadcast %252 : f32 to vector<2x256xf32>
    %254 = arith.mulf %253, %243 : vector<2x256xf32>
    %255 = arith.addf %234, %254 : vector<2x256xf32>
    %c43 = arith.constant 43 : index
    %256 = memref.load %arg2[%c43] : memref<144xf32, #tpu.memory_space<smem>>
    %257 = vector.broadcast %256 : f32 to vector<2x256xf32>
    %258 = arith.mulf %257, %243 : vector<2x256xf32>
    %259 = arith.addf %238, %258 : vector<2x256xf32>
    %c15_i32_38 = arith.constant 15 : i32
    %260 = tpu.dynamic_rotate %24 by %c15_i32_38 dim 1 : vector<2x256xf32>, i32 -> vector<2x256xf32>
    %cst_39 = arith.constant 0.000000e+00 : f32
    %261 = vector.shape_cast %14 : vector<1x256xi1> to vector<1x256xi1>
    %262 = vector.broadcast %261 : vector<1x256xi1> to vector<2x256xi1>
    %263 = vector.broadcast %cst_39 : f32 to vector<2x256xf32>
    %264 = arith.select %262, %260, %263 : vector<2x256xi1>, vector<2x256xf32>
    %c44 = arith.constant 44 : index
    %265 = memref.load %arg2[%c44] : memref<144xf32, #tpu.memory_space<smem>>
    %266 = vector.broadcast %265 : f32 to vector<2x256xf32>
    %267 = arith.mulf %266, %264 : vector<2x256xf32>
    %268 = arith.addf %247, %267 : vector<2x256xf32>
    %c45 = arith.constant 45 : index
    %269 = memref.load %arg2[%c45] : memref<144xf32, #tpu.memory_space<smem>>
    %270 = vector.broadcast %269 : f32 to vector<2x256xf32>
    %271 = arith.mulf %270, %264 : vector<2x256xf32>
    %272 = arith.addf %251, %271 : vector<2x256xf32>
    %c46 = arith.constant 46 : index
    %273 = memref.load %arg2[%c46] : memref<144xf32, #tpu.memory_space<smem>>
    %274 = vector.broadcast %273 : f32 to vector<2x256xf32>
    %275 = arith.mulf %274, %264 : vector<2x256xf32>
    %276 = arith.addf %255, %275 : vector<2x256xf32>
    %c47 = arith.constant 47 : index
    %277 = memref.load %arg2[%c47] : memref<144xf32, #tpu.memory_space<smem>>
    %278 = vector.broadcast %277 : f32 to vector<2x256xf32>
    %279 = arith.mulf %278, %264 : vector<2x256xf32>
    %280 = arith.addf %259, %279 : vector<2x256xf32>
    %c1_i32_40 = arith.constant 1 : i32
    %281 = tpu.dynamic_rotate %18 by %c1_i32_40 dim 1 : vector<2x256xf32>, i32 -> vector<2x256xf32>
    %cst_41 = arith.constant 0.000000e+00 : f32
    %282 = vector.shape_cast %10 : vector<1x256xi1> to vector<1x256xi1>
    %283 = vector.broadcast %282 : vector<1x256xi1> to vector<2x256xi1>
    %284 = vector.broadcast %cst_41 : f32 to vector<2x256xf32>
    %285 = arith.select %283, %281, %284 : vector<2x256xi1>, vector<2x256xf32>
    %c48 = arith.constant 48 : index
    %286 = memref.load %arg2[%c48] : memref<144xf32, #tpu.memory_space<smem>>
    %287 = vector.broadcast %286 : f32 to vector<2x256xf32>
    %288 = arith.mulf %287, %285 : vector<2x256xf32>
    %289 = arith.addf %268, %288 : vector<2x256xf32>
    %c49 = arith.constant 49 : index
    %290 = memref.load %arg2[%c49] : memref<144xf32, #tpu.memory_space<smem>>
    %291 = vector.broadcast %290 : f32 to vector<2x256xf32>
    %292 = arith.mulf %291, %285 : vector<2x256xf32>
    %293 = arith.addf %272, %292 : vector<2x256xf32>
    %c50 = arith.constant 50 : index
    %294 = memref.load %arg2[%c50] : memref<144xf32, #tpu.memory_space<smem>>
    %295 = vector.broadcast %294 : f32 to vector<2x256xf32>
    %296 = arith.mulf %295, %285 : vector<2x256xf32>
    %297 = arith.addf %276, %296 : vector<2x256xf32>
    %c51 = arith.constant 51 : index
    %298 = memref.load %arg2[%c51] : memref<144xf32, #tpu.memory_space<smem>>
    %299 = vector.broadcast %298 : f32 to vector<2x256xf32>
    %300 = arith.mulf %299, %285 : vector<2x256xf32>
    %301 = arith.addf %280, %300 : vector<2x256xf32>
    %c1_i32_42 = arith.constant 1 : i32
    %302 = tpu.dynamic_rotate %20 by %c1_i32_42 dim 1 : vector<2x256xf32>, i32 -> vector<2x256xf32>
    %cst_43 = arith.constant 0.000000e+00 : f32
    %303 = vector.shape_cast %10 : vector<1x256xi1> to vector<1x256xi1>
    %304 = vector.broadcast %303 : vector<1x256xi1> to vector<2x256xi1>
    %305 = vector.broadcast %cst_43 : f32 to vector<2x256xf32>
    %306 = arith.select %304, %302, %305 : vector<2x256xi1>, vector<2x256xf32>
    %c52 = arith.constant 52 : index
    %307 = memref.load %arg2[%c52] : memref<144xf32, #tpu.memory_space<smem>>
    %308 = vector.broadcast %307 : f32 to vector<2x256xf32>
    %309 = arith.mulf %308, %306 : vector<2x256xf32>
    %310 = arith.addf %289, %309 : vector<2x256xf32>
    %c53 = arith.constant 53 : index
    %311 = memref.load %arg2[%c53] : memref<144xf32, #tpu.memory_space<smem>>
    %312 = vector.broadcast %311 : f32 to vector<2x256xf32>
    %313 = arith.mulf %312, %306 : vector<2x256xf32>
    %314 = arith.addf %293, %313 : vector<2x256xf32>
    %c54 = arith.constant 54 : index
    %315 = memref.load %arg2[%c54] : memref<144xf32, #tpu.memory_space<smem>>
    %316 = vector.broadcast %315 : f32 to vector<2x256xf32>
    %317 = arith.mulf %316, %306 : vector<2x256xf32>
    %318 = arith.addf %297, %317 : vector<2x256xf32>
    %c55 = arith.constant 55 : index
    %319 = memref.load %arg2[%c55] : memref<144xf32, #tpu.memory_space<smem>>
    %320 = vector.broadcast %319 : f32 to vector<2x256xf32>
    %321 = arith.mulf %320, %306 : vector<2x256xf32>
    %322 = arith.addf %301, %321 : vector<2x256xf32>
    %c1_i32_44 = arith.constant 1 : i32
    %323 = tpu.dynamic_rotate %22 by %c1_i32_44 dim 1 : vector<2x256xf32>, i32 -> vector<2x256xf32>
    %cst_45 = arith.constant 0.000000e+00 : f32
    %324 = vector.shape_cast %10 : vector<1x256xi1> to vector<1x256xi1>
    %325 = vector.broadcast %324 : vector<1x256xi1> to vector<2x256xi1>
    %326 = vector.broadcast %cst_45 : f32 to vector<2x256xf32>
    %327 = arith.select %325, %323, %326 : vector<2x256xi1>, vector<2x256xf32>
    %c56 = arith.constant 56 : index
    %328 = memref.load %arg2[%c56] : memref<144xf32, #tpu.memory_space<smem>>
    %329 = vector.broadcast %328 : f32 to vector<2x256xf32>
    %330 = arith.mulf %329, %327 : vector<2x256xf32>
    %331 = arith.addf %310, %330 : vector<2x256xf32>
    %c57 = arith.constant 57 : index
    %332 = memref.load %arg2[%c57] : memref<144xf32, #tpu.memory_space<smem>>
    %333 = vector.broadcast %332 : f32 to vector<2x256xf32>
    %334 = arith.mulf %333, %327 : vector<2x256xf32>
    %335 = arith.addf %314, %334 : vector<2x256xf32>
    %c58 = arith.constant 58 : index
    %336 = memref.load %arg2[%c58] : memref<144xf32, #tpu.memory_space<smem>>
    %337 = vector.broadcast %336 : f32 to vector<2x256xf32>
    %338 = arith.mulf %337, %327 : vector<2x256xf32>
    %339 = arith.addf %318, %338 : vector<2x256xf32>
    %c59 = arith.constant 59 : index
    %340 = memref.load %arg2[%c59] : memref<144xf32, #tpu.memory_space<smem>>
    %341 = vector.broadcast %340 : f32 to vector<2x256xf32>
    %342 = arith.mulf %341, %327 : vector<2x256xf32>
    %343 = arith.addf %322, %342 : vector<2x256xf32>
    %c1_i32_46 = arith.constant 1 : i32
    %344 = tpu.dynamic_rotate %24 by %c1_i32_46 dim 1 : vector<2x256xf32>, i32 -> vector<2x256xf32>
    %cst_47 = arith.constant 0.000000e+00 : f32
    %345 = vector.shape_cast %10 : vector<1x256xi1> to vector<1x256xi1>
    %346 = vector.broadcast %345 : vector<1x256xi1> to vector<2x256xi1>
    %347 = vector.broadcast %cst_47 : f32 to vector<2x256xf32>
    %348 = arith.select %346, %344, %347 : vector<2x256xi1>, vector<2x256xf32>
    %c60 = arith.constant 60 : index
    %349 = memref.load %arg2[%c60] : memref<144xf32, #tpu.memory_space<smem>>
    %350 = vector.broadcast %349 : f32 to vector<2x256xf32>
    %351 = arith.mulf %350, %348 : vector<2x256xf32>
    %352 = arith.addf %331, %351 : vector<2x256xf32>
    %c61 = arith.constant 61 : index
    %353 = memref.load %arg2[%c61] : memref<144xf32, #tpu.memory_space<smem>>
    %354 = vector.broadcast %353 : f32 to vector<2x256xf32>
    %355 = arith.mulf %354, %348 : vector<2x256xf32>
    %356 = arith.addf %335, %355 : vector<2x256xf32>
    %c62 = arith.constant 62 : index
    %357 = memref.load %arg2[%c62] : memref<144xf32, #tpu.memory_space<smem>>
    %358 = vector.broadcast %357 : f32 to vector<2x256xf32>
    %359 = arith.mulf %358, %348 : vector<2x256xf32>
    %360 = arith.addf %339, %359 : vector<2x256xf32>
    %c63 = arith.constant 63 : index
    %361 = memref.load %arg2[%c63] : memref<144xf32, #tpu.memory_space<smem>>
    %362 = vector.broadcast %361 : f32 to vector<2x256xf32>
    %363 = arith.mulf %362, %348 : vector<2x256xf32>
    %364 = arith.addf %343, %363 : vector<2x256xf32>
    %c64 = arith.constant 64 : index
    %365 = memref.load %arg2[%c64] : memref<144xf32, #tpu.memory_space<smem>>
    %366 = vector.broadcast %365 : f32 to vector<2x256xf32>
    %367 = arith.mulf %366, %18 : vector<2x256xf32>
    %368 = arith.addf %352, %367 : vector<2x256xf32>
    %c65 = arith.constant 65 : index
    %369 = memref.load %arg2[%c65] : memref<144xf32, #tpu.memory_space<smem>>
    %370 = vector.broadcast %369 : f32 to vector<2x256xf32>
    %371 = arith.mulf %370, %18 : vector<2x256xf32>
    %372 = arith.addf %356, %371 : vector<2x256xf32>
    %c66 = arith.constant 66 : index
    %373 = memref.load %arg2[%c66] : memref<144xf32, #tpu.memory_space<smem>>
    %374 = vector.broadcast %373 : f32 to vector<2x256xf32>
    %375 = arith.mulf %374, %18 : vector<2x256xf32>
    %376 = arith.addf %360, %375 : vector<2x256xf32>
    %c67 = arith.constant 67 : index
    %377 = memref.load %arg2[%c67] : memref<144xf32, #tpu.memory_space<smem>>
    %378 = vector.broadcast %377 : f32 to vector<2x256xf32>
    %379 = arith.mulf %378, %18 : vector<2x256xf32>
    %380 = arith.addf %364, %379 : vector<2x256xf32>
    %c68 = arith.constant 68 : index
    %381 = memref.load %arg2[%c68] : memref<144xf32, #tpu.memory_space<smem>>
    %382 = vector.broadcast %381 : f32 to vector<2x256xf32>
    %383 = arith.mulf %382, %20 : vector<2x256xf32>
    %384 = arith.addf %368, %383 : vector<2x256xf32>
    %c69 = arith.constant 69 : index
    %385 = memref.load %arg2[%c69] : memref<144xf32, #tpu.memory_space<smem>>
    %386 = vector.broadcast %385 : f32 to vector<2x256xf32>
    %387 = arith.mulf %386, %20 : vector<2x256xf32>
    %388 = arith.addf %372, %387 : vector<2x256xf32>
    %c70 = arith.constant 70 : index
    %389 = memref.load %arg2[%c70] : memref<144xf32, #tpu.memory_space<smem>>
    %390 = vector.broadcast %389 : f32 to vector<2x256xf32>
    %391 = arith.mulf %390, %20 : vector<2x256xf32>
    %392 = arith.addf %376, %391 : vector<2x256xf32>
    %c71 = arith.constant 71 : index
    %393 = memref.load %arg2[%c71] : memref<144xf32, #tpu.memory_space<smem>>
    %394 = vector.broadcast %393 : f32 to vector<2x256xf32>
    %395 = arith.mulf %394, %20 : vector<2x256xf32>
    %396 = arith.addf %380, %395 : vector<2x256xf32>
    %c72 = arith.constant 72 : index
    %397 = memref.load %arg2[%c72] : memref<144xf32, #tpu.memory_space<smem>>
    %398 = vector.broadcast %397 : f32 to vector<2x256xf32>
    %399 = arith.mulf %398, %22 : vector<2x256xf32>
    %400 = arith.addf %384, %399 : vector<2x256xf32>
    %c73 = arith.constant 73 : index
    %401 = memref.load %arg2[%c73] : memref<144xf32, #tpu.memory_space<smem>>
    %402 = vector.broadcast %401 : f32 to vector<2x256xf32>
    %403 = arith.mulf %402, %22 : vector<2x256xf32>
    %404 = arith.addf %388, %403 : vector<2x256xf32>
    %c74 = arith.constant 74 : index
    %405 = memref.load %arg2[%c74] : memref<144xf32, #tpu.memory_space<smem>>
    %406 = vector.broadcast %405 : f32 to vector<2x256xf32>
    %407 = arith.mulf %406, %22 : vector<2x256xf32>
    %408 = arith.addf %392, %407 : vector<2x256xf32>
    %c75 = arith.constant 75 : index
    %409 = memref.load %arg2[%c75] : memref<144xf32, #tpu.memory_space<smem>>
    %410 = vector.broadcast %409 : f32 to vector<2x256xf32>
    %411 = arith.mulf %410, %22 : vector<2x256xf32>
    %412 = arith.addf %396, %411 : vector<2x256xf32>
    %c76 = arith.constant 76 : index
    %413 = memref.load %arg2[%c76] : memref<144xf32, #tpu.memory_space<smem>>
    %414 = vector.broadcast %413 : f32 to vector<2x256xf32>
    %415 = arith.mulf %414, %24 : vector<2x256xf32>
    %416 = arith.addf %400, %415 : vector<2x256xf32>
    %c77 = arith.constant 77 : index
    %417 = memref.load %arg2[%c77] : memref<144xf32, #tpu.memory_space<smem>>
    %418 = vector.broadcast %417 : f32 to vector<2x256xf32>
    %419 = arith.mulf %418, %24 : vector<2x256xf32>
    %420 = arith.addf %404, %419 : vector<2x256xf32>
    %c78 = arith.constant 78 : index
    %421 = memref.load %arg2[%c78] : memref<144xf32, #tpu.memory_space<smem>>
    %422 = vector.broadcast %421 : f32 to vector<2x256xf32>
    %423 = arith.mulf %422, %24 : vector<2x256xf32>
    %424 = arith.addf %408, %423 : vector<2x256xf32>
    %c79 = arith.constant 79 : index
    %425 = memref.load %arg2[%c79] : memref<144xf32, #tpu.memory_space<smem>>
    %426 = vector.broadcast %425 : f32 to vector<2x256xf32>
    %427 = arith.mulf %426, %24 : vector<2x256xf32>
    %428 = arith.addf %412, %427 : vector<2x256xf32>
    %c255_i32 = arith.constant 255 : i32
    %429 = tpu.dynamic_rotate %18 by %c255_i32 dim 1 : vector<2x256xf32>, i32 -> vector<2x256xf32>
    %cst_48 = arith.constant 0.000000e+00 : f32
    %430 = vector.shape_cast %12 : vector<1x256xi1> to vector<1x256xi1>
    %431 = vector.broadcast %430 : vector<1x256xi1> to vector<2x256xi1>
    %432 = vector.broadcast %cst_48 : f32 to vector<2x256xf32>
    %433 = arith.select %431, %429, %432 : vector<2x256xi1>, vector<2x256xf32>
    %c80 = arith.constant 80 : index
    %434 = memref.load %arg2[%c80] : memref<144xf32, #tpu.memory_space<smem>>
    %435 = vector.broadcast %434 : f32 to vector<2x256xf32>
    %436 = arith.mulf %435, %433 : vector<2x256xf32>
    %437 = arith.addf %416, %436 : vector<2x256xf32>
    %c81 = arith.constant 81 : index
    %438 = memref.load %arg2[%c81] : memref<144xf32, #tpu.memory_space<smem>>
    %439 = vector.broadcast %438 : f32 to vector<2x256xf32>
    %440 = arith.mulf %439, %433 : vector<2x256xf32>
    %441 = arith.addf %420, %440 : vector<2x256xf32>
    %c82 = arith.constant 82 : index
    %442 = memref.load %arg2[%c82] : memref<144xf32, #tpu.memory_space<smem>>
    %443 = vector.broadcast %442 : f32 to vector<2x256xf32>
    %444 = arith.mulf %443, %433 : vector<2x256xf32>
    %445 = arith.addf %424, %444 : vector<2x256xf32>
    %c83 = arith.constant 83 : index
    %446 = memref.load %arg2[%c83] : memref<144xf32, #tpu.memory_space<smem>>
    %447 = vector.broadcast %446 : f32 to vector<2x256xf32>
    %448 = arith.mulf %447, %433 : vector<2x256xf32>
    %449 = arith.addf %428, %448 : vector<2x256xf32>
    %c255_i32_49 = arith.constant 255 : i32
    %450 = tpu.dynamic_rotate %20 by %c255_i32_49 dim 1 : vector<2x256xf32>, i32 -> vector<2x256xf32>
    %cst_50 = arith.constant 0.000000e+00 : f32
    %451 = vector.shape_cast %12 : vector<1x256xi1> to vector<1x256xi1>
    %452 = vector.broadcast %451 : vector<1x256xi1> to vector<2x256xi1>
    %453 = vector.broadcast %cst_50 : f32 to vector<2x256xf32>
    %454 = arith.select %452, %450, %453 : vector<2x256xi1>, vector<2x256xf32>
    %c84 = arith.constant 84 : index
    %455 = memref.load %arg2[%c84] : memref<144xf32, #tpu.memory_space<smem>>
    %456 = vector.broadcast %455 : f32 to vector<2x256xf32>
    %457 = arith.mulf %456, %454 : vector<2x256xf32>
    %458 = arith.addf %437, %457 : vector<2x256xf32>
    %c85 = arith.constant 85 : index
    %459 = memref.load %arg2[%c85] : memref<144xf32, #tpu.memory_space<smem>>
    %460 = vector.broadcast %459 : f32 to vector<2x256xf32>
    %461 = arith.mulf %460, %454 : vector<2x256xf32>
    %462 = arith.addf %441, %461 : vector<2x256xf32>
    %c86 = arith.constant 86 : index
    %463 = memref.load %arg2[%c86] : memref<144xf32, #tpu.memory_space<smem>>
    %464 = vector.broadcast %463 : f32 to vector<2x256xf32>
    %465 = arith.mulf %464, %454 : vector<2x256xf32>
    %466 = arith.addf %445, %465 : vector<2x256xf32>
    %c87 = arith.constant 87 : index
    %467 = memref.load %arg2[%c87] : memref<144xf32, #tpu.memory_space<smem>>
    %468 = vector.broadcast %467 : f32 to vector<2x256xf32>
    %469 = arith.mulf %468, %454 : vector<2x256xf32>
    %470 = arith.addf %449, %469 : vector<2x256xf32>
    %c255_i32_51 = arith.constant 255 : i32
    %471 = tpu.dynamic_rotate %22 by %c255_i32_51 dim 1 : vector<2x256xf32>, i32 -> vector<2x256xf32>
    %cst_52 = arith.constant 0.000000e+00 : f32
    %472 = vector.shape_cast %12 : vector<1x256xi1> to vector<1x256xi1>
    %473 = vector.broadcast %472 : vector<1x256xi1> to vector<2x256xi1>
    %474 = vector.broadcast %cst_52 : f32 to vector<2x256xf32>
    %475 = arith.select %473, %471, %474 : vector<2x256xi1>, vector<2x256xf32>
    %c88 = arith.constant 88 : index
    %476 = memref.load %arg2[%c88] : memref<144xf32, #tpu.memory_space<smem>>
    %477 = vector.broadcast %476 : f32 to vector<2x256xf32>
    %478 = arith.mulf %477, %475 : vector<2x256xf32>
    %479 = arith.addf %458, %478 : vector<2x256xf32>
    %c89 = arith.constant 89 : index
    %480 = memref.load %arg2[%c89] : memref<144xf32, #tpu.memory_space<smem>>
    %481 = vector.broadcast %480 : f32 to vector<2x256xf32>
    %482 = arith.mulf %481, %475 : vector<2x256xf32>
    %483 = arith.addf %462, %482 : vector<2x256xf32>
    %c90 = arith.constant 90 : index
    %484 = memref.load %arg2[%c90] : memref<144xf32, #tpu.memory_space<smem>>
    %485 = vector.broadcast %484 : f32 to vector<2x256xf32>
    %486 = arith.mulf %485, %475 : vector<2x256xf32>
    %487 = arith.addf %466, %486 : vector<2x256xf32>
    %c91 = arith.constant 91 : index
    %488 = memref.load %arg2[%c91] : memref<144xf32, #tpu.memory_space<smem>>
    %489 = vector.broadcast %488 : f32 to vector<2x256xf32>
    %490 = arith.mulf %489, %475 : vector<2x256xf32>
    %491 = arith.addf %470, %490 : vector<2x256xf32>
    %c255_i32_53 = arith.constant 255 : i32
    %492 = tpu.dynamic_rotate %24 by %c255_i32_53 dim 1 : vector<2x256xf32>, i32 -> vector<2x256xf32>
    %cst_54 = arith.constant 0.000000e+00 : f32
    %493 = vector.shape_cast %12 : vector<1x256xi1> to vector<1x256xi1>
    %494 = vector.broadcast %493 : vector<1x256xi1> to vector<2x256xi1>
    %495 = vector.broadcast %cst_54 : f32 to vector<2x256xf32>
    %496 = arith.select %494, %492, %495 : vector<2x256xi1>, vector<2x256xf32>
    %c92 = arith.constant 92 : index
    %497 = memref.load %arg2[%c92] : memref<144xf32, #tpu.memory_space<smem>>
    %498 = vector.broadcast %497 : f32 to vector<2x256xf32>
    %499 = arith.mulf %498, %496 : vector<2x256xf32>
    %500 = arith.addf %479, %499 : vector<2x256xf32>
    %c93 = arith.constant 93 : index
    %501 = memref.load %arg2[%c93] : memref<144xf32, #tpu.memory_space<smem>>
    %502 = vector.broadcast %501 : f32 to vector<2x256xf32>
    %503 = arith.mulf %502, %496 : vector<2x256xf32>
    %504 = arith.addf %483, %503 : vector<2x256xf32>
    %c94 = arith.constant 94 : index
    %505 = memref.load %arg2[%c94] : memref<144xf32, #tpu.memory_space<smem>>
    %506 = vector.broadcast %505 : f32 to vector<2x256xf32>
    %507 = arith.mulf %506, %496 : vector<2x256xf32>
    %508 = arith.addf %487, %507 : vector<2x256xf32>
    %c95 = arith.constant 95 : index
    %509 = memref.load %arg2[%c95] : memref<144xf32, #tpu.memory_space<smem>>
    %510 = vector.broadcast %509 : f32 to vector<2x256xf32>
    %511 = arith.mulf %510, %496 : vector<2x256xf32>
    %512 = arith.addf %491, %511 : vector<2x256xf32>
    %c241_i32 = arith.constant 241 : i32
    %513 = tpu.dynamic_rotate %18 by %c241_i32 dim 1 : vector<2x256xf32>, i32 -> vector<2x256xf32>
    %cst_55 = arith.constant 0.000000e+00 : f32
    %514 = vector.shape_cast %15 : vector<1x256xi1> to vector<1x256xi1>
    %515 = vector.broadcast %514 : vector<1x256xi1> to vector<2x256xi1>
    %516 = vector.broadcast %cst_55 : f32 to vector<2x256xf32>
    %517 = arith.select %515, %513, %516 : vector<2x256xi1>, vector<2x256xf32>
    %c96 = arith.constant 96 : index
    %518 = memref.load %arg2[%c96] : memref<144xf32, #tpu.memory_space<smem>>
    %519 = vector.broadcast %518 : f32 to vector<2x256xf32>
    %520 = arith.mulf %519, %517 : vector<2x256xf32>
    %521 = arith.addf %500, %520 : vector<2x256xf32>
    %c97 = arith.constant 97 : index
    %522 = memref.load %arg2[%c97] : memref<144xf32, #tpu.memory_space<smem>>
    %523 = vector.broadcast %522 : f32 to vector<2x256xf32>
    %524 = arith.mulf %523, %517 : vector<2x256xf32>
    %525 = arith.addf %504, %524 : vector<2x256xf32>
    %c98 = arith.constant 98 : index
    %526 = memref.load %arg2[%c98] : memref<144xf32, #tpu.memory_space<smem>>
    %527 = vector.broadcast %526 : f32 to vector<2x256xf32>
    %528 = arith.mulf %527, %517 : vector<2x256xf32>
    %529 = arith.addf %508, %528 : vector<2x256xf32>
    %c99 = arith.constant 99 : index
    %530 = memref.load %arg2[%c99] : memref<144xf32, #tpu.memory_space<smem>>
    %531 = vector.broadcast %530 : f32 to vector<2x256xf32>
    %532 = arith.mulf %531, %517 : vector<2x256xf32>
    %533 = arith.addf %512, %532 : vector<2x256xf32>
    %c241_i32_56 = arith.constant 241 : i32
    %534 = tpu.dynamic_rotate %20 by %c241_i32_56 dim 1 : vector<2x256xf32>, i32 -> vector<2x256xf32>
    %cst_57 = arith.constant 0.000000e+00 : f32
    %535 = vector.shape_cast %15 : vector<1x256xi1> to vector<1x256xi1>
    %536 = vector.broadcast %535 : vector<1x256xi1> to vector<2x256xi1>
    %537 = vector.broadcast %cst_57 : f32 to vector<2x256xf32>
    %538 = arith.select %536, %534, %537 : vector<2x256xi1>, vector<2x256xf32>
    %c100 = arith.constant 100 : index
    %539 = memref.load %arg2[%c100] : memref<144xf32, #tpu.memory_space<smem>>
    %540 = vector.broadcast %539 : f32 to vector<2x256xf32>
    %541 = arith.mulf %540, %538 : vector<2x256xf32>
    %542 = arith.addf %521, %541 : vector<2x256xf32>
    %c101 = arith.constant 101 : index
    %543 = memref.load %arg2[%c101] : memref<144xf32, #tpu.memory_space<smem>>
    %544 = vector.broadcast %543 : f32 to vector<2x256xf32>
    %545 = arith.mulf %544, %538 : vector<2x256xf32>
    %546 = arith.addf %525, %545 : vector<2x256xf32>
    %c102 = arith.constant 102 : index
    %547 = memref.load %arg2[%c102] : memref<144xf32, #tpu.memory_space<smem>>
    %548 = vector.broadcast %547 : f32 to vector<2x256xf32>
    %549 = arith.mulf %548, %538 : vector<2x256xf32>
    %550 = arith.addf %529, %549 : vector<2x256xf32>
    %c103 = arith.constant 103 : index
    %551 = memref.load %arg2[%c103] : memref<144xf32, #tpu.memory_space<smem>>
    %552 = vector.broadcast %551 : f32 to vector<2x256xf32>
    %553 = arith.mulf %552, %538 : vector<2x256xf32>
    %554 = arith.addf %533, %553 : vector<2x256xf32>
    %c241_i32_58 = arith.constant 241 : i32
    %555 = tpu.dynamic_rotate %22 by %c241_i32_58 dim 1 : vector<2x256xf32>, i32 -> vector<2x256xf32>
    %cst_59 = arith.constant 0.000000e+00 : f32
    %556 = vector.shape_cast %15 : vector<1x256xi1> to vector<1x256xi1>
    %557 = vector.broadcast %556 : vector<1x256xi1> to vector<2x256xi1>
    %558 = vector.broadcast %cst_59 : f32 to vector<2x256xf32>
    %559 = arith.select %557, %555, %558 : vector<2x256xi1>, vector<2x256xf32>
    %c104 = arith.constant 104 : index
    %560 = memref.load %arg2[%c104] : memref<144xf32, #tpu.memory_space<smem>>
    %561 = vector.broadcast %560 : f32 to vector<2x256xf32>
    %562 = arith.mulf %561, %559 : vector<2x256xf32>
    %563 = arith.addf %542, %562 : vector<2x256xf32>
    %c105 = arith.constant 105 : index
    %564 = memref.load %arg2[%c105] : memref<144xf32, #tpu.memory_space<smem>>
    %565 = vector.broadcast %564 : f32 to vector<2x256xf32>
    %566 = arith.mulf %565, %559 : vector<2x256xf32>
    %567 = arith.addf %546, %566 : vector<2x256xf32>
    %c106 = arith.constant 106 : index
    %568 = memref.load %arg2[%c106] : memref<144xf32, #tpu.memory_space<smem>>
    %569 = vector.broadcast %568 : f32 to vector<2x256xf32>
    %570 = arith.mulf %569, %559 : vector<2x256xf32>
    %571 = arith.addf %550, %570 : vector<2x256xf32>
    %c107 = arith.constant 107 : index
    %572 = memref.load %arg2[%c107] : memref<144xf32, #tpu.memory_space<smem>>
    %573 = vector.broadcast %572 : f32 to vector<2x256xf32>
    %574 = arith.mulf %573, %559 : vector<2x256xf32>
    %575 = arith.addf %554, %574 : vector<2x256xf32>
    %c241_i32_60 = arith.constant 241 : i32
    %576 = tpu.dynamic_rotate %24 by %c241_i32_60 dim 1 : vector<2x256xf32>, i32 -> vector<2x256xf32>
    %cst_61 = arith.constant 0.000000e+00 : f32
    %577 = vector.shape_cast %15 : vector<1x256xi1> to vector<1x256xi1>
    %578 = vector.broadcast %577 : vector<1x256xi1> to vector<2x256xi1>
    %579 = vector.broadcast %cst_61 : f32 to vector<2x256xf32>
    %580 = arith.select %578, %576, %579 : vector<2x256xi1>, vector<2x256xf32>
    %c108 = arith.constant 108 : index
    %581 = memref.load %arg2[%c108] : memref<144xf32, #tpu.memory_space<smem>>
    %582 = vector.broadcast %581 : f32 to vector<2x256xf32>
    %583 = arith.mulf %582, %580 : vector<2x256xf32>
    %584 = arith.addf %563, %583 : vector<2x256xf32>
    %c109 = arith.constant 109 : index
    %585 = memref.load %arg2[%c109] : memref<144xf32, #tpu.memory_space<smem>>
    %586 = vector.broadcast %585 : f32 to vector<2x256xf32>
    %587 = arith.mulf %586, %580 : vector<2x256xf32>
    %588 = arith.addf %567, %587 : vector<2x256xf32>
    %c110 = arith.constant 110 : index
    %589 = memref.load %arg2[%c110] : memref<144xf32, #tpu.memory_space<smem>>
    %590 = vector.broadcast %589 : f32 to vector<2x256xf32>
    %591 = arith.mulf %590, %580 : vector<2x256xf32>
    %592 = arith.addf %571, %591 : vector<2x256xf32>
    %c111 = arith.constant 111 : index
    %593 = memref.load %arg2[%c111] : memref<144xf32, #tpu.memory_space<smem>>
    %594 = vector.broadcast %593 : f32 to vector<2x256xf32>
    %595 = arith.mulf %594, %580 : vector<2x256xf32>
    %596 = arith.addf %575, %595 : vector<2x256xf32>
    %c240_i32 = arith.constant 240 : i32
    %597 = tpu.dynamic_rotate %18 by %c240_i32 dim 1 : vector<2x256xf32>, i32 -> vector<2x256xf32>
    %cst_62 = arith.constant 0.000000e+00 : f32
    %598 = vector.shape_cast %8 : vector<1x256xi1> to vector<1x256xi1>
    %599 = vector.broadcast %598 : vector<1x256xi1> to vector<2x256xi1>
    %600 = vector.broadcast %cst_62 : f32 to vector<2x256xf32>
    %601 = arith.select %599, %597, %600 : vector<2x256xi1>, vector<2x256xf32>
    %c112 = arith.constant 112 : index
    %602 = memref.load %arg2[%c112] : memref<144xf32, #tpu.memory_space<smem>>
    %603 = vector.broadcast %602 : f32 to vector<2x256xf32>
    %604 = arith.mulf %603, %601 : vector<2x256xf32>
    %605 = arith.addf %584, %604 : vector<2x256xf32>
    %c113 = arith.constant 113 : index
    %606 = memref.load %arg2[%c113] : memref<144xf32, #tpu.memory_space<smem>>
    %607 = vector.broadcast %606 : f32 to vector<2x256xf32>
    %608 = arith.mulf %607, %601 : vector<2x256xf32>
    %609 = arith.addf %588, %608 : vector<2x256xf32>
    %c114 = arith.constant 114 : index
    %610 = memref.load %arg2[%c114] : memref<144xf32, #tpu.memory_space<smem>>
    %611 = vector.broadcast %610 : f32 to vector<2x256xf32>
    %612 = arith.mulf %611, %601 : vector<2x256xf32>
    %613 = arith.addf %592, %612 : vector<2x256xf32>
    %c115 = arith.constant 115 : index
    %614 = memref.load %arg2[%c115] : memref<144xf32, #tpu.memory_space<smem>>
    %615 = vector.broadcast %614 : f32 to vector<2x256xf32>
    %616 = arith.mulf %615, %601 : vector<2x256xf32>
    %617 = arith.addf %596, %616 : vector<2x256xf32>
    %c240_i32_63 = arith.constant 240 : i32
    %618 = tpu.dynamic_rotate %20 by %c240_i32_63 dim 1 : vector<2x256xf32>, i32 -> vector<2x256xf32>
    %cst_64 = arith.constant 0.000000e+00 : f32
    %619 = vector.shape_cast %8 : vector<1x256xi1> to vector<1x256xi1>
    %620 = vector.broadcast %619 : vector<1x256xi1> to vector<2x256xi1>
    %621 = vector.broadcast %cst_64 : f32 to vector<2x256xf32>
    %622 = arith.select %620, %618, %621 : vector<2x256xi1>, vector<2x256xf32>
    %c116 = arith.constant 116 : index
    %623 = memref.load %arg2[%c116] : memref<144xf32, #tpu.memory_space<smem>>
    %624 = vector.broadcast %623 : f32 to vector<2x256xf32>
    %625 = arith.mulf %624, %622 : vector<2x256xf32>
    %626 = arith.addf %605, %625 : vector<2x256xf32>
    %c117 = arith.constant 117 : index
    %627 = memref.load %arg2[%c117] : memref<144xf32, #tpu.memory_space<smem>>
    %628 = vector.broadcast %627 : f32 to vector<2x256xf32>
    %629 = arith.mulf %628, %622 : vector<2x256xf32>
    %630 = arith.addf %609, %629 : vector<2x256xf32>
    %c118 = arith.constant 118 : index
    %631 = memref.load %arg2[%c118] : memref<144xf32, #tpu.memory_space<smem>>
    %632 = vector.broadcast %631 : f32 to vector<2x256xf32>
    %633 = arith.mulf %632, %622 : vector<2x256xf32>
    %634 = arith.addf %613, %633 : vector<2x256xf32>
    %c119 = arith.constant 119 : index
    %635 = memref.load %arg2[%c119] : memref<144xf32, #tpu.memory_space<smem>>
    %636 = vector.broadcast %635 : f32 to vector<2x256xf32>
    %637 = arith.mulf %636, %622 : vector<2x256xf32>
    %638 = arith.addf %617, %637 : vector<2x256xf32>
    %c240_i32_65 = arith.constant 240 : i32
    %639 = tpu.dynamic_rotate %22 by %c240_i32_65 dim 1 : vector<2x256xf32>, i32 -> vector<2x256xf32>
    %cst_66 = arith.constant 0.000000e+00 : f32
    %640 = vector.shape_cast %8 : vector<1x256xi1> to vector<1x256xi1>
    %641 = vector.broadcast %640 : vector<1x256xi1> to vector<2x256xi1>
    %642 = vector.broadcast %cst_66 : f32 to vector<2x256xf32>
    %643 = arith.select %641, %639, %642 : vector<2x256xi1>, vector<2x256xf32>
    %c120 = arith.constant 120 : index
    %644 = memref.load %arg2[%c120] : memref<144xf32, #tpu.memory_space<smem>>
    %645 = vector.broadcast %644 : f32 to vector<2x256xf32>
    %646 = arith.mulf %645, %643 : vector<2x256xf32>
    %647 = arith.addf %626, %646 : vector<2x256xf32>
    %c121 = arith.constant 121 : index
    %648 = memref.load %arg2[%c121] : memref<144xf32, #tpu.memory_space<smem>>
    %649 = vector.broadcast %648 : f32 to vector<2x256xf32>
    %650 = arith.mulf %649, %643 : vector<2x256xf32>
    %651 = arith.addf %630, %650 : vector<2x256xf32>
    %c122 = arith.constant 122 : index
    %652 = memref.load %arg2[%c122] : memref<144xf32, #tpu.memory_space<smem>>
    %653 = vector.broadcast %652 : f32 to vector<2x256xf32>
    %654 = arith.mulf %653, %643 : vector<2x256xf32>
    %655 = arith.addf %634, %654 : vector<2x256xf32>
    %c123 = arith.constant 123 : index
    %656 = memref.load %arg2[%c123] : memref<144xf32, #tpu.memory_space<smem>>
    %657 = vector.broadcast %656 : f32 to vector<2x256xf32>
    %658 = arith.mulf %657, %643 : vector<2x256xf32>
    %659 = arith.addf %638, %658 : vector<2x256xf32>
    %c240_i32_67 = arith.constant 240 : i32
    %660 = tpu.dynamic_rotate %24 by %c240_i32_67 dim 1 : vector<2x256xf32>, i32 -> vector<2x256xf32>
    %cst_68 = arith.constant 0.000000e+00 : f32
    %661 = vector.shape_cast %8 : vector<1x256xi1> to vector<1x256xi1>
    %662 = vector.broadcast %661 : vector<1x256xi1> to vector<2x256xi1>
    %663 = vector.broadcast %cst_68 : f32 to vector<2x256xf32>
    %664 = arith.select %662, %660, %663 : vector<2x256xi1>, vector<2x256xf32>
    %c124 = arith.constant 124 : index
    %665 = memref.load %arg2[%c124] : memref<144xf32, #tpu.memory_space<smem>>
    %666 = vector.broadcast %665 : f32 to vector<2x256xf32>
    %667 = arith.mulf %666, %664 : vector<2x256xf32>
    %668 = arith.addf %647, %667 : vector<2x256xf32>
    %c125 = arith.constant 125 : index
    %669 = memref.load %arg2[%c125] : memref<144xf32, #tpu.memory_space<smem>>
    %670 = vector.broadcast %669 : f32 to vector<2x256xf32>
    %671 = arith.mulf %670, %664 : vector<2x256xf32>
    %672 = arith.addf %651, %671 : vector<2x256xf32>
    %c126 = arith.constant 126 : index
    %673 = memref.load %arg2[%c126] : memref<144xf32, #tpu.memory_space<smem>>
    %674 = vector.broadcast %673 : f32 to vector<2x256xf32>
    %675 = arith.mulf %674, %664 : vector<2x256xf32>
    %676 = arith.addf %655, %675 : vector<2x256xf32>
    %c127 = arith.constant 127 : index
    %677 = memref.load %arg2[%c127] : memref<144xf32, #tpu.memory_space<smem>>
    %678 = vector.broadcast %677 : f32 to vector<2x256xf32>
    %679 = arith.mulf %678, %664 : vector<2x256xf32>
    %680 = arith.addf %659, %679 : vector<2x256xf32>
    %c239_i32 = arith.constant 239 : i32
    %681 = tpu.dynamic_rotate %18 by %c239_i32 dim 1 : vector<2x256xf32>, i32 -> vector<2x256xf32>
    %cst_69 = arith.constant 0.000000e+00 : f32
    %682 = vector.shape_cast %16 : vector<1x256xi1> to vector<1x256xi1>
    %683 = vector.broadcast %682 : vector<1x256xi1> to vector<2x256xi1>
    %684 = vector.broadcast %cst_69 : f32 to vector<2x256xf32>
    %685 = arith.select %683, %681, %684 : vector<2x256xi1>, vector<2x256xf32>
    %c128 = arith.constant 128 : index
    %686 = memref.load %arg2[%c128] : memref<144xf32, #tpu.memory_space<smem>>
    %687 = vector.broadcast %686 : f32 to vector<2x256xf32>
    %688 = arith.mulf %687, %685 : vector<2x256xf32>
    %689 = arith.addf %668, %688 : vector<2x256xf32>
    %c129 = arith.constant 129 : index
    %690 = memref.load %arg2[%c129] : memref<144xf32, #tpu.memory_space<smem>>
    %691 = vector.broadcast %690 : f32 to vector<2x256xf32>
    %692 = arith.mulf %691, %685 : vector<2x256xf32>
    %693 = arith.addf %672, %692 : vector<2x256xf32>
    %c130 = arith.constant 130 : index
    %694 = memref.load %arg2[%c130] : memref<144xf32, #tpu.memory_space<smem>>
    %695 = vector.broadcast %694 : f32 to vector<2x256xf32>
    %696 = arith.mulf %695, %685 : vector<2x256xf32>
    %697 = arith.addf %676, %696 : vector<2x256xf32>
    %c131 = arith.constant 131 : index
    %698 = memref.load %arg2[%c131] : memref<144xf32, #tpu.memory_space<smem>>
    %699 = vector.broadcast %698 : f32 to vector<2x256xf32>
    %700 = arith.mulf %699, %685 : vector<2x256xf32>
    %701 = arith.addf %680, %700 : vector<2x256xf32>
    %c239_i32_70 = arith.constant 239 : i32
    %702 = tpu.dynamic_rotate %20 by %c239_i32_70 dim 1 : vector<2x256xf32>, i32 -> vector<2x256xf32>
    %cst_71 = arith.constant 0.000000e+00 : f32
    %703 = vector.shape_cast %16 : vector<1x256xi1> to vector<1x256xi1>
    %704 = vector.broadcast %703 : vector<1x256xi1> to vector<2x256xi1>
    %705 = vector.broadcast %cst_71 : f32 to vector<2x256xf32>
    %706 = arith.select %704, %702, %705 : vector<2x256xi1>, vector<2x256xf32>
    %c132 = arith.constant 132 : index
    %707 = memref.load %arg2[%c132] : memref<144xf32, #tpu.memory_space<smem>>
    %708 = vector.broadcast %707 : f32 to vector<2x256xf32>
    %709 = arith.mulf %708, %706 : vector<2x256xf32>
    %710 = arith.addf %689, %709 : vector<2x256xf32>
    %c133 = arith.constant 133 : index
    %711 = memref.load %arg2[%c133] : memref<144xf32, #tpu.memory_space<smem>>
    %712 = vector.broadcast %711 : f32 to vector<2x256xf32>
    %713 = arith.mulf %712, %706 : vector<2x256xf32>
    %714 = arith.addf %693, %713 : vector<2x256xf32>
    %c134 = arith.constant 134 : index
    %715 = memref.load %arg2[%c134] : memref<144xf32, #tpu.memory_space<smem>>
    %716 = vector.broadcast %715 : f32 to vector<2x256xf32>
    %717 = arith.mulf %716, %706 : vector<2x256xf32>
    %718 = arith.addf %697, %717 : vector<2x256xf32>
    %c135 = arith.constant 135 : index
    %719 = memref.load %arg2[%c135] : memref<144xf32, #tpu.memory_space<smem>>
    %720 = vector.broadcast %719 : f32 to vector<2x256xf32>
    %721 = arith.mulf %720, %706 : vector<2x256xf32>
    %722 = arith.addf %701, %721 : vector<2x256xf32>
    %c239_i32_72 = arith.constant 239 : i32
    %723 = tpu.dynamic_rotate %22 by %c239_i32_72 dim 1 : vector<2x256xf32>, i32 -> vector<2x256xf32>
    %cst_73 = arith.constant 0.000000e+00 : f32
    %724 = vector.shape_cast %16 : vector<1x256xi1> to vector<1x256xi1>
    %725 = vector.broadcast %724 : vector<1x256xi1> to vector<2x256xi1>
    %726 = vector.broadcast %cst_73 : f32 to vector<2x256xf32>
    %727 = arith.select %725, %723, %726 : vector<2x256xi1>, vector<2x256xf32>
    %c136 = arith.constant 136 : index
    %728 = memref.load %arg2[%c136] : memref<144xf32, #tpu.memory_space<smem>>
    %729 = vector.broadcast %728 : f32 to vector<2x256xf32>
    %730 = arith.mulf %729, %727 : vector<2x256xf32>
    %731 = arith.addf %710, %730 : vector<2x256xf32>
    %c137 = arith.constant 137 : index
    %732 = memref.load %arg2[%c137] : memref<144xf32, #tpu.memory_space<smem>>
    %733 = vector.broadcast %732 : f32 to vector<2x256xf32>
    %734 = arith.mulf %733, %727 : vector<2x256xf32>
    %735 = arith.addf %714, %734 : vector<2x256xf32>
    %c138 = arith.constant 138 : index
    %736 = memref.load %arg2[%c138] : memref<144xf32, #tpu.memory_space<smem>>
    %737 = vector.broadcast %736 : f32 to vector<2x256xf32>
    %738 = arith.mulf %737, %727 : vector<2x256xf32>
    %739 = arith.addf %718, %738 : vector<2x256xf32>
    %c139 = arith.constant 139 : index
    %740 = memref.load %arg2[%c139] : memref<144xf32, #tpu.memory_space<smem>>
    %741 = vector.broadcast %740 : f32 to vector<2x256xf32>
    %742 = arith.mulf %741, %727 : vector<2x256xf32>
    %743 = arith.addf %722, %742 : vector<2x256xf32>
    %c239_i32_74 = arith.constant 239 : i32
    %744 = tpu.dynamic_rotate %24 by %c239_i32_74 dim 1 : vector<2x256xf32>, i32 -> vector<2x256xf32>
    %cst_75 = arith.constant 0.000000e+00 : f32
    %745 = vector.shape_cast %16 : vector<1x256xi1> to vector<1x256xi1>
    %746 = vector.broadcast %745 : vector<1x256xi1> to vector<2x256xi1>
    %747 = vector.broadcast %cst_75 : f32 to vector<2x256xf32>
    %748 = arith.select %746, %744, %747 : vector<2x256xi1>, vector<2x256xf32>
    %c140 = arith.constant 140 : index
    %749 = memref.load %arg2[%c140] : memref<144xf32, #tpu.memory_space<smem>>
    %750 = vector.broadcast %749 : f32 to vector<2x256xf32>
    %751 = arith.mulf %750, %748 : vector<2x256xf32>
    %752 = arith.addf %731, %751 : vector<2x256xf32>
    %c141 = arith.constant 141 : index
    %753 = memref.load %arg2[%c141] : memref<144xf32, #tpu.memory_space<smem>>
    %754 = vector.broadcast %753 : f32 to vector<2x256xf32>
    %755 = arith.mulf %754, %748 : vector<2x256xf32>
    %756 = arith.addf %735, %755 : vector<2x256xf32>
    %c142 = arith.constant 142 : index
    %757 = memref.load %arg2[%c142] : memref<144xf32, #tpu.memory_space<smem>>
    %758 = vector.broadcast %757 : f32 to vector<2x256xf32>
    %759 = arith.mulf %758, %748 : vector<2x256xf32>
    %760 = arith.addf %739, %759 : vector<2x256xf32>
    %c143 = arith.constant 143 : index
    %761 = memref.load %arg2[%c143] : memref<144xf32, #tpu.memory_space<smem>>
    %762 = vector.broadcast %761 : f32 to vector<2x256xf32>
    %763 = arith.mulf %762, %748 : vector<2x256xf32>
    %764 = arith.addf %743, %763 : vector<2x256xf32>
    %cst_76 = arith.constant 0.000000e+00 : f32
    %765 = vector.broadcast %cst_76 : f32 to vector<2x256xf32>
    %766 = arith.maximumf %752, %765 : vector<2x256xf32>
    %cst_77 = arith.constant 0.000000e+00 : f32
    %767 = vector.broadcast %cst_77 : f32 to vector<2x256xf32>
    %768 = arith.maximumf %756, %767 : vector<2x256xf32>
    %cst_78 = arith.constant 0.000000e+00 : f32
    %769 = vector.broadcast %cst_78 : f32 to vector<2x256xf32>
    %770 = arith.maximumf %760, %769 : vector<2x256xf32>
    %cst_79 = arith.constant 0.000000e+00 : f32
    %771 = vector.broadcast %cst_79 : f32 to vector<2x256xf32>
    %772 = arith.maximumf %764, %771 : vector<2x256xf32>
    %cst_80 = arith.constant 0.000000e+00 : f32
    %773 = vector.broadcast %cst_80 : f32 to vector<2x256xf32>
    %cst_81 = arith.constant 0.000000e+00 : f32
    %774 = vector.broadcast %cst_81 : f32 to vector<2x256xf32>
    %cst_82 = arith.constant 0.000000e+00 : f32
    %775 = vector.broadcast %cst_82 : f32 to vector<2x256xf32>
    %cst_83 = arith.constant 0.000000e+00 : f32
    %776 = vector.broadcast %cst_83 : f32 to vector<2x256xf32>
    %c17_i32_84 = arith.constant 17 : i32
    %777 = tpu.dynamic_rotate %766 by %c17_i32_84 dim 1 : vector<2x256xf32>, i32 -> vector<2x256xf32>
    %cst_85 = arith.constant 0.000000e+00 : f32
    %778 = vector.shape_cast %13 : vector<1x256xi1> to vector<1x256xi1>
    %779 = vector.broadcast %778 : vector<1x256xi1> to vector<2x256xi1>
    %780 = vector.broadcast %cst_85 : f32 to vector<2x256xf32>
    %781 = arith.select %779, %777, %780 : vector<2x256xi1>, vector<2x256xf32>
    %c0_86 = arith.constant 0 : index
    %782 = memref.load %arg3[%c0_86] : memref<144xf32, #tpu.memory_space<smem>>
    %783 = vector.broadcast %782 : f32 to vector<2x256xf32>
    %784 = arith.mulf %783, %781 : vector<2x256xf32>
    %785 = arith.addf %773, %784 : vector<2x256xf32>
    %c1_87 = arith.constant 1 : index
    %786 = memref.load %arg3[%c1_87] : memref<144xf32, #tpu.memory_space<smem>>
    %787 = vector.broadcast %786 : f32 to vector<2x256xf32>
    %788 = arith.mulf %787, %781 : vector<2x256xf32>
    %789 = arith.addf %774, %788 : vector<2x256xf32>
    %c2_88 = arith.constant 2 : index
    %790 = memref.load %arg3[%c2_88] : memref<144xf32, #tpu.memory_space<smem>>
    %791 = vector.broadcast %790 : f32 to vector<2x256xf32>
    %792 = arith.mulf %791, %781 : vector<2x256xf32>
    %793 = arith.addf %775, %792 : vector<2x256xf32>
    %c3_89 = arith.constant 3 : index
    %794 = memref.load %arg3[%c3_89] : memref<144xf32, #tpu.memory_space<smem>>
    %795 = vector.broadcast %794 : f32 to vector<2x256xf32>
    %796 = arith.mulf %795, %781 : vector<2x256xf32>
    %797 = arith.addf %776, %796 : vector<2x256xf32>
    %c17_i32_90 = arith.constant 17 : i32
    %798 = tpu.dynamic_rotate %768 by %c17_i32_90 dim 1 : vector<2x256xf32>, i32 -> vector<2x256xf32>
    %cst_91 = arith.constant 0.000000e+00 : f32
    %799 = vector.shape_cast %13 : vector<1x256xi1> to vector<1x256xi1>
    %800 = vector.broadcast %799 : vector<1x256xi1> to vector<2x256xi1>
    %801 = vector.broadcast %cst_91 : f32 to vector<2x256xf32>
    %802 = arith.select %800, %798, %801 : vector<2x256xi1>, vector<2x256xf32>
    %c4_92 = arith.constant 4 : index
    %803 = memref.load %arg3[%c4_92] : memref<144xf32, #tpu.memory_space<smem>>
    %804 = vector.broadcast %803 : f32 to vector<2x256xf32>
    %805 = arith.mulf %804, %802 : vector<2x256xf32>
    %806 = arith.addf %785, %805 : vector<2x256xf32>
    %c5_93 = arith.constant 5 : index
    %807 = memref.load %arg3[%c5_93] : memref<144xf32, #tpu.memory_space<smem>>
    %808 = vector.broadcast %807 : f32 to vector<2x256xf32>
    %809 = arith.mulf %808, %802 : vector<2x256xf32>
    %810 = arith.addf %789, %809 : vector<2x256xf32>
    %c6_94 = arith.constant 6 : index
    %811 = memref.load %arg3[%c6_94] : memref<144xf32, #tpu.memory_space<smem>>
    %812 = vector.broadcast %811 : f32 to vector<2x256xf32>
    %813 = arith.mulf %812, %802 : vector<2x256xf32>
    %814 = arith.addf %793, %813 : vector<2x256xf32>
    %c7_95 = arith.constant 7 : index
    %815 = memref.load %arg3[%c7_95] : memref<144xf32, #tpu.memory_space<smem>>
    %816 = vector.broadcast %815 : f32 to vector<2x256xf32>
    %817 = arith.mulf %816, %802 : vector<2x256xf32>
    %818 = arith.addf %797, %817 : vector<2x256xf32>
    %c17_i32_96 = arith.constant 17 : i32
    %819 = tpu.dynamic_rotate %770 by %c17_i32_96 dim 1 : vector<2x256xf32>, i32 -> vector<2x256xf32>
    %cst_97 = arith.constant 0.000000e+00 : f32
    %820 = vector.shape_cast %13 : vector<1x256xi1> to vector<1x256xi1>
    %821 = vector.broadcast %820 : vector<1x256xi1> to vector<2x256xi1>
    %822 = vector.broadcast %cst_97 : f32 to vector<2x256xf32>
    %823 = arith.select %821, %819, %822 : vector<2x256xi1>, vector<2x256xf32>
    %c8_98 = arith.constant 8 : index
    %824 = memref.load %arg3[%c8_98] : memref<144xf32, #tpu.memory_space<smem>>
    %825 = vector.broadcast %824 : f32 to vector<2x256xf32>
    %826 = arith.mulf %825, %823 : vector<2x256xf32>
    %827 = arith.addf %806, %826 : vector<2x256xf32>
    %c9_99 = arith.constant 9 : index
    %828 = memref.load %arg3[%c9_99] : memref<144xf32, #tpu.memory_space<smem>>
    %829 = vector.broadcast %828 : f32 to vector<2x256xf32>
    %830 = arith.mulf %829, %823 : vector<2x256xf32>
    %831 = arith.addf %810, %830 : vector<2x256xf32>
    %c10_100 = arith.constant 10 : index
    %832 = memref.load %arg3[%c10_100] : memref<144xf32, #tpu.memory_space<smem>>
    %833 = vector.broadcast %832 : f32 to vector<2x256xf32>
    %834 = arith.mulf %833, %823 : vector<2x256xf32>
    %835 = arith.addf %814, %834 : vector<2x256xf32>
    %c11_101 = arith.constant 11 : index
    %836 = memref.load %arg3[%c11_101] : memref<144xf32, #tpu.memory_space<smem>>
    %837 = vector.broadcast %836 : f32 to vector<2x256xf32>
    %838 = arith.mulf %837, %823 : vector<2x256xf32>
    %839 = arith.addf %818, %838 : vector<2x256xf32>
    %c17_i32_102 = arith.constant 17 : i32
    %840 = tpu.dynamic_rotate %772 by %c17_i32_102 dim 1 : vector<2x256xf32>, i32 -> vector<2x256xf32>
    %cst_103 = arith.constant 0.000000e+00 : f32
    %841 = vector.shape_cast %13 : vector<1x256xi1> to vector<1x256xi1>
    %842 = vector.broadcast %841 : vector<1x256xi1> to vector<2x256xi1>
    %843 = vector.broadcast %cst_103 : f32 to vector<2x256xf32>
    %844 = arith.select %842, %840, %843 : vector<2x256xi1>, vector<2x256xf32>
    %c12_104 = arith.constant 12 : index
    %845 = memref.load %arg3[%c12_104] : memref<144xf32, #tpu.memory_space<smem>>
    %846 = vector.broadcast %845 : f32 to vector<2x256xf32>
    %847 = arith.mulf %846, %844 : vector<2x256xf32>
    %848 = arith.addf %827, %847 : vector<2x256xf32>
    %c13_105 = arith.constant 13 : index
    %849 = memref.load %arg3[%c13_105] : memref<144xf32, #tpu.memory_space<smem>>
    %850 = vector.broadcast %849 : f32 to vector<2x256xf32>
    %851 = arith.mulf %850, %844 : vector<2x256xf32>
    %852 = arith.addf %831, %851 : vector<2x256xf32>
    %c14_106 = arith.constant 14 : index
    %853 = memref.load %arg3[%c14_106] : memref<144xf32, #tpu.memory_space<smem>>
    %854 = vector.broadcast %853 : f32 to vector<2x256xf32>
    %855 = arith.mulf %854, %844 : vector<2x256xf32>
    %856 = arith.addf %835, %855 : vector<2x256xf32>
    %c15_107 = arith.constant 15 : index
    %857 = memref.load %arg3[%c15_107] : memref<144xf32, #tpu.memory_space<smem>>
    %858 = vector.broadcast %857 : f32 to vector<2x256xf32>
    %859 = arith.mulf %858, %844 : vector<2x256xf32>
    %860 = arith.addf %839, %859 : vector<2x256xf32>
    %c16_i32_108 = arith.constant 16 : i32
    %861 = tpu.dynamic_rotate %766 by %c16_i32_108 dim 1 : vector<2x256xf32>, i32 -> vector<2x256xf32>
    %cst_109 = arith.constant 0.000000e+00 : f32
    %862 = vector.shape_cast %6 : vector<1x256xi1> to vector<1x256xi1>
    %863 = vector.broadcast %862 : vector<1x256xi1> to vector<2x256xi1>
    %864 = vector.broadcast %cst_109 : f32 to vector<2x256xf32>
    %865 = arith.select %863, %861, %864 : vector<2x256xi1>, vector<2x256xf32>
    %c16_110 = arith.constant 16 : index
    %866 = memref.load %arg3[%c16_110] : memref<144xf32, #tpu.memory_space<smem>>
    %867 = vector.broadcast %866 : f32 to vector<2x256xf32>
    %868 = arith.mulf %867, %865 : vector<2x256xf32>
    %869 = arith.addf %848, %868 : vector<2x256xf32>
    %c17_111 = arith.constant 17 : index
    %870 = memref.load %arg3[%c17_111] : memref<144xf32, #tpu.memory_space<smem>>
    %871 = vector.broadcast %870 : f32 to vector<2x256xf32>
    %872 = arith.mulf %871, %865 : vector<2x256xf32>
    %873 = arith.addf %852, %872 : vector<2x256xf32>
    %c18_112 = arith.constant 18 : index
    %874 = memref.load %arg3[%c18_112] : memref<144xf32, #tpu.memory_space<smem>>
    %875 = vector.broadcast %874 : f32 to vector<2x256xf32>
    %876 = arith.mulf %875, %865 : vector<2x256xf32>
    %877 = arith.addf %856, %876 : vector<2x256xf32>
    %c19_113 = arith.constant 19 : index
    %878 = memref.load %arg3[%c19_113] : memref<144xf32, #tpu.memory_space<smem>>
    %879 = vector.broadcast %878 : f32 to vector<2x256xf32>
    %880 = arith.mulf %879, %865 : vector<2x256xf32>
    %881 = arith.addf %860, %880 : vector<2x256xf32>
    %c16_i32_114 = arith.constant 16 : i32
    %882 = tpu.dynamic_rotate %768 by %c16_i32_114 dim 1 : vector<2x256xf32>, i32 -> vector<2x256xf32>
    %cst_115 = arith.constant 0.000000e+00 : f32
    %883 = vector.shape_cast %6 : vector<1x256xi1> to vector<1x256xi1>
    %884 = vector.broadcast %883 : vector<1x256xi1> to vector<2x256xi1>
    %885 = vector.broadcast %cst_115 : f32 to vector<2x256xf32>
    %886 = arith.select %884, %882, %885 : vector<2x256xi1>, vector<2x256xf32>
    %c20_116 = arith.constant 20 : index
    %887 = memref.load %arg3[%c20_116] : memref<144xf32, #tpu.memory_space<smem>>
    %888 = vector.broadcast %887 : f32 to vector<2x256xf32>
    %889 = arith.mulf %888, %886 : vector<2x256xf32>
    %890 = arith.addf %869, %889 : vector<2x256xf32>
    %c21_117 = arith.constant 21 : index
    %891 = memref.load %arg3[%c21_117] : memref<144xf32, #tpu.memory_space<smem>>
    %892 = vector.broadcast %891 : f32 to vector<2x256xf32>
    %893 = arith.mulf %892, %886 : vector<2x256xf32>
    %894 = arith.addf %873, %893 : vector<2x256xf32>
    %c22_118 = arith.constant 22 : index
    %895 = memref.load %arg3[%c22_118] : memref<144xf32, #tpu.memory_space<smem>>
    %896 = vector.broadcast %895 : f32 to vector<2x256xf32>
    %897 = arith.mulf %896, %886 : vector<2x256xf32>
    %898 = arith.addf %877, %897 : vector<2x256xf32>
    %c23_119 = arith.constant 23 : index
    %899 = memref.load %arg3[%c23_119] : memref<144xf32, #tpu.memory_space<smem>>
    %900 = vector.broadcast %899 : f32 to vector<2x256xf32>
    %901 = arith.mulf %900, %886 : vector<2x256xf32>
    %902 = arith.addf %881, %901 : vector<2x256xf32>
    %c16_i32_120 = arith.constant 16 : i32
    %903 = tpu.dynamic_rotate %770 by %c16_i32_120 dim 1 : vector<2x256xf32>, i32 -> vector<2x256xf32>
    %cst_121 = arith.constant 0.000000e+00 : f32
    %904 = vector.shape_cast %6 : vector<1x256xi1> to vector<1x256xi1>
    %905 = vector.broadcast %904 : vector<1x256xi1> to vector<2x256xi1>
    %906 = vector.broadcast %cst_121 : f32 to vector<2x256xf32>
    %907 = arith.select %905, %903, %906 : vector<2x256xi1>, vector<2x256xf32>
    %c24_122 = arith.constant 24 : index
    %908 = memref.load %arg3[%c24_122] : memref<144xf32, #tpu.memory_space<smem>>
    %909 = vector.broadcast %908 : f32 to vector<2x256xf32>
    %910 = arith.mulf %909, %907 : vector<2x256xf32>
    %911 = arith.addf %890, %910 : vector<2x256xf32>
    %c25_123 = arith.constant 25 : index
    %912 = memref.load %arg3[%c25_123] : memref<144xf32, #tpu.memory_space<smem>>
    %913 = vector.broadcast %912 : f32 to vector<2x256xf32>
    %914 = arith.mulf %913, %907 : vector<2x256xf32>
    %915 = arith.addf %894, %914 : vector<2x256xf32>
    %c26_124 = arith.constant 26 : index
    %916 = memref.load %arg3[%c26_124] : memref<144xf32, #tpu.memory_space<smem>>
    %917 = vector.broadcast %916 : f32 to vector<2x256xf32>
    %918 = arith.mulf %917, %907 : vector<2x256xf32>
    %919 = arith.addf %898, %918 : vector<2x256xf32>
    %c27_125 = arith.constant 27 : index
    %920 = memref.load %arg3[%c27_125] : memref<144xf32, #tpu.memory_space<smem>>
    %921 = vector.broadcast %920 : f32 to vector<2x256xf32>
    %922 = arith.mulf %921, %907 : vector<2x256xf32>
    %923 = arith.addf %902, %922 : vector<2x256xf32>
    %c16_i32_126 = arith.constant 16 : i32
    %924 = tpu.dynamic_rotate %772 by %c16_i32_126 dim 1 : vector<2x256xf32>, i32 -> vector<2x256xf32>
    %cst_127 = arith.constant 0.000000e+00 : f32
    %925 = vector.shape_cast %6 : vector<1x256xi1> to vector<1x256xi1>
    %926 = vector.broadcast %925 : vector<1x256xi1> to vector<2x256xi1>
    %927 = vector.broadcast %cst_127 : f32 to vector<2x256xf32>
    %928 = arith.select %926, %924, %927 : vector<2x256xi1>, vector<2x256xf32>
    %c28_128 = arith.constant 28 : index
    %929 = memref.load %arg3[%c28_128] : memref<144xf32, #tpu.memory_space<smem>>
    %930 = vector.broadcast %929 : f32 to vector<2x256xf32>
    %931 = arith.mulf %930, %928 : vector<2x256xf32>
    %932 = arith.addf %911, %931 : vector<2x256xf32>
    %c29_129 = arith.constant 29 : index
    %933 = memref.load %arg3[%c29_129] : memref<144xf32, #tpu.memory_space<smem>>
    %934 = vector.broadcast %933 : f32 to vector<2x256xf32>
    %935 = arith.mulf %934, %928 : vector<2x256xf32>
    %936 = arith.addf %915, %935 : vector<2x256xf32>
    %c30_130 = arith.constant 30 : index
    %937 = memref.load %arg3[%c30_130] : memref<144xf32, #tpu.memory_space<smem>>
    %938 = vector.broadcast %937 : f32 to vector<2x256xf32>
    %939 = arith.mulf %938, %928 : vector<2x256xf32>
    %940 = arith.addf %919, %939 : vector<2x256xf32>
    %c31_131 = arith.constant 31 : index
    %941 = memref.load %arg3[%c31_131] : memref<144xf32, #tpu.memory_space<smem>>
    %942 = vector.broadcast %941 : f32 to vector<2x256xf32>
    %943 = arith.mulf %942, %928 : vector<2x256xf32>
    %944 = arith.addf %923, %943 : vector<2x256xf32>
    %c15_i32_132 = arith.constant 15 : i32
    %945 = tpu.dynamic_rotate %766 by %c15_i32_132 dim 1 : vector<2x256xf32>, i32 -> vector<2x256xf32>
    %cst_133 = arith.constant 0.000000e+00 : f32
    %946 = vector.shape_cast %14 : vector<1x256xi1> to vector<1x256xi1>
    %947 = vector.broadcast %946 : vector<1x256xi1> to vector<2x256xi1>
    %948 = vector.broadcast %cst_133 : f32 to vector<2x256xf32>
    %949 = arith.select %947, %945, %948 : vector<2x256xi1>, vector<2x256xf32>
    %c32_134 = arith.constant 32 : index
    %950 = memref.load %arg3[%c32_134] : memref<144xf32, #tpu.memory_space<smem>>
    %951 = vector.broadcast %950 : f32 to vector<2x256xf32>
    %952 = arith.mulf %951, %949 : vector<2x256xf32>
    %953 = arith.addf %932, %952 : vector<2x256xf32>
    %c33_135 = arith.constant 33 : index
    %954 = memref.load %arg3[%c33_135] : memref<144xf32, #tpu.memory_space<smem>>
    %955 = vector.broadcast %954 : f32 to vector<2x256xf32>
    %956 = arith.mulf %955, %949 : vector<2x256xf32>
    %957 = arith.addf %936, %956 : vector<2x256xf32>
    %c34_136 = arith.constant 34 : index
    %958 = memref.load %arg3[%c34_136] : memref<144xf32, #tpu.memory_space<smem>>
    %959 = vector.broadcast %958 : f32 to vector<2x256xf32>
    %960 = arith.mulf %959, %949 : vector<2x256xf32>
    %961 = arith.addf %940, %960 : vector<2x256xf32>
    %c35_137 = arith.constant 35 : index
    %962 = memref.load %arg3[%c35_137] : memref<144xf32, #tpu.memory_space<smem>>
    %963 = vector.broadcast %962 : f32 to vector<2x256xf32>
    %964 = arith.mulf %963, %949 : vector<2x256xf32>
    %965 = arith.addf %944, %964 : vector<2x256xf32>
    %c15_i32_138 = arith.constant 15 : i32
    %966 = tpu.dynamic_rotate %768 by %c15_i32_138 dim 1 : vector<2x256xf32>, i32 -> vector<2x256xf32>
    %cst_139 = arith.constant 0.000000e+00 : f32
    %967 = vector.shape_cast %14 : vector<1x256xi1> to vector<1x256xi1>
    %968 = vector.broadcast %967 : vector<1x256xi1> to vector<2x256xi1>
    %969 = vector.broadcast %cst_139 : f32 to vector<2x256xf32>
    %970 = arith.select %968, %966, %969 : vector<2x256xi1>, vector<2x256xf32>
    %c36_140 = arith.constant 36 : index
    %971 = memref.load %arg3[%c36_140] : memref<144xf32, #tpu.memory_space<smem>>
    %972 = vector.broadcast %971 : f32 to vector<2x256xf32>
    %973 = arith.mulf %972, %970 : vector<2x256xf32>
    %974 = arith.addf %953, %973 : vector<2x256xf32>
    %c37_141 = arith.constant 37 : index
    %975 = memref.load %arg3[%c37_141] : memref<144xf32, #tpu.memory_space<smem>>
    %976 = vector.broadcast %975 : f32 to vector<2x256xf32>
    %977 = arith.mulf %976, %970 : vector<2x256xf32>
    %978 = arith.addf %957, %977 : vector<2x256xf32>
    %c38_142 = arith.constant 38 : index
    %979 = memref.load %arg3[%c38_142] : memref<144xf32, #tpu.memory_space<smem>>
    %980 = vector.broadcast %979 : f32 to vector<2x256xf32>
    %981 = arith.mulf %980, %970 : vector<2x256xf32>
    %982 = arith.addf %961, %981 : vector<2x256xf32>
    %c39_143 = arith.constant 39 : index
    %983 = memref.load %arg3[%c39_143] : memref<144xf32, #tpu.memory_space<smem>>
    %984 = vector.broadcast %983 : f32 to vector<2x256xf32>
    %985 = arith.mulf %984, %970 : vector<2x256xf32>
    %986 = arith.addf %965, %985 : vector<2x256xf32>
    %c15_i32_144 = arith.constant 15 : i32
    %987 = tpu.dynamic_rotate %770 by %c15_i32_144 dim 1 : vector<2x256xf32>, i32 -> vector<2x256xf32>
    %cst_145 = arith.constant 0.000000e+00 : f32
    %988 = vector.shape_cast %14 : vector<1x256xi1> to vector<1x256xi1>
    %989 = vector.broadcast %988 : vector<1x256xi1> to vector<2x256xi1>
    %990 = vector.broadcast %cst_145 : f32 to vector<2x256xf32>
    %991 = arith.select %989, %987, %990 : vector<2x256xi1>, vector<2x256xf32>
    %c40_146 = arith.constant 40 : index
    %992 = memref.load %arg3[%c40_146] : memref<144xf32, #tpu.memory_space<smem>>
    %993 = vector.broadcast %992 : f32 to vector<2x256xf32>
    %994 = arith.mulf %993, %991 : vector<2x256xf32>
    %995 = arith.addf %974, %994 : vector<2x256xf32>
    %c41_147 = arith.constant 41 : index
    %996 = memref.load %arg3[%c41_147] : memref<144xf32, #tpu.memory_space<smem>>
    %997 = vector.broadcast %996 : f32 to vector<2x256xf32>
    %998 = arith.mulf %997, %991 : vector<2x256xf32>
    %999 = arith.addf %978, %998 : vector<2x256xf32>
    %c42_148 = arith.constant 42 : index
    %1000 = memref.load %arg3[%c42_148] : memref<144xf32, #tpu.memory_space<smem>>
    %1001 = vector.broadcast %1000 : f32 to vector<2x256xf32>
    %1002 = arith.mulf %1001, %991 : vector<2x256xf32>
    %1003 = arith.addf %982, %1002 : vector<2x256xf32>
    %c43_149 = arith.constant 43 : index
    %1004 = memref.load %arg3[%c43_149] : memref<144xf32, #tpu.memory_space<smem>>
    %1005 = vector.broadcast %1004 : f32 to vector<2x256xf32>
    %1006 = arith.mulf %1005, %991 : vector<2x256xf32>
    %1007 = arith.addf %986, %1006 : vector<2x256xf32>
    %c15_i32_150 = arith.constant 15 : i32
    %1008 = tpu.dynamic_rotate %772 by %c15_i32_150 dim 1 : vector<2x256xf32>, i32 -> vector<2x256xf32>
    %cst_151 = arith.constant 0.000000e+00 : f32
    %1009 = vector.shape_cast %14 : vector<1x256xi1> to vector<1x256xi1>
    %1010 = vector.broadcast %1009 : vector<1x256xi1> to vector<2x256xi1>
    %1011 = vector.broadcast %cst_151 : f32 to vector<2x256xf32>
    %1012 = arith.select %1010, %1008, %1011 : vector<2x256xi1>, vector<2x256xf32>
    %c44_152 = arith.constant 44 : index
    %1013 = memref.load %arg3[%c44_152] : memref<144xf32, #tpu.memory_space<smem>>
    %1014 = vector.broadcast %1013 : f32 to vector<2x256xf32>
    %1015 = arith.mulf %1014, %1012 : vector<2x256xf32>
    %1016 = arith.addf %995, %1015 : vector<2x256xf32>
    %c45_153 = arith.constant 45 : index
    %1017 = memref.load %arg3[%c45_153] : memref<144xf32, #tpu.memory_space<smem>>
    %1018 = vector.broadcast %1017 : f32 to vector<2x256xf32>
    %1019 = arith.mulf %1018, %1012 : vector<2x256xf32>
    %1020 = arith.addf %999, %1019 : vector<2x256xf32>
    %c46_154 = arith.constant 46 : index
    %1021 = memref.load %arg3[%c46_154] : memref<144xf32, #tpu.memory_space<smem>>
    %1022 = vector.broadcast %1021 : f32 to vector<2x256xf32>
    %1023 = arith.mulf %1022, %1012 : vector<2x256xf32>
    %1024 = arith.addf %1003, %1023 : vector<2x256xf32>
    %c47_155 = arith.constant 47 : index
    %1025 = memref.load %arg3[%c47_155] : memref<144xf32, #tpu.memory_space<smem>>
    %1026 = vector.broadcast %1025 : f32 to vector<2x256xf32>
    %1027 = arith.mulf %1026, %1012 : vector<2x256xf32>
    %1028 = arith.addf %1007, %1027 : vector<2x256xf32>
    %c1_i32_156 = arith.constant 1 : i32
    %1029 = tpu.dynamic_rotate %766 by %c1_i32_156 dim 1 : vector<2x256xf32>, i32 -> vector<2x256xf32>
    %cst_157 = arith.constant 0.000000e+00 : f32
    %1030 = vector.shape_cast %10 : vector<1x256xi1> to vector<1x256xi1>
    %1031 = vector.broadcast %1030 : vector<1x256xi1> to vector<2x256xi1>
    %1032 = vector.broadcast %cst_157 : f32 to vector<2x256xf32>
    %1033 = arith.select %1031, %1029, %1032 : vector<2x256xi1>, vector<2x256xf32>
    %c48_158 = arith.constant 48 : index
    %1034 = memref.load %arg3[%c48_158] : memref<144xf32, #tpu.memory_space<smem>>
    %1035 = vector.broadcast %1034 : f32 to vector<2x256xf32>
    %1036 = arith.mulf %1035, %1033 : vector<2x256xf32>
    %1037 = arith.addf %1016, %1036 : vector<2x256xf32>
    %c49_159 = arith.constant 49 : index
    %1038 = memref.load %arg3[%c49_159] : memref<144xf32, #tpu.memory_space<smem>>
    %1039 = vector.broadcast %1038 : f32 to vector<2x256xf32>
    %1040 = arith.mulf %1039, %1033 : vector<2x256xf32>
    %1041 = arith.addf %1020, %1040 : vector<2x256xf32>
    %c50_160 = arith.constant 50 : index
    %1042 = memref.load %arg3[%c50_160] : memref<144xf32, #tpu.memory_space<smem>>
    %1043 = vector.broadcast %1042 : f32 to vector<2x256xf32>
    %1044 = arith.mulf %1043, %1033 : vector<2x256xf32>
    %1045 = arith.addf %1024, %1044 : vector<2x256xf32>
    %c51_161 = arith.constant 51 : index
    %1046 = memref.load %arg3[%c51_161] : memref<144xf32, #tpu.memory_space<smem>>
    %1047 = vector.broadcast %1046 : f32 to vector<2x256xf32>
    %1048 = arith.mulf %1047, %1033 : vector<2x256xf32>
    %1049 = arith.addf %1028, %1048 : vector<2x256xf32>
    %c1_i32_162 = arith.constant 1 : i32
    %1050 = tpu.dynamic_rotate %768 by %c1_i32_162 dim 1 : vector<2x256xf32>, i32 -> vector<2x256xf32>
    %cst_163 = arith.constant 0.000000e+00 : f32
    %1051 = vector.shape_cast %10 : vector<1x256xi1> to vector<1x256xi1>
    %1052 = vector.broadcast %1051 : vector<1x256xi1> to vector<2x256xi1>
    %1053 = vector.broadcast %cst_163 : f32 to vector<2x256xf32>
    %1054 = arith.select %1052, %1050, %1053 : vector<2x256xi1>, vector<2x256xf32>
    %c52_164 = arith.constant 52 : index
    %1055 = memref.load %arg3[%c52_164] : memref<144xf32, #tpu.memory_space<smem>>
    %1056 = vector.broadcast %1055 : f32 to vector<2x256xf32>
    %1057 = arith.mulf %1056, %1054 : vector<2x256xf32>
    %1058 = arith.addf %1037, %1057 : vector<2x256xf32>
    %c53_165 = arith.constant 53 : index
    %1059 = memref.load %arg3[%c53_165] : memref<144xf32, #tpu.memory_space<smem>>
    %1060 = vector.broadcast %1059 : f32 to vector<2x256xf32>
    %1061 = arith.mulf %1060, %1054 : vector<2x256xf32>
    %1062 = arith.addf %1041, %1061 : vector<2x256xf32>
    %c54_166 = arith.constant 54 : index
    %1063 = memref.load %arg3[%c54_166] : memref<144xf32, #tpu.memory_space<smem>>
    %1064 = vector.broadcast %1063 : f32 to vector<2x256xf32>
    %1065 = arith.mulf %1064, %1054 : vector<2x256xf32>
    %1066 = arith.addf %1045, %1065 : vector<2x256xf32>
    %c55_167 = arith.constant 55 : index
    %1067 = memref.load %arg3[%c55_167] : memref<144xf32, #tpu.memory_space<smem>>
    %1068 = vector.broadcast %1067 : f32 to vector<2x256xf32>
    %1069 = arith.mulf %1068, %1054 : vector<2x256xf32>
    %1070 = arith.addf %1049, %1069 : vector<2x256xf32>
    %c1_i32_168 = arith.constant 1 : i32
    %1071 = tpu.dynamic_rotate %770 by %c1_i32_168 dim 1 : vector<2x256xf32>, i32 -> vector<2x256xf32>
    %cst_169 = arith.constant 0.000000e+00 : f32
    %1072 = vector.shape_cast %10 : vector<1x256xi1> to vector<1x256xi1>
    %1073 = vector.broadcast %1072 : vector<1x256xi1> to vector<2x256xi1>
    %1074 = vector.broadcast %cst_169 : f32 to vector<2x256xf32>
    %1075 = arith.select %1073, %1071, %1074 : vector<2x256xi1>, vector<2x256xf32>
    %c56_170 = arith.constant 56 : index
    %1076 = memref.load %arg3[%c56_170] : memref<144xf32, #tpu.memory_space<smem>>
    %1077 = vector.broadcast %1076 : f32 to vector<2x256xf32>
    %1078 = arith.mulf %1077, %1075 : vector<2x256xf32>
    %1079 = arith.addf %1058, %1078 : vector<2x256xf32>
    %c57_171 = arith.constant 57 : index
    %1080 = memref.load %arg3[%c57_171] : memref<144xf32, #tpu.memory_space<smem>>
    %1081 = vector.broadcast %1080 : f32 to vector<2x256xf32>
    %1082 = arith.mulf %1081, %1075 : vector<2x256xf32>
    %1083 = arith.addf %1062, %1082 : vector<2x256xf32>
    %c58_172 = arith.constant 58 : index
    %1084 = memref.load %arg3[%c58_172] : memref<144xf32, #tpu.memory_space<smem>>
    %1085 = vector.broadcast %1084 : f32 to vector<2x256xf32>
    %1086 = arith.mulf %1085, %1075 : vector<2x256xf32>
    %1087 = arith.addf %1066, %1086 : vector<2x256xf32>
    %c59_173 = arith.constant 59 : index
    %1088 = memref.load %arg3[%c59_173] : memref<144xf32, #tpu.memory_space<smem>>
    %1089 = vector.broadcast %1088 : f32 to vector<2x256xf32>
    %1090 = arith.mulf %1089, %1075 : vector<2x256xf32>
    %1091 = arith.addf %1070, %1090 : vector<2x256xf32>
    %c1_i32_174 = arith.constant 1 : i32
    %1092 = tpu.dynamic_rotate %772 by %c1_i32_174 dim 1 : vector<2x256xf32>, i32 -> vector<2x256xf32>
    %cst_175 = arith.constant 0.000000e+00 : f32
    %1093 = vector.shape_cast %10 : vector<1x256xi1> to vector<1x256xi1>
    %1094 = vector.broadcast %1093 : vector<1x256xi1> to vector<2x256xi1>
    %1095 = vector.broadcast %cst_175 : f32 to vector<2x256xf32>
    %1096 = arith.select %1094, %1092, %1095 : vector<2x256xi1>, vector<2x256xf32>
    %c60_176 = arith.constant 60 : index
    %1097 = memref.load %arg3[%c60_176] : memref<144xf32, #tpu.memory_space<smem>>
    %1098 = vector.broadcast %1097 : f32 to vector<2x256xf32>
    %1099 = arith.mulf %1098, %1096 : vector<2x256xf32>
    %1100 = arith.addf %1079, %1099 : vector<2x256xf32>
    %c61_177 = arith.constant 61 : index
    %1101 = memref.load %arg3[%c61_177] : memref<144xf32, #tpu.memory_space<smem>>
    %1102 = vector.broadcast %1101 : f32 to vector<2x256xf32>
    %1103 = arith.mulf %1102, %1096 : vector<2x256xf32>
    %1104 = arith.addf %1083, %1103 : vector<2x256xf32>
    %c62_178 = arith.constant 62 : index
    %1105 = memref.load %arg3[%c62_178] : memref<144xf32, #tpu.memory_space<smem>>
    %1106 = vector.broadcast %1105 : f32 to vector<2x256xf32>
    %1107 = arith.mulf %1106, %1096 : vector<2x256xf32>
    %1108 = arith.addf %1087, %1107 : vector<2x256xf32>
    %c63_179 = arith.constant 63 : index
    %1109 = memref.load %arg3[%c63_179] : memref<144xf32, #tpu.memory_space<smem>>
    %1110 = vector.broadcast %1109 : f32 to vector<2x256xf32>
    %1111 = arith.mulf %1110, %1096 : vector<2x256xf32>
    %1112 = arith.addf %1091, %1111 : vector<2x256xf32>
    %c64_180 = arith.constant 64 : index
    %1113 = memref.load %arg3[%c64_180] : memref<144xf32, #tpu.memory_space<smem>>
    %1114 = vector.broadcast %1113 : f32 to vector<2x256xf32>
    %1115 = arith.mulf %1114, %766 : vector<2x256xf32>
    %1116 = arith.addf %1100, %1115 : vector<2x256xf32>
    %c65_181 = arith.constant 65 : index
    %1117 = memref.load %arg3[%c65_181] : memref<144xf32, #tpu.memory_space<smem>>
    %1118 = vector.broadcast %1117 : f32 to vector<2x256xf32>
    %1119 = arith.mulf %1118, %766 : vector<2x256xf32>
    %1120 = arith.addf %1104, %1119 : vector<2x256xf32>
    %c66_182 = arith.constant 66 : index
    %1121 = memref.load %arg3[%c66_182] : memref<144xf32, #tpu.memory_space<smem>>
    %1122 = vector.broadcast %1121 : f32 to vector<2x256xf32>
    %1123 = arith.mulf %1122, %766 : vector<2x256xf32>
    %1124 = arith.addf %1108, %1123 : vector<2x256xf32>
    %c67_183 = arith.constant 67 : index
    %1125 = memref.load %arg3[%c67_183] : memref<144xf32, #tpu.memory_space<smem>>
    %1126 = vector.broadcast %1125 : f32 to vector<2x256xf32>
    %1127 = arith.mulf %1126, %766 : vector<2x256xf32>
    %1128 = arith.addf %1112, %1127 : vector<2x256xf32>
    %c68_184 = arith.constant 68 : index
    %1129 = memref.load %arg3[%c68_184] : memref<144xf32, #tpu.memory_space<smem>>
    %1130 = vector.broadcast %1129 : f32 to vector<2x256xf32>
    %1131 = arith.mulf %1130, %768 : vector<2x256xf32>
    %1132 = arith.addf %1116, %1131 : vector<2x256xf32>
    %c69_185 = arith.constant 69 : index
    %1133 = memref.load %arg3[%c69_185] : memref<144xf32, #tpu.memory_space<smem>>
    %1134 = vector.broadcast %1133 : f32 to vector<2x256xf32>
    %1135 = arith.mulf %1134, %768 : vector<2x256xf32>
    %1136 = arith.addf %1120, %1135 : vector<2x256xf32>
    %c70_186 = arith.constant 70 : index
    %1137 = memref.load %arg3[%c70_186] : memref<144xf32, #tpu.memory_space<smem>>
    %1138 = vector.broadcast %1137 : f32 to vector<2x256xf32>
    %1139 = arith.mulf %1138, %768 : vector<2x256xf32>
    %1140 = arith.addf %1124, %1139 : vector<2x256xf32>
    %c71_187 = arith.constant 71 : index
    %1141 = memref.load %arg3[%c71_187] : memref<144xf32, #tpu.memory_space<smem>>
    %1142 = vector.broadcast %1141 : f32 to vector<2x256xf32>
    %1143 = arith.mulf %1142, %768 : vector<2x256xf32>
    %1144 = arith.addf %1128, %1143 : vector<2x256xf32>
    %c72_188 = arith.constant 72 : index
    %1145 = memref.load %arg3[%c72_188] : memref<144xf32, #tpu.memory_space<smem>>
    %1146 = vector.broadcast %1145 : f32 to vector<2x256xf32>
    %1147 = arith.mulf %1146, %770 : vector<2x256xf32>
    %1148 = arith.addf %1132, %1147 : vector<2x256xf32>
    %c73_189 = arith.constant 73 : index
    %1149 = memref.load %arg3[%c73_189] : memref<144xf32, #tpu.memory_space<smem>>
    %1150 = vector.broadcast %1149 : f32 to vector<2x256xf32>
    %1151 = arith.mulf %1150, %770 : vector<2x256xf32>
    %1152 = arith.addf %1136, %1151 : vector<2x256xf32>
    %c74_190 = arith.constant 74 : index
    %1153 = memref.load %arg3[%c74_190] : memref<144xf32, #tpu.memory_space<smem>>
    %1154 = vector.broadcast %1153 : f32 to vector<2x256xf32>
    %1155 = arith.mulf %1154, %770 : vector<2x256xf32>
    %1156 = arith.addf %1140, %1155 : vector<2x256xf32>
    %c75_191 = arith.constant 75 : index
    %1157 = memref.load %arg3[%c75_191] : memref<144xf32, #tpu.memory_space<smem>>
    %1158 = vector.broadcast %1157 : f32 to vector<2x256xf32>
    %1159 = arith.mulf %1158, %770 : vector<2x256xf32>
    %1160 = arith.addf %1144, %1159 : vector<2x256xf32>
    %c76_192 = arith.constant 76 : index
    %1161 = memref.load %arg3[%c76_192] : memref<144xf32, #tpu.memory_space<smem>>
    %1162 = vector.broadcast %1161 : f32 to vector<2x256xf32>
    %1163 = arith.mulf %1162, %772 : vector<2x256xf32>
    %1164 = arith.addf %1148, %1163 : vector<2x256xf32>
    %c77_193 = arith.constant 77 : index
    %1165 = memref.load %arg3[%c77_193] : memref<144xf32, #tpu.memory_space<smem>>
    %1166 = vector.broadcast %1165 : f32 to vector<2x256xf32>
    %1167 = arith.mulf %1166, %772 : vector<2x256xf32>
    %1168 = arith.addf %1152, %1167 : vector<2x256xf32>
    %c78_194 = arith.constant 78 : index
    %1169 = memref.load %arg3[%c78_194] : memref<144xf32, #tpu.memory_space<smem>>
    %1170 = vector.broadcast %1169 : f32 to vector<2x256xf32>
    %1171 = arith.mulf %1170, %772 : vector<2x256xf32>
    %1172 = arith.addf %1156, %1171 : vector<2x256xf32>
    %c79_195 = arith.constant 79 : index
    %1173 = memref.load %arg3[%c79_195] : memref<144xf32, #tpu.memory_space<smem>>
    %1174 = vector.broadcast %1173 : f32 to vector<2x256xf32>
    %1175 = arith.mulf %1174, %772 : vector<2x256xf32>
    %1176 = arith.addf %1160, %1175 : vector<2x256xf32>
    %c255_i32_196 = arith.constant 255 : i32
    %1177 = tpu.dynamic_rotate %766 by %c255_i32_196 dim 1 : vector<2x256xf32>, i32 -> vector<2x256xf32>
    %cst_197 = arith.constant 0.000000e+00 : f32
    %1178 = vector.shape_cast %12 : vector<1x256xi1> to vector<1x256xi1>
    %1179 = vector.broadcast %1178 : vector<1x256xi1> to vector<2x256xi1>
    %1180 = vector.broadcast %cst_197 : f32 to vector<2x256xf32>
    %1181 = arith.select %1179, %1177, %1180 : vector<2x256xi1>, vector<2x256xf32>
    %c80_198 = arith.constant 80 : index
    %1182 = memref.load %arg3[%c80_198] : memref<144xf32, #tpu.memory_space<smem>>
    %1183 = vector.broadcast %1182 : f32 to vector<2x256xf32>
    %1184 = arith.mulf %1183, %1181 : vector<2x256xf32>
    %1185 = arith.addf %1164, %1184 : vector<2x256xf32>
    %c81_199 = arith.constant 81 : index
    %1186 = memref.load %arg3[%c81_199] : memref<144xf32, #tpu.memory_space<smem>>
    %1187 = vector.broadcast %1186 : f32 to vector<2x256xf32>
    %1188 = arith.mulf %1187, %1181 : vector<2x256xf32>
    %1189 = arith.addf %1168, %1188 : vector<2x256xf32>
    %c82_200 = arith.constant 82 : index
    %1190 = memref.load %arg3[%c82_200] : memref<144xf32, #tpu.memory_space<smem>>
    %1191 = vector.broadcast %1190 : f32 to vector<2x256xf32>
    %1192 = arith.mulf %1191, %1181 : vector<2x256xf32>
    %1193 = arith.addf %1172, %1192 : vector<2x256xf32>
    %c83_201 = arith.constant 83 : index
    %1194 = memref.load %arg3[%c83_201] : memref<144xf32, #tpu.memory_space<smem>>
    %1195 = vector.broadcast %1194 : f32 to vector<2x256xf32>
    %1196 = arith.mulf %1195, %1181 : vector<2x256xf32>
    %1197 = arith.addf %1176, %1196 : vector<2x256xf32>
    %c255_i32_202 = arith.constant 255 : i32
    %1198 = tpu.dynamic_rotate %768 by %c255_i32_202 dim 1 : vector<2x256xf32>, i32 -> vector<2x256xf32>
    %cst_203 = arith.constant 0.000000e+00 : f32
    %1199 = vector.shape_cast %12 : vector<1x256xi1> to vector<1x256xi1>
    %1200 = vector.broadcast %1199 : vector<1x256xi1> to vector<2x256xi1>
    %1201 = vector.broadcast %cst_203 : f32 to vector<2x256xf32>
    %1202 = arith.select %1200, %1198, %1201 : vector<2x256xi1>, vector<2x256xf32>
    %c84_204 = arith.constant 84 : index
    %1203 = memref.load %arg3[%c84_204] : memref<144xf32, #tpu.memory_space<smem>>
    %1204 = vector.broadcast %1203 : f32 to vector<2x256xf32>
    %1205 = arith.mulf %1204, %1202 : vector<2x256xf32>
    %1206 = arith.addf %1185, %1205 : vector<2x256xf32>
    %c85_205 = arith.constant 85 : index
    %1207 = memref.load %arg3[%c85_205] : memref<144xf32, #tpu.memory_space<smem>>
    %1208 = vector.broadcast %1207 : f32 to vector<2x256xf32>
    %1209 = arith.mulf %1208, %1202 : vector<2x256xf32>
    %1210 = arith.addf %1189, %1209 : vector<2x256xf32>
    %c86_206 = arith.constant 86 : index
    %1211 = memref.load %arg3[%c86_206] : memref<144xf32, #tpu.memory_space<smem>>
    %1212 = vector.broadcast %1211 : f32 to vector<2x256xf32>
    %1213 = arith.mulf %1212, %1202 : vector<2x256xf32>
    %1214 = arith.addf %1193, %1213 : vector<2x256xf32>
    %c87_207 = arith.constant 87 : index
    %1215 = memref.load %arg3[%c87_207] : memref<144xf32, #tpu.memory_space<smem>>
    %1216 = vector.broadcast %1215 : f32 to vector<2x256xf32>
    %1217 = arith.mulf %1216, %1202 : vector<2x256xf32>
    %1218 = arith.addf %1197, %1217 : vector<2x256xf32>
    %c255_i32_208 = arith.constant 255 : i32
    %1219 = tpu.dynamic_rotate %770 by %c255_i32_208 dim 1 : vector<2x256xf32>, i32 -> vector<2x256xf32>
    %cst_209 = arith.constant 0.000000e+00 : f32
    %1220 = vector.shape_cast %12 : vector<1x256xi1> to vector<1x256xi1>
    %1221 = vector.broadcast %1220 : vector<1x256xi1> to vector<2x256xi1>
    %1222 = vector.broadcast %cst_209 : f32 to vector<2x256xf32>
    %1223 = arith.select %1221, %1219, %1222 : vector<2x256xi1>, vector<2x256xf32>
    %c88_210 = arith.constant 88 : index
    %1224 = memref.load %arg3[%c88_210] : memref<144xf32, #tpu.memory_space<smem>>
    %1225 = vector.broadcast %1224 : f32 to vector<2x256xf32>
    %1226 = arith.mulf %1225, %1223 : vector<2x256xf32>
    %1227 = arith.addf %1206, %1226 : vector<2x256xf32>
    %c89_211 = arith.constant 89 : index
    %1228 = memref.load %arg3[%c89_211] : memref<144xf32, #tpu.memory_space<smem>>
    %1229 = vector.broadcast %1228 : f32 to vector<2x256xf32>
    %1230 = arith.mulf %1229, %1223 : vector<2x256xf32>
    %1231 = arith.addf %1210, %1230 : vector<2x256xf32>
    %c90_212 = arith.constant 90 : index
    %1232 = memref.load %arg3[%c90_212] : memref<144xf32, #tpu.memory_space<smem>>
    %1233 = vector.broadcast %1232 : f32 to vector<2x256xf32>
    %1234 = arith.mulf %1233, %1223 : vector<2x256xf32>
    %1235 = arith.addf %1214, %1234 : vector<2x256xf32>
    %c91_213 = arith.constant 91 : index
    %1236 = memref.load %arg3[%c91_213] : memref<144xf32, #tpu.memory_space<smem>>
    %1237 = vector.broadcast %1236 : f32 to vector<2x256xf32>
    %1238 = arith.mulf %1237, %1223 : vector<2x256xf32>
    %1239 = arith.addf %1218, %1238 : vector<2x256xf32>
    %c255_i32_214 = arith.constant 255 : i32
    %1240 = tpu.dynamic_rotate %772 by %c255_i32_214 dim 1 : vector<2x256xf32>, i32 -> vector<2x256xf32>
    %cst_215 = arith.constant 0.000000e+00 : f32
    %1241 = vector.shape_cast %12 : vector<1x256xi1> to vector<1x256xi1>
    %1242 = vector.broadcast %1241 : vector<1x256xi1> to vector<2x256xi1>
    %1243 = vector.broadcast %cst_215 : f32 to vector<2x256xf32>
    %1244 = arith.select %1242, %1240, %1243 : vector<2x256xi1>, vector<2x256xf32>
    %c92_216 = arith.constant 92 : index
    %1245 = memref.load %arg3[%c92_216] : memref<144xf32, #tpu.memory_space<smem>>
    %1246 = vector.broadcast %1245 : f32 to vector<2x256xf32>
    %1247 = arith.mulf %1246, %1244 : vector<2x256xf32>
    %1248 = arith.addf %1227, %1247 : vector<2x256xf32>
    %c93_217 = arith.constant 93 : index
    %1249 = memref.load %arg3[%c93_217] : memref<144xf32, #tpu.memory_space<smem>>
    %1250 = vector.broadcast %1249 : f32 to vector<2x256xf32>
    %1251 = arith.mulf %1250, %1244 : vector<2x256xf32>
    %1252 = arith.addf %1231, %1251 : vector<2x256xf32>
    %c94_218 = arith.constant 94 : index
    %1253 = memref.load %arg3[%c94_218] : memref<144xf32, #tpu.memory_space<smem>>
    %1254 = vector.broadcast %1253 : f32 to vector<2x256xf32>
    %1255 = arith.mulf %1254, %1244 : vector<2x256xf32>
    %1256 = arith.addf %1235, %1255 : vector<2x256xf32>
    %c95_219 = arith.constant 95 : index
    %1257 = memref.load %arg3[%c95_219] : memref<144xf32, #tpu.memory_space<smem>>
    %1258 = vector.broadcast %1257 : f32 to vector<2x256xf32>
    %1259 = arith.mulf %1258, %1244 : vector<2x256xf32>
    %1260 = arith.addf %1239, %1259 : vector<2x256xf32>
    %c241_i32_220 = arith.constant 241 : i32
    %1261 = tpu.dynamic_rotate %766 by %c241_i32_220 dim 1 : vector<2x256xf32>, i32 -> vector<2x256xf32>
    %cst_221 = arith.constant 0.000000e+00 : f32
    %1262 = vector.shape_cast %15 : vector<1x256xi1> to vector<1x256xi1>
    %1263 = vector.broadcast %1262 : vector<1x256xi1> to vector<2x256xi1>
    %1264 = vector.broadcast %cst_221 : f32 to vector<2x256xf32>
    %1265 = arith.select %1263, %1261, %1264 : vector<2x256xi1>, vector<2x256xf32>
    %c96_222 = arith.constant 96 : index
    %1266 = memref.load %arg3[%c96_222] : memref<144xf32, #tpu.memory_space<smem>>
    %1267 = vector.broadcast %1266 : f32 to vector<2x256xf32>
    %1268 = arith.mulf %1267, %1265 : vector<2x256xf32>
    %1269 = arith.addf %1248, %1268 : vector<2x256xf32>
    %c97_223 = arith.constant 97 : index
    %1270 = memref.load %arg3[%c97_223] : memref<144xf32, #tpu.memory_space<smem>>
    %1271 = vector.broadcast %1270 : f32 to vector<2x256xf32>
    %1272 = arith.mulf %1271, %1265 : vector<2x256xf32>
    %1273 = arith.addf %1252, %1272 : vector<2x256xf32>
    %c98_224 = arith.constant 98 : index
    %1274 = memref.load %arg3[%c98_224] : memref<144xf32, #tpu.memory_space<smem>>
    %1275 = vector.broadcast %1274 : f32 to vector<2x256xf32>
    %1276 = arith.mulf %1275, %1265 : vector<2x256xf32>
    %1277 = arith.addf %1256, %1276 : vector<2x256xf32>
    %c99_225 = arith.constant 99 : index
    %1278 = memref.load %arg3[%c99_225] : memref<144xf32, #tpu.memory_space<smem>>
    %1279 = vector.broadcast %1278 : f32 to vector<2x256xf32>
    %1280 = arith.mulf %1279, %1265 : vector<2x256xf32>
    %1281 = arith.addf %1260, %1280 : vector<2x256xf32>
    %c241_i32_226 = arith.constant 241 : i32
    %1282 = tpu.dynamic_rotate %768 by %c241_i32_226 dim 1 : vector<2x256xf32>, i32 -> vector<2x256xf32>
    %cst_227 = arith.constant 0.000000e+00 : f32
    %1283 = vector.shape_cast %15 : vector<1x256xi1> to vector<1x256xi1>
    %1284 = vector.broadcast %1283 : vector<1x256xi1> to vector<2x256xi1>
    %1285 = vector.broadcast %cst_227 : f32 to vector<2x256xf32>
    %1286 = arith.select %1284, %1282, %1285 : vector<2x256xi1>, vector<2x256xf32>
    %c100_228 = arith.constant 100 : index
    %1287 = memref.load %arg3[%c100_228] : memref<144xf32, #tpu.memory_space<smem>>
    %1288 = vector.broadcast %1287 : f32 to vector<2x256xf32>
    %1289 = arith.mulf %1288, %1286 : vector<2x256xf32>
    %1290 = arith.addf %1269, %1289 : vector<2x256xf32>
    %c101_229 = arith.constant 101 : index
    %1291 = memref.load %arg3[%c101_229] : memref<144xf32, #tpu.memory_space<smem>>
    %1292 = vector.broadcast %1291 : f32 to vector<2x256xf32>
    %1293 = arith.mulf %1292, %1286 : vector<2x256xf32>
    %1294 = arith.addf %1273, %1293 : vector<2x256xf32>
    %c102_230 = arith.constant 102 : index
    %1295 = memref.load %arg3[%c102_230] : memref<144xf32, #tpu.memory_space<smem>>
    %1296 = vector.broadcast %1295 : f32 to vector<2x256xf32>
    %1297 = arith.mulf %1296, %1286 : vector<2x256xf32>
    %1298 = arith.addf %1277, %1297 : vector<2x256xf32>
    %c103_231 = arith.constant 103 : index
    %1299 = memref.load %arg3[%c103_231] : memref<144xf32, #tpu.memory_space<smem>>
    %1300 = vector.broadcast %1299 : f32 to vector<2x256xf32>
    %1301 = arith.mulf %1300, %1286 : vector<2x256xf32>
    %1302 = arith.addf %1281, %1301 : vector<2x256xf32>
    %c241_i32_232 = arith.constant 241 : i32
    %1303 = tpu.dynamic_rotate %770 by %c241_i32_232 dim 1 : vector<2x256xf32>, i32 -> vector<2x256xf32>
    %cst_233 = arith.constant 0.000000e+00 : f32
    %1304 = vector.shape_cast %15 : vector<1x256xi1> to vector<1x256xi1>
    %1305 = vector.broadcast %1304 : vector<1x256xi1> to vector<2x256xi1>
    %1306 = vector.broadcast %cst_233 : f32 to vector<2x256xf32>
    %1307 = arith.select %1305, %1303, %1306 : vector<2x256xi1>, vector<2x256xf32>
    %c104_234 = arith.constant 104 : index
    %1308 = memref.load %arg3[%c104_234] : memref<144xf32, #tpu.memory_space<smem>>
    %1309 = vector.broadcast %1308 : f32 to vector<2x256xf32>
    %1310 = arith.mulf %1309, %1307 : vector<2x256xf32>
    %1311 = arith.addf %1290, %1310 : vector<2x256xf32>
    %c105_235 = arith.constant 105 : index
    %1312 = memref.load %arg3[%c105_235] : memref<144xf32, #tpu.memory_space<smem>>
    %1313 = vector.broadcast %1312 : f32 to vector<2x256xf32>
    %1314 = arith.mulf %1313, %1307 : vector<2x256xf32>
    %1315 = arith.addf %1294, %1314 : vector<2x256xf32>
    %c106_236 = arith.constant 106 : index
    %1316 = memref.load %arg3[%c106_236] : memref<144xf32, #tpu.memory_space<smem>>
    %1317 = vector.broadcast %1316 : f32 to vector<2x256xf32>
    %1318 = arith.mulf %1317, %1307 : vector<2x256xf32>
    %1319 = arith.addf %1298, %1318 : vector<2x256xf32>
    %c107_237 = arith.constant 107 : index
    %1320 = memref.load %arg3[%c107_237] : memref<144xf32, #tpu.memory_space<smem>>
    %1321 = vector.broadcast %1320 : f32 to vector<2x256xf32>
    %1322 = arith.mulf %1321, %1307 : vector<2x256xf32>
    %1323 = arith.addf %1302, %1322 : vector<2x256xf32>
    %c241_i32_238 = arith.constant 241 : i32
    %1324 = tpu.dynamic_rotate %772 by %c241_i32_238 dim 1 : vector<2x256xf32>, i32 -> vector<2x256xf32>
    %cst_239 = arith.constant 0.000000e+00 : f32
    %1325 = vector.shape_cast %15 : vector<1x256xi1> to vector<1x256xi1>
    %1326 = vector.broadcast %1325 : vector<1x256xi1> to vector<2x256xi1>
    %1327 = vector.broadcast %cst_239 : f32 to vector<2x256xf32>
    %1328 = arith.select %1326, %1324, %1327 : vector<2x256xi1>, vector<2x256xf32>
    %c108_240 = arith.constant 108 : index
    %1329 = memref.load %arg3[%c108_240] : memref<144xf32, #tpu.memory_space<smem>>
    %1330 = vector.broadcast %1329 : f32 to vector<2x256xf32>
    %1331 = arith.mulf %1330, %1328 : vector<2x256xf32>
    %1332 = arith.addf %1311, %1331 : vector<2x256xf32>
    %c109_241 = arith.constant 109 : index
    %1333 = memref.load %arg3[%c109_241] : memref<144xf32, #tpu.memory_space<smem>>
    %1334 = vector.broadcast %1333 : f32 to vector<2x256xf32>
    %1335 = arith.mulf %1334, %1328 : vector<2x256xf32>
    %1336 = arith.addf %1315, %1335 : vector<2x256xf32>
    %c110_242 = arith.constant 110 : index
    %1337 = memref.load %arg3[%c110_242] : memref<144xf32, #tpu.memory_space<smem>>
    %1338 = vector.broadcast %1337 : f32 to vector<2x256xf32>
    %1339 = arith.mulf %1338, %1328 : vector<2x256xf32>
    %1340 = arith.addf %1319, %1339 : vector<2x256xf32>
    %c111_243 = arith.constant 111 : index
    %1341 = memref.load %arg3[%c111_243] : memref<144xf32, #tpu.memory_space<smem>>
    %1342 = vector.broadcast %1341 : f32 to vector<2x256xf32>
    %1343 = arith.mulf %1342, %1328 : vector<2x256xf32>
    %1344 = arith.addf %1323, %1343 : vector<2x256xf32>
    %c240_i32_244 = arith.constant 240 : i32
    %1345 = tpu.dynamic_rotate %766 by %c240_i32_244 dim 1 : vector<2x256xf32>, i32 -> vector<2x256xf32>
    %cst_245 = arith.constant 0.000000e+00 : f32
    %1346 = vector.shape_cast %8 : vector<1x256xi1> to vector<1x256xi1>
    %1347 = vector.broadcast %1346 : vector<1x256xi1> to vector<2x256xi1>
    %1348 = vector.broadcast %cst_245 : f32 to vector<2x256xf32>
    %1349 = arith.select %1347, %1345, %1348 : vector<2x256xi1>, vector<2x256xf32>
    %c112_246 = arith.constant 112 : index
    %1350 = memref.load %arg3[%c112_246] : memref<144xf32, #tpu.memory_space<smem>>
    %1351 = vector.broadcast %1350 : f32 to vector<2x256xf32>
    %1352 = arith.mulf %1351, %1349 : vector<2x256xf32>
    %1353 = arith.addf %1332, %1352 : vector<2x256xf32>
    %c113_247 = arith.constant 113 : index
    %1354 = memref.load %arg3[%c113_247] : memref<144xf32, #tpu.memory_space<smem>>
    %1355 = vector.broadcast %1354 : f32 to vector<2x256xf32>
    %1356 = arith.mulf %1355, %1349 : vector<2x256xf32>
    %1357 = arith.addf %1336, %1356 : vector<2x256xf32>
    %c114_248 = arith.constant 114 : index
    %1358 = memref.load %arg3[%c114_248] : memref<144xf32, #tpu.memory_space<smem>>
    %1359 = vector.broadcast %1358 : f32 to vector<2x256xf32>
    %1360 = arith.mulf %1359, %1349 : vector<2x256xf32>
    %1361 = arith.addf %1340, %1360 : vector<2x256xf32>
    %c115_249 = arith.constant 115 : index
    %1362 = memref.load %arg3[%c115_249] : memref<144xf32, #tpu.memory_space<smem>>
    %1363 = vector.broadcast %1362 : f32 to vector<2x256xf32>
    %1364 = arith.mulf %1363, %1349 : vector<2x256xf32>
    %1365 = arith.addf %1344, %1364 : vector<2x256xf32>
    %c240_i32_250 = arith.constant 240 : i32
    %1366 = tpu.dynamic_rotate %768 by %c240_i32_250 dim 1 : vector<2x256xf32>, i32 -> vector<2x256xf32>
    %cst_251 = arith.constant 0.000000e+00 : f32
    %1367 = vector.shape_cast %8 : vector<1x256xi1> to vector<1x256xi1>
    %1368 = vector.broadcast %1367 : vector<1x256xi1> to vector<2x256xi1>
    %1369 = vector.broadcast %cst_251 : f32 to vector<2x256xf32>
    %1370 = arith.select %1368, %1366, %1369 : vector<2x256xi1>, vector<2x256xf32>
    %c116_252 = arith.constant 116 : index
    %1371 = memref.load %arg3[%c116_252] : memref<144xf32, #tpu.memory_space<smem>>
    %1372 = vector.broadcast %1371 : f32 to vector<2x256xf32>
    %1373 = arith.mulf %1372, %1370 : vector<2x256xf32>
    %1374 = arith.addf %1353, %1373 : vector<2x256xf32>
    %c117_253 = arith.constant 117 : index
    %1375 = memref.load %arg3[%c117_253] : memref<144xf32, #tpu.memory_space<smem>>
    %1376 = vector.broadcast %1375 : f32 to vector<2x256xf32>
    %1377 = arith.mulf %1376, %1370 : vector<2x256xf32>
    %1378 = arith.addf %1357, %1377 : vector<2x256xf32>
    %c118_254 = arith.constant 118 : index
    %1379 = memref.load %arg3[%c118_254] : memref<144xf32, #tpu.memory_space<smem>>
    %1380 = vector.broadcast %1379 : f32 to vector<2x256xf32>
    %1381 = arith.mulf %1380, %1370 : vector<2x256xf32>
    %1382 = arith.addf %1361, %1381 : vector<2x256xf32>
    %c119_255 = arith.constant 119 : index
    %1383 = memref.load %arg3[%c119_255] : memref<144xf32, #tpu.memory_space<smem>>
    %1384 = vector.broadcast %1383 : f32 to vector<2x256xf32>
    %1385 = arith.mulf %1384, %1370 : vector<2x256xf32>
    %1386 = arith.addf %1365, %1385 : vector<2x256xf32>
    %c240_i32_256 = arith.constant 240 : i32
    %1387 = tpu.dynamic_rotate %770 by %c240_i32_256 dim 1 : vector<2x256xf32>, i32 -> vector<2x256xf32>
    %cst_257 = arith.constant 0.000000e+00 : f32
    %1388 = vector.shape_cast %8 : vector<1x256xi1> to vector<1x256xi1>
    %1389 = vector.broadcast %1388 : vector<1x256xi1> to vector<2x256xi1>
    %1390 = vector.broadcast %cst_257 : f32 to vector<2x256xf32>
    %1391 = arith.select %1389, %1387, %1390 : vector<2x256xi1>, vector<2x256xf32>
    %c120_258 = arith.constant 120 : index
    %1392 = memref.load %arg3[%c120_258] : memref<144xf32, #tpu.memory_space<smem>>
    %1393 = vector.broadcast %1392 : f32 to vector<2x256xf32>
    %1394 = arith.mulf %1393, %1391 : vector<2x256xf32>
    %1395 = arith.addf %1374, %1394 : vector<2x256xf32>
    %c121_259 = arith.constant 121 : index
    %1396 = memref.load %arg3[%c121_259] : memref<144xf32, #tpu.memory_space<smem>>
    %1397 = vector.broadcast %1396 : f32 to vector<2x256xf32>
    %1398 = arith.mulf %1397, %1391 : vector<2x256xf32>
    %1399 = arith.addf %1378, %1398 : vector<2x256xf32>
    %c122_260 = arith.constant 122 : index
    %1400 = memref.load %arg3[%c122_260] : memref<144xf32, #tpu.memory_space<smem>>
    %1401 = vector.broadcast %1400 : f32 to vector<2x256xf32>
    %1402 = arith.mulf %1401, %1391 : vector<2x256xf32>
    %1403 = arith.addf %1382, %1402 : vector<2x256xf32>
    %c123_261 = arith.constant 123 : index
    %1404 = memref.load %arg3[%c123_261] : memref<144xf32, #tpu.memory_space<smem>>
    %1405 = vector.broadcast %1404 : f32 to vector<2x256xf32>
    %1406 = arith.mulf %1405, %1391 : vector<2x256xf32>
    %1407 = arith.addf %1386, %1406 : vector<2x256xf32>
    %c240_i32_262 = arith.constant 240 : i32
    %1408 = tpu.dynamic_rotate %772 by %c240_i32_262 dim 1 : vector<2x256xf32>, i32 -> vector<2x256xf32>
    %cst_263 = arith.constant 0.000000e+00 : f32
    %1409 = vector.shape_cast %8 : vector<1x256xi1> to vector<1x256xi1>
    %1410 = vector.broadcast %1409 : vector<1x256xi1> to vector<2x256xi1>
    %1411 = vector.broadcast %cst_263 : f32 to vector<2x256xf32>
    %1412 = arith.select %1410, %1408, %1411 : vector<2x256xi1>, vector<2x256xf32>
    %c124_264 = arith.constant 124 : index
    %1413 = memref.load %arg3[%c124_264] : memref<144xf32, #tpu.memory_space<smem>>
    %1414 = vector.broadcast %1413 : f32 to vector<2x256xf32>
    %1415 = arith.mulf %1414, %1412 : vector<2x256xf32>
    %1416 = arith.addf %1395, %1415 : vector<2x256xf32>
    %c125_265 = arith.constant 125 : index
    %1417 = memref.load %arg3[%c125_265] : memref<144xf32, #tpu.memory_space<smem>>
    %1418 = vector.broadcast %1417 : f32 to vector<2x256xf32>
    %1419 = arith.mulf %1418, %1412 : vector<2x256xf32>
    %1420 = arith.addf %1399, %1419 : vector<2x256xf32>
    %c126_266 = arith.constant 126 : index
    %1421 = memref.load %arg3[%c126_266] : memref<144xf32, #tpu.memory_space<smem>>
    %1422 = vector.broadcast %1421 : f32 to vector<2x256xf32>
    %1423 = arith.mulf %1422, %1412 : vector<2x256xf32>
    %1424 = arith.addf %1403, %1423 : vector<2x256xf32>
    %c127_267 = arith.constant 127 : index
    %1425 = memref.load %arg3[%c127_267] : memref<144xf32, #tpu.memory_space<smem>>
    %1426 = vector.broadcast %1425 : f32 to vector<2x256xf32>
    %1427 = arith.mulf %1426, %1412 : vector<2x256xf32>
    %1428 = arith.addf %1407, %1427 : vector<2x256xf32>
    %c239_i32_268 = arith.constant 239 : i32
    %1429 = tpu.dynamic_rotate %766 by %c239_i32_268 dim 1 : vector<2x256xf32>, i32 -> vector<2x256xf32>
    %cst_269 = arith.constant 0.000000e+00 : f32
    %1430 = vector.shape_cast %16 : vector<1x256xi1> to vector<1x256xi1>
    %1431 = vector.broadcast %1430 : vector<1x256xi1> to vector<2x256xi1>
    %1432 = vector.broadcast %cst_269 : f32 to vector<2x256xf32>
    %1433 = arith.select %1431, %1429, %1432 : vector<2x256xi1>, vector<2x256xf32>
    %c128_270 = arith.constant 128 : index
    %1434 = memref.load %arg3[%c128_270] : memref<144xf32, #tpu.memory_space<smem>>
    %1435 = vector.broadcast %1434 : f32 to vector<2x256xf32>
    %1436 = arith.mulf %1435, %1433 : vector<2x256xf32>
    %1437 = arith.addf %1416, %1436 : vector<2x256xf32>
    %c129_271 = arith.constant 129 : index
    %1438 = memref.load %arg3[%c129_271] : memref<144xf32, #tpu.memory_space<smem>>
    %1439 = vector.broadcast %1438 : f32 to vector<2x256xf32>
    %1440 = arith.mulf %1439, %1433 : vector<2x256xf32>
    %1441 = arith.addf %1420, %1440 : vector<2x256xf32>
    %c130_272 = arith.constant 130 : index
    %1442 = memref.load %arg3[%c130_272] : memref<144xf32, #tpu.memory_space<smem>>
    %1443 = vector.broadcast %1442 : f32 to vector<2x256xf32>
    %1444 = arith.mulf %1443, %1433 : vector<2x256xf32>
    %1445 = arith.addf %1424, %1444 : vector<2x256xf32>
    %c131_273 = arith.constant 131 : index
    %1446 = memref.load %arg3[%c131_273] : memref<144xf32, #tpu.memory_space<smem>>
    %1447 = vector.broadcast %1446 : f32 to vector<2x256xf32>
    %1448 = arith.mulf %1447, %1433 : vector<2x256xf32>
    %1449 = arith.addf %1428, %1448 : vector<2x256xf32>
    %c239_i32_274 = arith.constant 239 : i32
    %1450 = tpu.dynamic_rotate %768 by %c239_i32_274 dim 1 : vector<2x256xf32>, i32 -> vector<2x256xf32>
    %cst_275 = arith.constant 0.000000e+00 : f32
    %1451 = vector.shape_cast %16 : vector<1x256xi1> to vector<1x256xi1>
    %1452 = vector.broadcast %1451 : vector<1x256xi1> to vector<2x256xi1>
    %1453 = vector.broadcast %cst_275 : f32 to vector<2x256xf32>
    %1454 = arith.select %1452, %1450, %1453 : vector<2x256xi1>, vector<2x256xf32>
    %c132_276 = arith.constant 132 : index
    %1455 = memref.load %arg3[%c132_276] : memref<144xf32, #tpu.memory_space<smem>>
    %1456 = vector.broadcast %1455 : f32 to vector<2x256xf32>
    %1457 = arith.mulf %1456, %1454 : vector<2x256xf32>
    %1458 = arith.addf %1437, %1457 : vector<2x256xf32>
    %c133_277 = arith.constant 133 : index
    %1459 = memref.load %arg3[%c133_277] : memref<144xf32, #tpu.memory_space<smem>>
    %1460 = vector.broadcast %1459 : f32 to vector<2x256xf32>
    %1461 = arith.mulf %1460, %1454 : vector<2x256xf32>
    %1462 = arith.addf %1441, %1461 : vector<2x256xf32>
    %c134_278 = arith.constant 134 : index
    %1463 = memref.load %arg3[%c134_278] : memref<144xf32, #tpu.memory_space<smem>>
    %1464 = vector.broadcast %1463 : f32 to vector<2x256xf32>
    %1465 = arith.mulf %1464, %1454 : vector<2x256xf32>
    %1466 = arith.addf %1445, %1465 : vector<2x256xf32>
    %c135_279 = arith.constant 135 : index
    %1467 = memref.load %arg3[%c135_279] : memref<144xf32, #tpu.memory_space<smem>>
    %1468 = vector.broadcast %1467 : f32 to vector<2x256xf32>
    %1469 = arith.mulf %1468, %1454 : vector<2x256xf32>
    %1470 = arith.addf %1449, %1469 : vector<2x256xf32>
    %c239_i32_280 = arith.constant 239 : i32
    %1471 = tpu.dynamic_rotate %770 by %c239_i32_280 dim 1 : vector<2x256xf32>, i32 -> vector<2x256xf32>
    %cst_281 = arith.constant 0.000000e+00 : f32
    %1472 = vector.shape_cast %16 : vector<1x256xi1> to vector<1x256xi1>
    %1473 = vector.broadcast %1472 : vector<1x256xi1> to vector<2x256xi1>
    %1474 = vector.broadcast %cst_281 : f32 to vector<2x256xf32>
    %1475 = arith.select %1473, %1471, %1474 : vector<2x256xi1>, vector<2x256xf32>
    %c136_282 = arith.constant 136 : index
    %1476 = memref.load %arg3[%c136_282] : memref<144xf32, #tpu.memory_space<smem>>
    %1477 = vector.broadcast %1476 : f32 to vector<2x256xf32>
    %1478 = arith.mulf %1477, %1475 : vector<2x256xf32>
    %1479 = arith.addf %1458, %1478 : vector<2x256xf32>
    %c137_283 = arith.constant 137 : index
    %1480 = memref.load %arg3[%c137_283] : memref<144xf32, #tpu.memory_space<smem>>
    %1481 = vector.broadcast %1480 : f32 to vector<2x256xf32>
    %1482 = arith.mulf %1481, %1475 : vector<2x256xf32>
    %1483 = arith.addf %1462, %1482 : vector<2x256xf32>
    %c138_284 = arith.constant 138 : index
    %1484 = memref.load %arg3[%c138_284] : memref<144xf32, #tpu.memory_space<smem>>
    %1485 = vector.broadcast %1484 : f32 to vector<2x256xf32>
    %1486 = arith.mulf %1485, %1475 : vector<2x256xf32>
    %1487 = arith.addf %1466, %1486 : vector<2x256xf32>
    %c139_285 = arith.constant 139 : index
    %1488 = memref.load %arg3[%c139_285] : memref<144xf32, #tpu.memory_space<smem>>
    %1489 = vector.broadcast %1488 : f32 to vector<2x256xf32>
    %1490 = arith.mulf %1489, %1475 : vector<2x256xf32>
    %1491 = arith.addf %1470, %1490 : vector<2x256xf32>
    %c239_i32_286 = arith.constant 239 : i32
    %1492 = tpu.dynamic_rotate %772 by %c239_i32_286 dim 1 : vector<2x256xf32>, i32 -> vector<2x256xf32>
    %cst_287 = arith.constant 0.000000e+00 : f32
    %1493 = vector.shape_cast %16 : vector<1x256xi1> to vector<1x256xi1>
    %1494 = vector.broadcast %1493 : vector<1x256xi1> to vector<2x256xi1>
    %1495 = vector.broadcast %cst_287 : f32 to vector<2x256xf32>
    %1496 = arith.select %1494, %1492, %1495 : vector<2x256xi1>, vector<2x256xf32>
    %c140_288 = arith.constant 140 : index
    %1497 = memref.load %arg3[%c140_288] : memref<144xf32, #tpu.memory_space<smem>>
    %1498 = vector.broadcast %1497 : f32 to vector<2x256xf32>
    %1499 = arith.mulf %1498, %1496 : vector<2x256xf32>
    %1500 = arith.addf %1479, %1499 : vector<2x256xf32>
    %c141_289 = arith.constant 141 : index
    %1501 = memref.load %arg3[%c141_289] : memref<144xf32, #tpu.memory_space<smem>>
    %1502 = vector.broadcast %1501 : f32 to vector<2x256xf32>
    %1503 = arith.mulf %1502, %1496 : vector<2x256xf32>
    %1504 = arith.addf %1483, %1503 : vector<2x256xf32>
    %c142_290 = arith.constant 142 : index
    %1505 = memref.load %arg3[%c142_290] : memref<144xf32, #tpu.memory_space<smem>>
    %1506 = vector.broadcast %1505 : f32 to vector<2x256xf32>
    %1507 = arith.mulf %1506, %1496 : vector<2x256xf32>
    %1508 = arith.addf %1487, %1507 : vector<2x256xf32>
    %c143_291 = arith.constant 143 : index
    %1509 = memref.load %arg3[%c143_291] : memref<144xf32, #tpu.memory_space<smem>>
    %1510 = vector.broadcast %1509 : f32 to vector<2x256xf32>
    %1511 = arith.mulf %1510, %1496 : vector<2x256xf32>
    %1512 = arith.addf %1491, %1511 : vector<2x256xf32>
    %1513 = arith.addf %1500, %18 : vector<2x256xf32>
    %c0_292 = arith.constant 0 : index
    %c0_293 = arith.constant 0 : index
    %c0_294 = arith.constant 0 : index
    %1514 = vector.load %arg4[%c0_292, %c0_293, %c0_294] : memref<4x2x256xf32, #tpu.memory_space<vmem>>, vector<1x2x256xf32>
    %1515 = vector.shape_cast %1514 : vector<1x2x256xf32> to vector<2x256xf32>
    %1516 = vector.shape_cast %1513 : vector<2x256xf32> to vector<1x2x256xf32>
    tpu.vector_store %arg4[%c0_292, %c0_293, %c0_294], %1516 {strides = array<i32>} : memref<4x2x256xf32, #tpu.memory_space<vmem>>, vector<1x2x256xf32>,
    %1517 = arith.addf %1504, %20 : vector<2x256xf32>
    %c1_295 = arith.constant 1 : index
    %c0_296 = arith.constant 0 : index
    %c0_297 = arith.constant 0 : index
    %1518 = vector.load %arg4[%c1_295, %c0_296, %c0_297] : memref<4x2x256xf32, #tpu.memory_space<vmem>>, vector<1x2x256xf32>
    %1519 = vector.shape_cast %1518 : vector<1x2x256xf32> to vector<2x256xf32>
    %1520 = vector.shape_cast %1517 : vector<2x256xf32> to vector<1x2x256xf32>
    tpu.vector_store %arg4[%c1_295, %c0_296, %c0_297], %1520 {strides = array<i32>} : memref<4x2x256xf32, #tpu.memory_space<vmem>>, vector<1x2x256xf32>,
    %1521 = arith.addf %1508, %22 : vector<2x256xf32>
    %c2_298 = arith.constant 2 : index
    %c0_299 = arith.constant 0 : index
    %c0_300 = arith.constant 0 : index
    %1522 = vector.load %arg4[%c2_298, %c0_299, %c0_300] : memref<4x2x256xf32, #tpu.memory_space<vmem>>, vector<1x2x256xf32>
    %1523 = vector.shape_cast %1522 : vector<1x2x256xf32> to vector<2x256xf32>
    %1524 = vector.shape_cast %1521 : vector<2x256xf32> to vector<1x2x256xf32>
    tpu.vector_store %arg4[%c2_298, %c0_299, %c0_300], %1524 {strides = array<i32>} : memref<4x2x256xf32, #tpu.memory_space<vmem>>, vector<1x2x256xf32>,
    %1525 = arith.addf %1512, %24 : vector<2x256xf32>
    %c3_301 = arith.constant 3 : index
    %c0_302 = arith.constant 0 : index
    %c0_303 = arith.constant 0 : index
    %1526 = vector.load %arg4[%c3_301, %c0_302, %c0_303] : memref<4x2x256xf32, #tpu.memory_space<vmem>>, vector<1x2x256xf32>
    %1527 = vector.shape_cast %1526 : vector<1x2x256xf32> to vector<2x256xf32>
    %1528 = vector.shape_cast %1525 : vector<2x256xf32> to vector<1x2x256xf32>
    tpu.vector_store %arg4[%c3_301, %c0_302, %c0_303], %1528 {strides = array<i32>} : memref<4x2x256xf32, #tpu.memory_space<vmem>>, vector<1x2x256xf32>,
    return
  }
  func.func @transform_0(%arg0: i32) -> (i32, i32, i32) {
    %c0_i32 = arith.constant 0 : i32
    %c0_i32_0 = arith.constant 0 : i32
    %c0_i32_1 = arith.constant 0 : i32
    return %c0_i32, %arg0, %c0_i32_0 : i32, i32, i32
  }
  func.func @transform_1(%arg0: i32) -> i32 {
    %c0_i32 = arith.constant 0 : i32
    %c0_i32_0 = arith.constant 0 : i32
    return %c0_i32 : i32
  }
  func.func @transform_2(%arg0: i32) -> i32 {
    %c0_i32 = arith.constant 0 : i32
    %c0_i32_0 = arith.constant 0 : i32
    return %c0_i32 : i32
  }
  func.func @transform_3(%arg0: i32) -> (i32, i32, i32) {
    %c0_i32 = arith.constant 0 : i32
    %c0_i32_0 = arith.constant 0 : i32
    %c0_i32_1 = arith.constant 0 : i32
    return %c0_i32, %arg0, %c0_i32_0 : i32, i32, i32
  }
}

</mosaic_0001>

<llo_original>
// kernel: tpu_custom_call.1
$region0: #{tpu_custom_call.1}
  #allocation0 [shape = 'u32[]', space=smem, size = 0x4, offset = 0x4, fixed_abs, tag = 'smem constant byte address 0x4 - core index']
  #allocation1 [shape = 'u32[144,128]{1,0:T(1,128)}', space=vmem, size = 0x12000, scoped, tag = 'internal scratch']
  %s0 = inlined_call_operand.hbm [shape: f32[4,2,256], index: 0, kind: input, shape index: {}]
  %s1 = inlined_call_operand.vmem [shape: f32[144], index: 1, kind: input, shape index: {}]
  %s2 = inlined_call_operand.vmem [shape: f32[144], index: 2, kind: input, shape index: {}]
  %s3 = inlined_call_operand.hbm [shape: f32[4,2,256], index: 3, kind: output, shape index: {}]
  %s4 = sld [smem:[#allocation0]]
  $region34: #{tpu_custom_call.1} parent=0
    _
  %s6 = ssub.s32 1, %s4
  %s7 = scalar_select 0, %s6, %s4
  $region1: #{tpu_custom_call.1} parent=0
    #allocation2 [shape = 'u8[8192]{0}', space=vmem, size = 0x2000, scoped, tag = 'input window, operand 0, single buffered']
    #allocation3 [shape = 's32[1]{0}', space=sflag, size = 0x4, scoped, tag = 'scoped memory for tpu_custom_call.1']
    #allocation4 [shape = 's32[1]{0}', space=sflag, size = 0x4, scoped, tag = 'scoped memory for tpu_custom_call.1']
    #allocation5 [shape = 's32[1]{0}', space=sflag, size = 0x4, scoped, tag = 'scoped memory for tpu_custom_call.1']
    #allocation6 [shape = 'u8[1024]{0}', space=smem, size = 0x400, scoped, tag = 'input window, operand 1, single buffered']
    #allocation7 [shape = 'u8[1024]{0}', space=smem, size = 0x400, scoped, tag = 'input window, operand 2, single buffered']
    #allocation8 [shape = 's32[1]{0}', space=sflag, size = 0x4, scoped, tag = 'scoped memory for tpu_custom_call.1']
    #allocation9 [shape = 'u8[8192]{0}', space=vmem, size = 0x2000, scoped, tag = 'output window, operand 0, single buffered']
    %8 = vsyncpa [#allocation3], 0
    %9 = vsyncpa [#allocation5], 0
    %10 = vsyncpa [#allocation8], 0
    %11 = vsyncpa [#allocation4], 0
    // Predicated region
    $region2: #{tpu_custom_call.1} parent=1 // pred_check
      _
    $region3: #{tpu_custom_call.1} parent=1 // pred_check_branch
      %13 = sbr.rel (0) target = $region5
    $region4: #{tpu_custom_call.1} parent=1 // pred_region
      %s15 = ssub.s32 256, 256
      %16 = vsyncadd [#allocation3], %s15
      %s17 = sshll.u32 [#allocation2], 4
      %s18 = int_to_ptr.vmem [resolvable:$true] %s17
      %23 = dma.hbm_to_vmem [thread:$0]  %s0, 256, %s18, [#allocation3], 64, 64, 4
    $region5: #{tpu_custom_call.1} parent=1 // pred_fallthru
      _
    // Predicated region
    $region6: #{tpu_custom_call.1} parent=1 // pred_check
      _
    $region7: #{tpu_custom_call.1} parent=1 // pred_check_branch
      %25 = sbr.rel (0) target = $region9
    $region8: #{tpu_custom_call.1} parent=1 // pred_region
      %s27 = ssub.s32 32, 32
      %28 = vsyncadd [#allocation5], %s27
      %s30 = sshll.u32 %s1, 4
      %s31 = int_to_ptr.vmem [resolvable:$true] %s30
      %33 = dma.vmem_to_smem %s31, 32, [#allocation6], [#allocation5]
    $region9: #{tpu_custom_call.1} parent=1 // pred_fallthru
      _
    // Predicated region
    $region10: #{tpu_custom_call.1} parent=1 // pred_check
      _
    $region11: #{tpu_custom_call.1} parent=1 // pred_check_branch
      %35 = sbr.rel (0) target = $region13
    $region12: #{tpu_custom_call.1} parent=1 // pred_region
      %s37 = ssub.s32 32, 32
      %38 = vsyncadd [#allocation8], %s37
      %s40 = sshll.u32 %s2, 4
      %s41 = int_to_ptr.vmem [resolvable:$true] %s40
      %43 = dma.vmem_to_smem %s41, 32, [#allocation7], [#allocation8]
    $region13: #{tpu_custom_call.1} parent=1 // pred_fallthru
      _
    // Predicated region
    $region14: #{tpu_custom_call.1} parent=1 // pred_check
      _
    $region15: #{tpu_custom_call.1} parent=1 // pred_check_branch
      %45 = sbr.rel (0) target = $region17
    $region16: #{tpu_custom_call.1} parent=1 // pred_region
      %46 = dma.done [#allocation3], 256
    $region17: #{tpu_custom_call.1} parent=1 // pred_fallthru
      _
    // Predicated region
    $region18: #{tpu_custom_call.1} parent=1 // pred_check
      _
    $region19: #{tpu_custom_call.1} parent=1 // pred_check_branch
      %48 = sbr.rel (0) target = $region21
    $region20: #{tpu_custom_call.1} parent=1 // pred_region
      %49 = dma.done [#allocation5], 32
    $region21: #{tpu_custom_call.1} parent=1 // pred_fallthru
      _
    // Predicated region
    $region22: #{tpu_custom_call.1} parent=1 // pred_check
      _
    $region23: #{tpu_custom_call.1} parent=1 // pred_check_branch
      %51 = sbr.rel (0) target = $region25
    $region24: #{tpu_custom_call.1} parent=1 // pred_region
      %52 = dma.done [#allocation8], 32
    $region25: #{tpu_custom_call.1} parent=1 // pred_fallthru
      _
    %53 = sfence
    %v54 = vlaneseq
    %v55 = vand.u32 %v54, 127
    %v56 = vadd.s32 %v55, 128
    %v57 = vshra.s32 %v55, 4
    %v58 = vshra.s32 %v56, 4
    %v59 = vand.u32 %v55, 15
    %v60 = vand.u32 %v56, 15
    %vm61 = vcmp.ge.s32.totalorder %v57, 1
    %vm62 = vcmp.ge.s32.totalorder %v58, 1
    %vm63 = vcmp.lt.s32.totalorder %v57, 15
    %vm64 = vcmp.lt.s32.totalorder %v58, 15
    %vm65 = vcmp.ge.s32.totalorder %v59, 1
    %vm66 = vcmp.ge.s32.totalorder %v60, 1
    %vm67 = vcmp.lt.s32.totalorder %v59, 15
    %vm68 = vcmp.lt.s32.totalorder %v60, 15
    %vm69 = vmand %vm61, %vm65
    %vm70 = vmand %vm62, %vm66
    %vm71 = vmand %vm61, %vm67
    %vm72 = vmand %vm62, %vm68
    %vm73 = vmand %vm63, %vm65
    %vm74 = vmand %vm64, %vm66
    %vm75 = vmand %vm63, %vm67
    %vm76 = vmand %vm64, %vm68
    %v77 = vld [vmem:[#allocation2] sm:$0xf]
    %s78 = scalar_lea.vmem [#allocation2], 4
    %v79 = vld [vmem:[%s78] sm:$0xf]
    %s80 = scalar_lea.vmem [#allocation2], 8
    %v81 = vld [vmem:[%s80] sm:$0xf]
    %s82 = scalar_lea.vmem [#allocation2], 12
    %v83 = vld [vmem:[%s82] sm:$0xf]
    %v86 = vunpack.c.l.s4 1983009808
    %v87 = vunpack.c.0.s8 %v86
    %v88 = vlaneseq
    %v89 = vshrl.u32 %v88, 7
    %v90 = vsub.s32 %v87, %v89
    %v91 = vrot.slane %v77, %v90
    %v92 = vcombine.high %v91, %v91
    %95 = vrot.lane.b32.xlu0 %v91, 17
    %v96 = vpop.permute.xlu0 %95
    %97 = vrot.lane.b32.xlu0 %v92, 17
    %v98 = vpop.permute.xlu0 %97
    %vm99 = vcmp.lt.s32.totalorder %v55, 17
    %v100 = vsel %vm99, %v96, %v98
    %v101 = vsel %vm99, %v98, %v96
    %v102 = vsel %vm69, 1, 0
    %v103 = vsel %vm70, 1, 0
    %vm104 = vcmp.eq.s32.totalorder %v102, 1
    %vm105 = vcmp.eq.s32.totalorder %v103, 1
    %v106 = vsel %vm104, %v101, 0.0
    %v107 = vsel %vm105, %v100, 0.0
    %s108 = sld [smem:[#allocation6]]
    %v109 = vstv %s108
    %v110 = vmul.f32 %v109, %v106
    %v111 = vmul.f32 %v109, %v107
    %v112 = vadd.f32 %v110, 0.0
    %v113 = vadd.f32 %v111, 0.0
    %s114 = sld [smem:[#allocation6 + $0x1]]
    %v115 = vstv %s114
    %v116 = vmul.f32 %v115, %v106
    %v117 = vmul.f32 %v115, %v107
    %v118 = vadd.f32 %v116, 0.0
    %v119 = vadd.f32 %v117, 0.0
    %s120 = sld [smem:[#allocation6 + $0x2]]
    %v121 = vstv %s120
    %v122 = vmul.f32 %v121, %v106
    %v123 = vmul.f32 %v121, %v107
    %v124 = vadd.f32 %v122, 0.0
    %v125 = vadd.f32 %v123, 0.0
    %s126 = sld [smem:[#allocation6 + $0x3]]
    %v127 = vstv %s126
    %v128 = vmul.f32 %v127, %v106
    %v129 = vmul.f32 %v127, %v107
    %v130 = vadd.f32 %v128, 0.0
    %v131 = vadd.f32 %v129, 0.0
    %v134 = vunpack.c.l.s4 1983009808
    %v135 = vunpack.c.0.s8 %v134
    %v136 = vlaneseq
    %v137 = vshrl.u32 %v136, 7
    %v138 = vsub.s32 %v135, %v137
    %v139 = vrot.slane %v79, %v138
    %v140 = vcombine.high %v139, %v139
    %143 = vrot.lane.b32.xlu0 %v139, 17
    %v144 = vpop.permute.xlu0 %143
    %145 = vrot.lane.b32.xlu0 %v140, 17
    %v146 = vpop.permute.xlu0 %145
    %v147 = vsel %vm99, %v144, %v146
    %v148 = vsel %vm99, %v146, %v144
    %v149 = vsel %vm104, %v148, 0.0
    %v150 = vsel %vm105, %v147, 0.0
    %s151 = sld [smem:[#allocation6 + $0x4]]
    %v152 = vstv %s151
    %v153 = vmul.f32 %v152, %v149
    %v154 = vmul.f32 %v152, %v150
    %v155 = vadd.f32 %v112, %v153
    %v156 = vadd.f32 %v113, %v154
    %s157 = sld [smem:[#allocation6 + $0x5]]
    %v158 = vstv %s157
    %v159 = vmul.f32 %v158, %v149
    %v160 = vmul.f32 %v158, %v150
    %v161 = vadd.f32 %v118, %v159
    %v162 = vadd.f32 %v119, %v160
    %s163 = sld [smem:[#allocation6 + $0x6]]
    %v164 = vstv %s163
    %v165 = vmul.f32 %v164, %v149
    %v166 = vmul.f32 %v164, %v150
    %v167 = vadd.f32 %v124, %v165
    %v168 = vadd.f32 %v125, %v166
    %s169 = sld [smem:[#allocation6 + $0x7]]
    %v170 = vstv %s169
    %v171 = vmul.f32 %v170, %v149
    %v172 = vmul.f32 %v170, %v150
    %v173 = vadd.f32 %v130, %v171
    %v174 = vadd.f32 %v131, %v172
    %v177 = vunpack.c.l.s4 1983009808
    %v178 = vunpack.c.0.s8 %v177
    %v179 = vlaneseq
    %v180 = vshrl.u32 %v179, 7
    %v181 = vsub.s32 %v178, %v180
    %v182 = vrot.slane %v81, %v181
    %v183 = vcombine.high %v182, %v182
    %186 = vrot.lane.b32.xlu0 %v182, 17
    %v187 = vpop.permute.xlu0 %186
    %188 = vrot.lane.b32.xlu0 %v183, 17
    %v189 = vpop.permute.xlu0 %188
    %v190 = vsel %vm99, %v187, %v189
    %v191 = vsel %vm99, %v189, %v187
    %v192 = vsel %vm104, %v191, 0.0
    %v193 = vsel %vm105, %v190, 0.0
    %s194 = sld [smem:[#allocation6 + $0x8]]
    %v195 = vstv %s194
    %v196 = vmul.f32 %v195, %v192
    %v197 = vmul.f32 %v195, %v193
    %v198 = vadd.f32 %v155, %v196
    %v199 = vadd.f32 %v156, %v197
    %s200 = sld [smem:[#allocation6 + $0x9]]
    %v201 = vstv %s200
    %v202 = vmul.f32 %v201, %v192
    %v203 = vmul.f32 %v201, %v193
    %v204 = vadd.f32 %v161, %v202
    %v205 = vadd.f32 %v162, %v203
    %s206 = sld [smem:[#allocation6 + $0xa]]
    %v207 = vstv %s206
    %v208 = vmul.f32 %v207, %v192
    %v209 = vmul.f32 %v207, %v193
    %v210 = vadd.f32 %v167, %v208
    %v211 = vadd.f32 %v168, %v209
    %s212 = sld [smem:[#allocation6 + $0xb]]
    %v213 = vstv %s212
    %v214 = vmul.f32 %v213, %v192
    %v215 = vmul.f32 %v213, %v193
    %v216 = vadd.f32 %v173, %v214
    %v217 = vadd.f32 %v174, %v215
    %v220 = vunpack.c.l.s4 1983009808
    %v221 = vunpack.c.0.s8 %v220
    %v222 = vlaneseq
    %v223 = vshrl.u32 %v222, 7
    %v224 = vsub.s32 %v221, %v223
    %v225 = vrot.slane %v83, %v224
    %v226 = vcombine.high %v225, %v225
    %229 = vrot.lane.b32.xlu0 %v225, 17
    %v230 = vpop.permute.xlu0 %229
    %231 = vrot.lane.b32.xlu0 %v226, 17
    %v232 = vpop.permute.xlu0 %231
    %v233 = vsel %vm99, %v230, %v232
    %v234 = vsel %vm99, %v232, %v230
    %v235 = vsel %vm104, %v234, 0.0
    %v236 = vsel %vm105, %v233, 0.0
    %s237 = sld [smem:[#allocation6 + $0xc]]
    %v238 = vstv %s237
    %v239 = vmul.f32 %v238, %v235
    %v240 = vmul.f32 %v238, %v236
    %v241 = vadd.f32 %v198, %v239
    %v242 = vadd.f32 %v199, %v240
    %s243 = sld [smem:[#allocation6 + $0xd]]
    %v244 = vstv %s243
    %v245 = vmul.f32 %v244, %v235
    %v246 = vmul.f32 %v244, %v236
    %v247 = vadd.f32 %v204, %v245
    %v248 = vadd.f32 %v205, %v246
    %s249 = sld [smem:[#allocation6 + $0xe]]
    %v250 = vstv %s249
    %v251 = vmul.f32 %v250, %v235
    %v252 = vmul.f32 %v250, %v236
    %v253 = vadd.f32 %v210, %v251
    %v254 = vadd.f32 %v211, %v252
    %s255 = sld [smem:[#allocation6 + $0xf]]
    %v256 = vstv %s255
    %v257 = vmul.f32 %v256, %v235
    %v258 = vmul.f32 %v256, %v236
    %v259 = vadd.f32 %v216, %v257
    %v260 = vadd.f32 %v217, %v258
    %261 = vrot.lane.b32.xlu0 %v91, 16
    %v262 = vpop.permute.xlu0 %261
    %263 = vrot.lane.b32.xlu0 %v92, 16
    %v264 = vpop.permute.xlu0 %263
    %vm265 = vcmp.lt.s32.totalorder %v55, 16
    %v266 = vsel %vm265, %v262, %v264
    %v267 = vsel %vm265, %v264, %v262
    %v268 = vsel %vm61, 1, 0
    %v269 = vsel %vm62, 1, 0
    %vm270 = vcmp.eq.s32.totalorder %v268, 1
    %vm271 = vcmp.eq.s32.totalorder %v269, 1
    %v272 = vsel %vm270, %v267, 0.0
    %v273 = vsel %vm271, %v266, 0.0
    %s274 = sld [smem:[#allocation6 + $0x10]]
    %v275 = vstv %s274
    %v276 = vmul.f32 %v275, %v272
    %v277 = vmul.f32 %v275, %v273
    %v278 = vadd.f32 %v241, %v276
    %v279 = vadd.f32 %v242, %v277
    %s280 = sld [smem:[#allocation6 + $0x11]]
    %v281 = vstv %s280
    %v282 = vmul.f32 %v281, %v272
    %v283 = vmul.f32 %v281, %v273
    %v284 = vadd.f32 %v247, %v282
    %v285 = vadd.f32 %v248, %v283
    %s286 = sld [smem:[#allocation6 + $0x12]]
    %v287 = vstv %s286
    %v288 = vmul.f32 %v287, %v272
    %v289 = vmul.f32 %v287, %v273
    %v290 = vadd.f32 %v253, %v288
    %v291 = vadd.f32 %v254, %v289
    %s292 = sld [smem:[#allocation6 + $0x13]]
    %v293 = vstv %s292
    %v294 = vmul.f32 %v293, %v272
    %v295 = vmul.f32 %v293, %v273
    %v296 = vadd.f32 %v259, %v294
    %v297 = vadd.f32 %v260, %v295
    %298 = vrot.lane.b32.xlu0 %v139, 16
    %v299 = vpop.permute.xlu0 %298
    %300 = vrot.lane.b32.xlu0 %v140, 16
    %v301 = vpop.permute.xlu0 %300
    %v302 = vsel %vm265, %v299, %v301
    %v303 = vsel %vm265, %v301, %v299
    %v304 = vsel %vm270, %v303, 0.0
    %v305 = vsel %vm271, %v302, 0.0
    %s306 = sld [smem:[#allocation6 + $0x14]]
    %v307 = vstv %s306
    %v308 = vmul.f32 %v307, %v304
    %v309 = vmul.f32 %v307, %v305
    %v310 = vadd.f32 %v278, %v308
    %v311 = vadd.f32 %v279, %v309
    %s312 = sld [smem:[#allocation6 + $0x15]]
    %v313 = vstv %s312
    %v314 = vmul.f32 %v313, %v304
    %v315 = vmul.f32 %v313, %v305
    %v316 = vadd.f32 %v284, %v314
    %v317 = vadd.f32 %v285, %v315
    %s318 = sld [smem:[#allocation6 + $0x16]]
    %v319 = vstv %s318
    %v320 = vmul.f32 %v319, %v304
    %v321 = vmul.f32 %v319, %v305
    %v322 = vadd.f32 %v290, %v320
    %v323 = vadd.f32 %v291, %v321
    %s324 = sld [smem:[#allocation6 + $0x17]]
    %v325 = vstv %s324
    %v326 = vmul.f32 %v325, %v304
    %v327 = vmul.f32 %v325, %v305
    %v328 = vadd.f32 %v296, %v326
    %v329 = vadd.f32 %v297, %v327
    %330 = vrot.lane.b32.xlu0 %v182, 16
    %v331 = vpop.permute.xlu0 %330
    %332 = vrot.lane.b32.xlu0 %v183, 16
    %v333 = vpop.permute.xlu0 %332
    %v334 = vsel %vm265, %v331, %v333
    %v335 = vsel %vm265, %v333, %v331
    %v336 = vsel %vm270, %v335, 0.0
    %v337 = vsel %vm271, %v334, 0.0
    %s338 = sld [smem:[#allocation6 + $0x18]]
    %v339 = vstv %s338
    %v340 = vmul.f32 %v339, %v336
    %v341 = vmul.f32 %v339, %v337
    %v342 = vadd.f32 %v310, %v340
    %v343 = vadd.f32 %v311, %v341
    %s344 = sld [smem:[#allocation6 + $0x19]]
    %v345 = vstv %s344
    %v346 = vmul.f32 %v345, %v336
    %v347 = vmul.f32 %v345, %v337
    %v348 = vadd.f32 %v316, %v346
    %v349 = vadd.f32 %v317, %v347
    %s350 = sld [smem:[#allocation6 + $0x1a]]
    %v351 = vstv %s350
    %v352 = vmul.f32 %v351, %v336
    %v353 = vmul.f32 %v351, %v337
    %v354 = vadd.f32 %v322, %v352
    %v355 = vadd.f32 %v323, %v353
    %s356 = sld [smem:[#allocation6 + $0x1b]]
    %v357 = vstv %s356
    %v358 = vmul.f32 %v357, %v336
    %v359 = vmul.f32 %v357, %v337
    %v360 = vadd.f32 %v328, %v358
    %v361 = vadd.f32 %v329, %v359
    %362 = vrot.lane.b32.xlu0 %v225, 16
    %v363 = vpop.permute.xlu0 %362
    %364 = vrot.lane.b32.xlu0 %v226, 16
    %v365 = vpop.permute.xlu0 %364
    %v366 = vsel %vm265, %v363, %v365
    %v367 = vsel %vm265, %v365, %v363
    %v368 = vsel %vm270, %v367, 0.0
    %v369 = vsel %vm271, %v366, 0.0
    %s370 = sld [smem:[#allocation6 + $0x1c]]
    %v371 = vstv %s370
    %v372 = vmul.f32 %v371, %v368
    %v373 = vmul.f32 %v371, %v369
    %v374 = vadd.f32 %v342, %v372
    %v375 = vadd.f32 %v343, %v373
    %s376 = sld [smem:[#allocation6 + $0x1d]]
    %v377 = vstv %s376
    %v378 = vmul.f32 %v377, %v368
    %v379 = vmul.f32 %v377, %v369
    %v380 = vadd.f32 %v348, %v378
    %v381 = vadd.f32 %v349, %v379
    %s382 = sld [smem:[#allocation6 + $0x1e]]
    %v383 = vstv %s382
    %v384 = vmul.f32 %v383, %v368
    %v385 = vmul.f32 %v383, %v369
    %v386 = vadd.f32 %v354, %v384
    %v387 = vadd.f32 %v355, %v385
    %s388 = sld [smem:[#allocation6 + $0x1f]]
    %v389 = vstv %s388
    %v390 = vmul.f32 %v389, %v368
    %v391 = vmul.f32 %v389, %v369
    %v392 = vadd.f32 %v360, %v390
    %v393 = vadd.f32 %v361, %v391
    %394 = vrot.lane.b32.xlu0 %v91, 15
    %v395 = vpop.permute.xlu0 %394
    %396 = vrot.lane.b32.xlu0 %v92, 15
    %v397 = vpop.permute.xlu0 %396
    %vm398 = vcmp.lt.s32.totalorder %v55, 15
    %v399 = vsel %vm398, %v395, %v397
    %v400 = vsel %vm398, %v397, %v395
    %v401 = vsel %vm71, 1, 0
    %v402 = vsel %vm72, 1, 0
    %vm403 = vcmp.eq.s32.totalorder %v401, 1
    %vm404 = vcmp.eq.s32.totalorder %v402, 1
    %v405 = vsel %vm403, %v400, 0.0
    %v406 = vsel %vm404, %v399, 0.0
    %s407 = sld [smem:[#allocation6 + $0x20]]
    %v408 = vstv %s407
    %v409 = vmul.f32 %v408, %v405
    %v410 = vmul.f32 %v408, %v406
    %v411 = vadd.f32 %v374, %v409
    %v412 = vadd.f32 %v375, %v410
    %s413 = sld [smem:[#allocation6 + $0x21]]
    %v414 = vstv %s413
    %v415 = vmul.f32 %v414, %v405
    %v416 = vmul.f32 %v414, %v406
    %v417 = vadd.f32 %v380, %v415
    %v418 = vadd.f32 %v381, %v416
    %s419 = sld [smem:[#allocation6 + $0x22]]
    %v420 = vstv %s419
    %v421 = vmul.f32 %v420, %v405
    %v422 = vmul.f32 %v420, %v406
    %v423 = vadd.f32 %v386, %v421
    %v424 = vadd.f32 %v387, %v422
    %s425 = sld [smem:[#allocation6 + $0x23]]
    %v426 = vstv %s425
    %v427 = vmul.f32 %v426, %v405
    %v428 = vmul.f32 %v426, %v406
    %v429 = vadd.f32 %v392, %v427
    %v430 = vadd.f32 %v393, %v428
    %431 = vrot.lane.b32.xlu0 %v139, 15
    %v432 = vpop.permute.xlu0 %431
    %433 = vrot.lane.b32.xlu0 %v140, 15
    %v434 = vpop.permute.xlu0 %433
    %v435 = vsel %vm398, %v432, %v434
    %v436 = vsel %vm398, %v434, %v432
    %v437 = vsel %vm403, %v436, 0.0
    %v438 = vsel %vm404, %v435, 0.0
    %s439 = sld [smem:[#allocation6 + $0x24]]
    %v440 = vstv %s439
    %v441 = vmul.f32 %v440, %v437
    %v442 = vmul.f32 %v440, %v438
    %v443 = vadd.f32 %v411, %v441
    %v444 = vadd.f32 %v412, %v442
    %s445 = sld [smem:[#allocation6 + $0x25]]
    %v446 = vstv %s445
    %v447 = vmul.f32 %v446, %v437
    %v448 = vmul.f32 %v446, %v438
    %v449 = vadd.f32 %v417, %v447
    %v450 = vadd.f32 %v418, %v448
    %s451 = sld [smem:[#allocation6 + $0x26]]
    %v452 = vstv %s451
    %v453 = vmul.f32 %v452, %v437
    %v454 = vmul.f32 %v452, %v438
    %v455 = vadd.f32 %v423, %v453
    %v456 = vadd.f32 %v424, %v454
    %s457 = sld [smem:[#allocation6 + $0x27]]
    %v458 = vstv %s457
    %v459 = vmul.f32 %v458, %v437
    %v460 = vmul.f32 %v458, %v438
    %v461 = vadd.f32 %v429, %v459
    %v462 = vadd.f32 %v430, %v460
    %463 = vrot.lane.b32.xlu0 %v182, 15
    %v464 = vpop.permute.xlu0 %463
    %465 = vrot.lane.b32.xlu0 %v183, 15
    %v466 = vpop.permute.xlu0 %465
    %v467 = vsel %vm398, %v464, %v466
    %v468 = vsel %vm398, %v466, %v464
    %v469 = vsel %vm403, %v468, 0.0
    %v470 = vsel %vm404, %v467, 0.0
    %s471 = sld [smem:[#allocation6 + $0x28]]
    %v472 = vstv %s471
    %v473 = vmul.f32 %v472, %v469
    %v474 = vmul.f32 %v472, %v470
    %v475 = vadd.f32 %v443, %v473
    %v476 = vadd.f32 %v444, %v474
    %s477 = sld [smem:[#allocation6 + $0x29]]
    %v478 = vstv %s477
    %v479 = vmul.f32 %v478, %v469
    %v480 = vmul.f32 %v478, %v470
    %v481 = vadd.f32 %v449, %v479
    %v482 = vadd.f32 %v450, %v480
    %s483 = sld [smem:[#allocation6 + $0x2a]]
    %v484 = vstv %s483
    %v485 = vmul.f32 %v484, %v469
    %v486 = vmul.f32 %v484, %v470
    %v487 = vadd.f32 %v455, %v485
    %v488 = vadd.f32 %v456, %v486
    %s489 = sld [smem:[#allocation6 + $0x2b]]
    %v490 = vstv %s489
    %v491 = vmul.f32 %v490, %v469
    %v492 = vmul.f32 %v490, %v470
    %v493 = vadd.f32 %v461, %v491
    %v494 = vadd.f32 %v462, %v492
    %495 = vrot.lane.b32.xlu0 %v225, 15
    %v496 = vpop.permute.xlu0 %495
    %497 = vrot.lane.b32.xlu0 %v226, 15
    %v498 = vpop.permute.xlu0 %497
    %v499 = vsel %vm398, %v496, %v498
    %v500 = vsel %vm398, %v498, %v496
    %v501 = vsel %vm403, %v500, 0.0
    %v502 = vsel %vm404, %v499, 0.0
    %s503 = sld [smem:[#allocation6 + $0x2c]]
    %v504 = vstv %s503
    %v505 = vmul.f32 %v504, %v501
    %v506 = vmul.f32 %v504, %v502
    %v507 = vadd.f32 %v475, %v505
    %v508 = vadd.f32 %v476, %v506
    %s509 = sld [smem:[#allocation6 + $0x2d]]
    %v510 = vstv %s509
    %v511 = vmul.f32 %v510, %v501
    %v512 = vmul.f32 %v510, %v502
    %v513 = vadd.f32 %v481, %v511
    %v514 = vadd.f32 %v482, %v512
    %s515 = sld [smem:[#allocation6 + $0x2e]]
    %v516 = vstv %s515
    %v517 = vmul.f32 %v516, %v501
    %v518 = vmul.f32 %v516, %v502
    %v519 = vadd.f32 %v487, %v517
    %v520 = vadd.f32 %v488, %v518
    %s521 = sld [smem:[#allocation6 + $0x2f]]
    %v522 = vstv %s521
    %v523 = vmul.f32 %v522, %v501
    %v524 = vmul.f32 %v522, %v502
    %v525 = vadd.f32 %v493, %v523
    %v526 = vadd.f32 %v494, %v524
    %527 = vrot.lane.b32.xlu0 %v91, 1
    %v528 = vpop.permute.xlu0 %527
    %529 = vrot.lane.b32.xlu0 %v92, 1
    %v530 = vpop.permute.xlu0 %529
    %vm531 = vcmp.lt.s32.totalorder %v55, 1
    %v532 = vsel %vm531, %v528, %v530
    %v533 = vsel %vm531, %v530, %v528
    %v534 = vsel %vm65, 1, 0
    %v535 = vsel %vm66, 1, 0
    %vm536 = vcmp.eq.s32.totalorder %v534, 1
    %vm537 = vcmp.eq.s32.totalorder %v535, 1
    %v538 = vsel %vm536, %v533, 0.0
    %v539 = vsel %vm537, %v532, 0.0
    %s540 = sld [smem:[#allocation6 + $0x30]]
    %v541 = vstv %s540
    %v542 = vmul.f32 %v541, %v538
    %v543 = vmul.f32 %v541, %v539
    %v544 = vadd.f32 %v507, %v542
    %v545 = vadd.f32 %v508, %v543
    %s546 = sld [smem:[#allocation6 + $0x31]]
    %v547 = vstv %s546
    %v548 = vmul.f32 %v547, %v538
    %v549 = vmul.f32 %v547, %v539
    %v550 = vadd.f32 %v513, %v548
    %v551 = vadd.f32 %v514, %v549
    %s552 = sld [smem:[#allocation6 + $0x32]]
    %v553 = vstv %s552
    %v554 = vmul.f32 %v553, %v538
    %v555 = vmul.f32 %v553, %v539
    %v556 = vadd.f32 %v519, %v554
    %v557 = vadd.f32 %v520, %v555
    %s558 = sld [smem:[#allocation6 + $0x33]]
    %v559 = vstv %s558
    %v560 = vmul.f32 %v559, %v538
    %v561 = vmul.f32 %v559, %v539
    %v562 = vadd.f32 %v525, %v560
    %v563 = vadd.f32 %v526, %v561
    %564 = vrot.lane.b32.xlu0 %v139, 1
    %v565 = vpop.permute.xlu0 %564
    %566 = vrot.lane.b32.xlu0 %v140, 1
    %v567 = vpop.permute.xlu0 %566
    %v568 = vsel %vm531, %v565, %v567
    %v569 = vsel %vm531, %v567, %v565
    %v570 = vsel %vm536, %v569, 0.0
    %v571 = vsel %vm537, %v568, 0.0
    %s572 = sld [smem:[#allocation6 + $0x34]]
    %v573 = vstv %s572
    %v574 = vmul.f32 %v573, %v570
    %v575 = vmul.f32 %v573, %v571
    %v576 = vadd.f32 %v544, %v574
    %v577 = vadd.f32 %v545, %v575
    %s578 = sld [smem:[#allocation6 + $0x35]]
    %v579 = vstv %s578
    %v580 = vmul.f32 %v579, %v570
    %v581 = vmul.f32 %v579, %v571
    %v582 = vadd.f32 %v550, %v580
    %v583 = vadd.f32 %v551, %v581
    %s584 = sld [smem:[#allocation6 + $0x36]]
    %v585 = vstv %s584
    %v586 = vmul.f32 %v585, %v570
    %v587 = vmul.f32 %v585, %v571
    %v588 = vadd.f32 %v556, %v586
    %v589 = vadd.f32 %v557, %v587
    %s590 = sld [smem:[#allocation6 + $0x37]]
    %v591 = vstv %s590
    %v592 = vmul.f32 %v591, %v570
    %v593 = vmul.f32 %v591, %v571
    %v594 = vadd.f32 %v562, %v592
    %v595 = vadd.f32 %v563, %v593
    %596 = vrot.lane.b32.xlu0 %v182, 1
    %v597 = vpop.permute.xlu0 %596
    %598 = vrot.lane.b32.xlu0 %v183, 1
    %v599 = vpop.permute.xlu0 %598
    %v600 = vsel %vm531, %v597, %v599
    %v601 = vsel %vm531, %v599, %v597
    %v602 = vsel %vm536, %v601, 0.0
    %v603 = vsel %vm537, %v600, 0.0
    %s604 = sld [smem:[#allocation6 + $0x38]]
    %v605 = vstv %s604
    %v606 = vmul.f32 %v605, %v602
    %v607 = vmul.f32 %v605, %v603
    %v608 = vadd.f32 %v576, %v606
    %v609 = vadd.f32 %v577, %v607
    %s610 = sld [smem:[#allocation6 + $0x39]]
    %v611 = vstv %s610
    %v612 = vmul.f32 %v611, %v602
    %v613 = vmul.f32 %v611, %v603
    %v614 = vadd.f32 %v582, %v612
    %v615 = vadd.f32 %v583, %v613
    %s616 = sld [smem:[#allocation6 + $0x3a]]
    %v617 = vstv %s616
    %v618 = vmul.f32 %v617, %v602
    %v619 = vmul.f32 %v617, %v603
    %v620 = vadd.f32 %v588, %v618
    %v621 = vadd.f32 %v589, %v619
    %s622 = sld [smem:[#allocation6 + $0x3b]]
    %v623 = vstv %s622
    %v624 = vmul.f32 %v623, %v602
    %v625 = vmul.f32 %v623, %v603
    %v626 = vadd.f32 %v594, %v624
    %v627 = vadd.f32 %v595, %v625
    %628 = vrot.lane.b32.xlu0 %v225, 1
    %v629 = vpop.permute.xlu0 %628
    %630 = vrot.lane.b32.xlu0 %v226, 1
    %v631 = vpop.permute.xlu0 %630
    %v632 = vsel %vm531, %v629, %v631
    %v633 = vsel %vm531, %v631, %v629
    %v634 = vsel %vm536, %v633, 0.0
    %v635 = vsel %vm537, %v632, 0.0
    %s636 = sld [smem:[#allocation6 + $0x3c]]
    %v637 = vstv %s636
    %v638 = vmul.f32 %v637, %v634
    %v639 = vmul.f32 %v637, %v635
    %v640 = vadd.f32 %v608, %v638
    %v641 = vadd.f32 %v609, %v639
    %s642 = sld [smem:[#allocation6 + $0x3d]]
    %v643 = vstv %s642
    %v644 = vmul.f32 %v643, %v634
    %v645 = vmul.f32 %v643, %v635
    %v646 = vadd.f32 %v614, %v644
    %v647 = vadd.f32 %v615, %v645
    %s648 = sld [smem:[#allocation6 + $0x3e]]
    %v649 = vstv %s648
    %v650 = vmul.f32 %v649, %v634
    %v651 = vmul.f32 %v649, %v635
    %v652 = vadd.f32 %v620, %v650
    %v653 = vadd.f32 %v621, %v651
    %s654 = sld [smem:[#allocation6 + $0x3f]]
    %v655 = vstv %s654
    %v656 = vmul.f32 %v655, %v634
    %v657 = vmul.f32 %v655, %v635
    %v658 = vadd.f32 %v626, %v656
    %v659 = vadd.f32 %v627, %v657
    %s660 = sld [smem:[#allocation6 + $0x40]]
    %v661 = vstv %s660
    %v662 = vmul.f32 %v661, %v77
    %v665 = vunpack.c.l.s4 1983009808
    %v666 = vunpack.c.0.s8 %v665
    %v667 = vlaneseq
    %v668 = vshrl.u32 %v667, 7
    %v669 = vsub.s32 %v666, %v668
    %v670 = vrot.slane %v662, %v669
    %v671 = vcombine.high %v670, %v670
    %v674 = vadd.f32 %v640, %v670
    %v675 = vadd.f32 %v641, %v671
    %s676 = sld [smem:[#allocation6 + $0x41]]
    %v677 = vstv %s676
    %v678 = vmul.f32 %v677, %v77
    %v681 = vunpack.c.l.s4 1983009808
    %v682 = vunpack.c.0.s8 %v681
    %v683 = vlaneseq
    %v684 = vshrl.u32 %v683, 7
    %v685 = vsub.s32 %v682, %v684
    %v686 = vrot.slane %v678, %v685
    %v687 = vcombine.high %v686, %v686
    %v690 = vadd.f32 %v646, %v686
    %v691 = vadd.f32 %v647, %v687
    %s692 = sld [smem:[#allocation6 + $0x42]]
    %v693 = vstv %s692
    %v694 = vmul.f32 %v693, %v77
    %v697 = vunpack.c.l.s4 1983009808
    %v698 = vunpack.c.0.s8 %v697
    %v699 = vlaneseq
    %v700 = vshrl.u32 %v699, 7
    %v701 = vsub.s32 %v698, %v700
    %v702 = vrot.slane %v694, %v701
    %v703 = vcombine.high %v702, %v702
    %v706 = vadd.f32 %v652, %v702
    %v707 = vadd.f32 %v653, %v703
    %s708 = sld [smem:[#allocation6 + $0x43]]
    %v709 = vstv %s708
    %v710 = vmul.f32 %v709, %v77
    %v713 = vunpack.c.l.s4 1983009808
    %v714 = vunpack.c.0.s8 %v713
    %v715 = vlaneseq
    %v716 = vshrl.u32 %v715, 7
    %v717 = vsub.s32 %v714, %v716
    %v718 = vrot.slane %v710, %v717
    %v719 = vcombine.high %v718, %v718
    %v722 = vadd.f32 %v658, %v718
    %v723 = vadd.f32 %v659, %v719
    %s724 = sld [smem:[#allocation6 + $0x44]]
    %v725 = vstv %s724
    %v726 = vmul.f32 %v725, %v79
    %v729 = vunpack.c.l.s4 1983009808
    %v730 = vunpack.c.0.s8 %v729
    %v731 = vlaneseq
    %v732 = vshrl.u32 %v731, 7
    %v733 = vsub.s32 %v730, %v732
    %v734 = vrot.slane %v726, %v733
    %v735 = vcombine.high %v734, %v734
    %v738 = vadd.f32 %v674, %v734
    %v739 = vadd.f32 %v675, %v735
    %s740 = sld [smem:[#allocation6 + $0x45]]
    %v741 = vstv %s740
    %v742 = vmul.f32 %v741, %v79
    %v745 = vunpack.c.l.s4 1983009808
    %v746 = vunpack.c.0.s8 %v745
    %v747 = vlaneseq
    %v748 = vshrl.u32 %v747, 7
    %v749 = vsub.s32 %v746, %v748
    %v750 = vrot.slane %v742, %v749
    %v751 = vcombine.high %v750, %v750
    %v754 = vadd.f32 %v690, %v750
    %v755 = vadd.f32 %v691, %v751
    %s756 = sld [smem:[#allocation6 + $0x46]]
    %v757 = vstv %s756
    %v758 = vmul.f32 %v757, %v79
    %v761 = vunpack.c.l.s4 1983009808
    %v762 = vunpack.c.0.s8 %v761
    %v763 = vlaneseq
    %v764 = vshrl.u32 %v763, 7
    %v765 = vsub.s32 %v762, %v764
    %v766 = vrot.slane %v758, %v765
    %v767 = vcombine.high %v766, %v766
    %v770 = vadd.f32 %v706, %v766
    %v771 = vadd.f32 %v707, %v767
    %s772 = sld [smem:[#allocation6 + $0x47]]
    %v773 = vstv %s772
    %v774 = vmul.f32 %v773, %v79
    %v777 = vunpack.c.l.s4 1983009808
    %v778 = vunpack.c.0.s8 %v777
    %v779 = vlaneseq
    %v780 = vshrl.u32 %v779, 7
    %v781 = vsub.s32 %v778, %v780
    %v782 = vrot.slane %v774, %v781
    %v783 = vcombine.high %v782, %v782
    %v786 = vadd.f32 %v722, %v782
    %v787 = vadd.f32 %v723, %v783
    %s788 = sld [smem:[#allocation6 + $0x48]]
    %v789 = vstv %s788
    %v790 = vmul.f32 %v789, %v81
    %v793 = vunpack.c.l.s4 1983009808
    %v794 = vunpack.c.0.s8 %v793
    %v795 = vlaneseq
    %v796 = vshrl.u32 %v795, 7
    %v797 = vsub.s32 %v794, %v796
    %v798 = vrot.slane %v790, %v797
    %v799 = vcombine.high %v798, %v798
    %v802 = vadd.f32 %v738, %v798
    %v803 = vadd.f32 %v739, %v799
    %s804 = sld [smem:[#allocation6 + $0x49]]
    %v805 = vstv %s804
    %v806 = vmul.f32 %v805, %v81
    %v809 = vunpack.c.l.s4 1983009808
    %v810 = vunpack.c.0.s8 %v809
    %v811 = vlaneseq
    %v812 = vshrl.u32 %v811, 7
    %v813 = vsub.s32 %v810, %v812
    %v814 = vrot.slane %v806, %v813
    %v815 = vcombine.high %v814, %v814
    %v818 = vadd.f32 %v754, %v814
    %v819 = vadd.f32 %v755, %v815
    %s820 = sld [smem:[#allocation6 + $0x4a]]
    %v821 = vstv %s820
    %v822 = vmul.f32 %v821, %v81
    %v825 = vunpack.c.l.s4 1983009808
    %v826 = vunpack.c.0.s8 %v825
    %v827 = vlaneseq
    %v828 = vshrl.u32 %v827, 7
    %v829 = vsub.s32 %v826, %v828
    %v830 = vrot.slane %v822, %v829
    %v831 = vcombine.high %v830, %v830
    %v834 = vadd.f32 %v770, %v830
    %v835 = vadd.f32 %v771, %v831
    %s836 = sld [smem:[#allocation6 + $0x4b]]
    %v837 = vstv %s836
    %v838 = vmul.f32 %v837, %v81
    %v841 = vunpack.c.l.s4 1983009808
    %v842 = vunpack.c.0.s8 %v841
    %v843 = vlaneseq
    %v844 = vshrl.u32 %v843, 7
    %v845 = vsub.s32 %v842, %v844
    %v846 = vrot.slane %v838, %v845
    %v847 = vcombine.high %v846, %v846
    %v850 = vadd.f32 %v786, %v846
    %v851 = vadd.f32 %v787, %v847
    %s852 = sld [smem:[#allocation6 + $0x4c]]
    %v853 = vstv %s852
    %v854 = vmul.f32 %v853, %v83
    %v857 = vunpack.c.l.s4 1983009808
    %v858 = vunpack.c.0.s8 %v857
    %v859 = vlaneseq
    %v860 = vshrl.u32 %v859, 7
    %v861 = vsub.s32 %v858, %v860
    %v862 = vrot.slane %v854, %v861
    %v863 = vcombine.high %v862, %v862
    %v866 = vadd.f32 %v802, %v862
    %v867 = vadd.f32 %v803, %v863
    %s868 = sld [smem:[#allocation6 + $0x4d]]
    %v869 = vstv %s868
    %v870 = vmul.f32 %v869, %v83
    %v873 = vunpack.c.l.s4 1983009808
    %v874 = vunpack.c.0.s8 %v873
    %v875 = vlaneseq
    %v876 = vshrl.u32 %v875, 7
    %v877 = vsub.s32 %v874, %v876
    %v878 = vrot.slane %v870, %v877
    %v879 = vcombine.high %v878, %v878
    %v882 = vadd.f32 %v818, %v878
    %v883 = vadd.f32 %v819, %v879
    %s884 = sld [smem:[#allocation6 + $0x4e]]
    %v885 = vstv %s884
    %v886 = vmul.f32 %v885, %v83
    %v889 = vunpack.c.l.s4 1983009808
    %v890 = vunpack.c.0.s8 %v889
    %v891 = vlaneseq
    %v892 = vshrl.u32 %v891, 7
    %v893 = vsub.s32 %v890, %v892
    %v894 = vrot.slane %v886, %v893
    %v895 = vcombine.high %v894, %v894
    %v898 = vadd.f32 %v834, %v894
    %v899 = vadd.f32 %v835, %v895
    %s900 = sld [smem:[#allocation6 + $0x4f]]
    %v901 = vstv %s900
    %v902 = vmul.f32 %v901, %v83
    %v905 = vunpack.c.l.s4 1983009808
    %v906 = vunpack.c.0.s8 %v905
    %v907 = vlaneseq
    %v908 = vshrl.u32 %v907, 7
    %v909 = vsub.s32 %v906, %v908
    %v910 = vrot.slane %v902, %v909
    %v911 = vcombine.high %v910, %v910
    %v914 = vadd.f32 %v850, %v910
    %v915 = vadd.f32 %v851, %v911
    %916 = vrot.lane.b32.xlu0 %v91, 127
    %v917 = vpop.permute.xlu0 %916
    %918 = vrot.lane.b32.xlu0 %v92, 127
    %v919 = vpop.permute.xlu0 %918
    %vm920 = vcmp.lt.s32.totalorder %v55, 127
    %v921 = vsel %vm920, %v917, %v919
    %v922 = vsel %vm920, %v919, %v917
    %v923 = vsel %vm67, 1, 0
    %v924 = vsel %vm68, 1, 0
    %vm925 = vcmp.eq.s32.totalorder %v923, 1
    %vm926 = vcmp.eq.s32.totalorder %v924, 1
    %v927 = vsel %vm925, %v921, 0.0
    %v928 = vsel %vm926, %v922, 0.0
    %s929 = sld [smem:[#allocation6 + $0x50]]
    %v930 = vstv %s929
    %v931 = vmul.f32 %v930, %v927
    %v932 = vmul.f32 %v930, %v928
    %v933 = vadd.f32 %v866, %v931
    %v934 = vadd.f32 %v867, %v932
    %s935 = sld [smem:[#allocation6 + $0x51]]
    %v936 = vstv %s935
    %v937 = vmul.f32 %v936, %v927
    %v938 = vmul.f32 %v936, %v928
    %v939 = vadd.f32 %v882, %v937
    %v940 = vadd.f32 %v883, %v938
    %s941 = sld [smem:[#allocation6 + $0x52]]
    %v942 = vstv %s941
    %v943 = vmul.f32 %v942, %v927
    %v944 = vmul.f32 %v942, %v928
    %v945 = vadd.f32 %v898, %v943
    %v946 = vadd.f32 %v899, %v944
    %s947 = sld [smem:[#allocation6 + $0x53]]
    %v948 = vstv %s947
    %v949 = vmul.f32 %v948, %v927
    %v950 = vmul.f32 %v948, %v928
    %v951 = vadd.f32 %v914, %v949
    %v952 = vadd.f32 %v915, %v950
    %953 = vrot.lane.b32.xlu0 %v139, 127
    %v954 = vpop.permute.xlu0 %953
    %955 = vrot.lane.b32.xlu0 %v140, 127
    %v956 = vpop.permute.xlu0 %955
    %v957 = vsel %vm920, %v954, %v956
    %v958 = vsel %vm920, %v956, %v954
    %v959 = vsel %vm925, %v957, 0.0
    %v960 = vsel %vm926, %v958, 0.0
    %s961 = sld [smem:[#allocation6 + $0x54]]
    %v962 = vstv %s961
    %v963 = vmul.f32 %v962, %v959
    %v964 = vmul.f32 %v962, %v960
    %v965 = vadd.f32 %v933, %v963
    %v966 = vadd.f32 %v934, %v964
    %s967 = sld [smem:[#allocation6 + $0x55]]
    %v968 = vstv %s967
    %v969 = vmul.f32 %v968, %v959
    %v970 = vmul.f32 %v968, %v960
    %v971 = vadd.f32 %v939, %v969
    %v972 = vadd.f32 %v940, %v970
    %s973 = sld [smem:[#allocation6 + $0x56]]
    %v974 = vstv %s973
    %v975 = vmul.f32 %v974, %v959
    %v976 = vmul.f32 %v974, %v960
    %v977 = vadd.f32 %v945, %v975
    %v978 = vadd.f32 %v946, %v976
    %s979 = sld [smem:[#allocation6 + $0x57]]
    %v980 = vstv %s979
    %v981 = vmul.f32 %v980, %v959
    %v982 = vmul.f32 %v980, %v960
    %v983 = vadd.f32 %v951, %v981
    %v984 = vadd.f32 %v952, %v982
    %985 = vrot.lane.b32.xlu0 %v182, 127
    %v986 = vpop.permute.xlu0 %985
    %987 = vrot.lane.b32.xlu0 %v183, 127
    %v988 = vpop.permute.xlu0 %987
    %v989 = vsel %vm920, %v986, %v988
    %v990 = vsel %vm920, %v988, %v986
    %v991 = vsel %vm925, %v989, 0.0
    %v992 = vsel %vm926, %v990, 0.0
    %s993 = sld [smem:[#allocation6 + $0x58]]
    %v994 = vstv %s993
    %v995 = vmul.f32 %v994, %v991
    %v996 = vmul.f32 %v994, %v992
    %v997 = vadd.f32 %v965, %v995
    %v998 = vadd.f32 %v966, %v996
    %s999 = sld [smem:[#allocation6 + $0x59]]
    %v1000 = vstv %s999
    %v1001 = vmul.f32 %v1000, %v991
    %v1002 = vmul.f32 %v1000, %v992
    %v1003 = vadd.f32 %v971, %v1001
    %v1004 = vadd.f32 %v972, %v1002
    %s1005 = sld [smem:[#allocation6 + $0x5a]]
    %v1006 = vstv %s1005
    %v1007 = vmul.f32 %v1006, %v991
    %v1008 = vmul.f32 %v1006, %v992
    %v1009 = vadd.f32 %v977, %v1007
    %v1010 = vadd.f32 %v978, %v1008
    %s1011 = sld [smem:[#allocation6 + $0x5b]]
    %v1012 = vstv %s1011
    %v1013 = vmul.f32 %v1012, %v991
    %v1014 = vmul.f32 %v1012, %v992
    %v1015 = vadd.f32 %v983, %v1013
    %v1016 = vadd.f32 %v984, %v1014
    %1017 = vrot.lane.b32.xlu0 %v225, 127
    %v1018 = vpop.permute.xlu0 %1017
    %1019 = vrot.lane.b32.xlu0 %v226, 127
    %v1020 = vpop.permute.xlu0 %1019
    %v1021 = vsel %vm920, %v1018, %v1020
    %v1022 = vsel %vm920, %v1020, %v1018
    %v1023 = vsel %vm925, %v1021, 0.0
    %v1024 = vsel %vm926, %v1022, 0.0
    %s1025 = sld [smem:[#allocation6 + $0x5c]]
    %v1026 = vstv %s1025
    %v1027 = vmul.f32 %v1026, %v1023
    %v1028 = vmul.f32 %v1026, %v1024
    %v1029 = vadd.f32 %v997, %v1027
    %v1030 = vadd.f32 %v998, %v1028
    %s1031 = sld [smem:[#allocation6 + $0x5d]]
    %v1032 = vstv %s1031
    %v1033 = vmul.f32 %v1032, %v1023
    %v1034 = vmul.f32 %v1032, %v1024
    %v1035 = vadd.f32 %v1003, %v1033
    %v1036 = vadd.f32 %v1004, %v1034
    %s1037 = sld [smem:[#allocation6 + $0x5e]]
    %v1038 = vstv %s1037
    %v1039 = vmul.f32 %v1038, %v1023
    %v1040 = vmul.f32 %v1038, %v1024
    %v1041 = vadd.f32 %v1009, %v1039
    %v1042 = vadd.f32 %v1010, %v1040
    %s1043 = sld [smem:[#allocation6 + $0x5f]]
    %v1044 = vstv %s1043
    %v1045 = vmul.f32 %v1044, %v1023
    %v1046 = vmul.f32 %v1044, %v1024
    %v1047 = vadd.f32 %v1015, %v1045
    %v1048 = vadd.f32 %v1016, %v1046
    %1049 = vrot.lane.b32.xlu0 %v91, 113
    %v1050 = vpop.permute.xlu0 %1049
    %1051 = vrot.lane.b32.xlu0 %v92, 113
    %v1052 = vpop.permute.xlu0 %1051
    %vm1053 = vcmp.lt.s32.totalorder %v55, 113
    %v1054 = vsel %vm1053, %v1050, %v1052
    %v1055 = vsel %vm1053, %v1052, %v1050
    %v1056 = vsel %vm73, 1, 0
    %v1057 = vsel %vm74, 1, 0
    %vm1058 = vcmp.eq.s32.totalorder %v1056, 1
    %vm1059 = vcmp.eq.s32.totalorder %v1057, 1
    %v1060 = vsel %vm1058, %v1054, 0.0
    %v1061 = vsel %vm1059, %v1055, 0.0
    %s1062 = sld [smem:[#allocation6 + $0x60]]
    %v1063 = vstv %s1062
    %v1064 = vmul.f32 %v1063, %v1060
    %v1065 = vmul.f32 %v1063, %v1061
    %v1066 = vadd.f32 %v1029, %v1064
    %v1067 = vadd.f32 %v1030, %v1065
    %s1068 = sld [smem:[#allocation6 + $0x61]]
    %v1069 = vstv %s1068
    %v1070 = vmul.f32 %v1069, %v1060
    %v1071 = vmul.f32 %v1069, %v1061
    %v1072 = vadd.f32 %v1035, %v1070
    %v1073 = vadd.f32 %v1036, %v1071
    %s1074 = sld [smem:[#allocation6 + $0x62]]
    %v1075 = vstv %s1074
    %v1076 = vmul.f32 %v1075, %v1060
    %v1077 = vmul.f32 %v1075, %v1061
    %v1078 = vadd.f32 %v1041, %v1076
    %v1079 = vadd.f32 %v1042, %v1077
    %s1080 = sld [smem:[#allocation6 + $0x63]]
    %v1081 = vstv %s1080
    %v1082 = vmul.f32 %v1081, %v1060
    %v1083 = vmul.f32 %v1081, %v1061
    %v1084 = vadd.f32 %v1047, %v1082
    %v1085 = vadd.f32 %v1048, %v1083
    %1086 = vrot.lane.b32.xlu0 %v139, 113
    %v1087 = vpop.permute.xlu0 %1086
    %1088 = vrot.lane.b32.xlu0 %v140, 113
    %v1089 = vpop.permute.xlu0 %1088
    %v1090 = vsel %vm1053, %v1087, %v1089
    %v1091 = vsel %vm1053, %v1089, %v1087
    %v1092 = vsel %vm1058, %v1090, 0.0
    %v1093 = vsel %vm1059, %v1091, 0.0
    %s1094 = sld [smem:[#allocation6 + $0x64]]
    %v1095 = vstv %s1094
    %v1096 = vmul.f32 %v1095, %v1092
    %v1097 = vmul.f32 %v1095, %v1093
    %v1098 = vadd.f32 %v1066, %v1096
    %v1099 = vadd.f32 %v1067, %v1097
    %s1100 = sld [smem:[#allocation6 + $0x65]]
    %v1101 = vstv %s1100
    %v1102 = vmul.f32 %v1101, %v1092
    %v1103 = vmul.f32 %v1101, %v1093
    %v1104 = vadd.f32 %v1072, %v1102
    %v1105 = vadd.f32 %v1073, %v1103
    %s1106 = sld [smem:[#allocation6 + $0x66]]
    %v1107 = vstv %s1106
    %v1108 = vmul.f32 %v1107, %v1092
    %v1109 = vmul.f32 %v1107, %v1093
    %v1110 = vadd.f32 %v1078, %v1108
    %v1111 = vadd.f32 %v1079, %v1109
    %s1112 = sld [smem:[#allocation6 + $0x67]]
    %v1113 = vstv %s1112
    %v1114 = vmul.f32 %v1113, %v1092
    %v1115 = vmul.f32 %v1113, %v1093
    %v1116 = vadd.f32 %v1084, %v1114
    %v1117 = vadd.f32 %v1085, %v1115
    %1118 = vrot.lane.b32.xlu0 %v182, 113
    %v1119 = vpop.permute.xlu0 %1118
    %1120 = vrot.lane.b32.xlu0 %v183, 113
    %v1121 = vpop.permute.xlu0 %1120
    %v1122 = vsel %vm1053, %v1119, %v1121
    %v1123 = vsel %vm1053, %v1121, %v1119
    %v1124 = vsel %vm1058, %v1122, 0.0
    %v1125 = vsel %vm1059, %v1123, 0.0
    %s1126 = sld [smem:[#allocation6 + $0x68]]
    %v1127 = vstv %s1126
    %v1128 = vmul.f32 %v1127, %v1124
    %v1129 = vmul.f32 %v1127, %v1125
    %v1130 = vadd.f32 %v1098, %v1128
    %v1131 = vadd.f32 %v1099, %v1129
    %s1132 = sld [smem:[#allocation6 + $0x69]]
    %v1133 = vstv %s1132
    %v1134 = vmul.f32 %v1133, %v1124
    %v1135 = vmul.f32 %v1133, %v1125
    %v1136 = vadd.f32 %v1104, %v1134
    %v1137 = vadd.f32 %v1105, %v1135
    %s1138 = sld [smem:[#allocation6 + $0x6a]]
    %v1139 = vstv %s1138
    %v1140 = vmul.f32 %v1139, %v1124
    %v1141 = vmul.f32 %v1139, %v1125
    %v1142 = vadd.f32 %v1110, %v1140
    %v1143 = vadd.f32 %v1111, %v1141
    %s1144 = sld [smem:[#allocation6 + $0x6b]]
    %v1145 = vstv %s1144
    %v1146 = vmul.f32 %v1145, %v1124
    %v1147 = vmul.f32 %v1145, %v1125
    %v1148 = vadd.f32 %v1116, %v1146
    %v1149 = vadd.f32 %v1117, %v1147
    %1150 = vrot.lane.b32.xlu0 %v225, 113
    %v1151 = vpop.permute.xlu0 %1150
    %1152 = vrot.lane.b32.xlu0 %v226, 113
    %v1153 = vpop.permute.xlu0 %1152
    %v1154 = vsel %vm1053, %v1151, %v1153
    %v1155 = vsel %vm1053, %v1153, %v1151
    %v1156 = vsel %vm1058, %v1154, 0.0
    %v1157 = vsel %vm1059, %v1155, 0.0
    %s1158 = sld [smem:[#allocation6 + $0x6c]]
    %v1159 = vstv %s1158
    %v1160 = vmul.f32 %v1159, %v1156
    %v1161 = vmul.f32 %v1159, %v1157
    %v1162 = vadd.f32 %v1130, %v1160
    %v1163 = vadd.f32 %v1131, %v1161
    %s1164 = sld [smem:[#allocation6 + $0x6d]]
    %v1165 = vstv %s1164
    %v1166 = vmul.f32 %v1165, %v1156
    %v1167 = vmul.f32 %v1165, %v1157
    %v1168 = vadd.f32 %v1136, %v1166
    %v1169 = vadd.f32 %v1137, %v1167
    %s1170 = sld [smem:[#allocation6 + $0x6e]]
    %v1171 = vstv %s1170
    %v1172 = vmul.f32 %v1171, %v1156
    %v1173 = vmul.f32 %v1171, %v1157
    %v1174 = vadd.f32 %v1142, %v1172
    %v1175 = vadd.f32 %v1143, %v1173
    %s1176 = sld [smem:[#allocation6 + $0x6f]]
    %v1177 = vstv %s1176
    %v1178 = vmul.f32 %v1177, %v1156
    %v1179 = vmul.f32 %v1177, %v1157
    %v1180 = vadd.f32 %v1148, %v1178
    %v1181 = vadd.f32 %v1149, %v1179
    %1182 = vrot.lane.b32.xlu0 %v91, 112
    %v1183 = vpop.permute.xlu0 %1182
    %1184 = vrot.lane.b32.xlu0 %v92, 112
    %v1185 = vpop.permute.xlu0 %1184
    %vm1186 = vcmp.lt.s32.totalorder %v55, 112
    %v1187 = vsel %vm1186, %v1183, %v1185
    %v1188 = vsel %vm1186, %v1185, %v1183
    %v1189 = vsel %vm63, 1, 0
    %v1190 = vsel %vm64, 1, 0
    %vm1191 = vcmp.eq.s32.totalorder %v1189, 1
    %vm1192 = vcmp.eq.s32.totalorder %v1190, 1
    %v1193 = vsel %vm1191, %v1187, 0.0
    %v1194 = vsel %vm1192, %v1188, 0.0
    %s1195 = sld [smem:[#allocation6 + $0x70]]
    %v1196 = vstv %s1195
    %v1197 = vmul.f32 %v1196, %v1193
    %v1198 = vmul.f32 %v1196, %v1194
    %v1199 = vadd.f32 %v1162, %v1197
    %v1200 = vadd.f32 %v1163, %v1198
    %s1201 = sld [smem:[#allocation6 + $0x71]]
    %v1202 = vstv %s1201
    %v1203 = vmul.f32 %v1202, %v1193
    %v1204 = vmul.f32 %v1202, %v1194
    %v1205 = vadd.f32 %v1168, %v1203
    %v1206 = vadd.f32 %v1169, %v1204
    %s1207 = sld [smem:[#allocation6 + $0x72]]
    %v1208 = vstv %s1207
    %v1209 = vmul.f32 %v1208, %v1193
    %v1210 = vmul.f32 %v1208, %v1194
    %v1211 = vadd.f32 %v1174, %v1209
    %v1212 = vadd.f32 %v1175, %v1210
    %s1213 = sld [smem:[#allocation6 + $0x73]]
    %v1214 = vstv %s1213
    %v1215 = vmul.f32 %v1214, %v1193
    %v1216 = vmul.f32 %v1214, %v1194
    %v1217 = vadd.f32 %v1180, %v1215
    %v1218 = vadd.f32 %v1181, %v1216
    %1219 = vrot.lane.b32.xlu0 %v139, 112
    %v1220 = vpop.permute.xlu0 %1219
    %1221 = vrot.lane.b32.xlu0 %v140, 112
    %v1222 = vpop.permute.xlu0 %1221
    %v1223 = vsel %vm1186, %v1220, %v1222
    %v1224 = vsel %vm1186, %v1222, %v1220
    %v1225 = vsel %vm1191, %v1223, 0.0
    %v1226 = vsel %vm1192, %v1224, 0.0
    %s1227 = sld [smem:[#allocation6 + $0x74]]
    %v1228 = vstv %s1227
    %v1229 = vmul.f32 %v1228, %v1225
    %v1230 = vmul.f32 %v1228, %v1226
    %v1231 = vadd.f32 %v1199, %v1229
    %v1232 = vadd.f32 %v1200, %v1230
    %s1233 = sld [smem:[#allocation6 + $0x75]]
    %v1234 = vstv %s1233
    %v1235 = vmul.f32 %v1234, %v1225
    %v1236 = vmul.f32 %v1234, %v1226
    %v1237 = vadd.f32 %v1205, %v1235
    %v1238 = vadd.f32 %v1206, %v1236
    %s1239 = sld [smem:[#allocation6 + $0x76]]
    %v1240 = vstv %s1239
    %v1241 = vmul.f32 %v1240, %v1225
    %v1242 = vmul.f32 %v1240, %v1226
    %v1243 = vadd.f32 %v1211, %v1241
    %v1244 = vadd.f32 %v1212, %v1242
    %s1245 = sld [smem:[#allocation6 + $0x77]]
    %v1246 = vstv %s1245
    %v1247 = vmul.f32 %v1246, %v1225
    %v1248 = vmul.f32 %v1246, %v1226
    %v1249 = vadd.f32 %v1217, %v1247
    %v1250 = vadd.f32 %v1218, %v1248
    %1251 = vrot.lane.b32.xlu0 %v182, 112
    %v1252 = vpop.permute.xlu0 %1251
    %1253 = vrot.lane.b32.xlu0 %v183, 112
    %v1254 = vpop.permute.xlu0 %1253
    %v1255 = vsel %vm1186, %v1252, %v1254
    %v1256 = vsel %vm1186, %v1254, %v1252
    %v1257 = vsel %vm1191, %v1255, 0.0
    %v1258 = vsel %vm1192, %v1256, 0.0
    %s1259 = sld [smem:[#allocation6 + $0x78]]
    %v1260 = vstv %s1259
    %v1261 = vmul.f32 %v1260, %v1257
    %v1262 = vmul.f32 %v1260, %v1258
    %v1263 = vadd.f32 %v1231, %v1261
    %v1264 = vadd.f32 %v1232, %v1262
    %s1265 = sld [smem:[#allocation6 + $0x79]]
    %v1266 = vstv %s1265
    %v1267 = vmul.f32 %v1266, %v1257
    %v1268 = vmul.f32 %v1266, %v1258
    %v1269 = vadd.f32 %v1237, %v1267
    %v1270 = vadd.f32 %v1238, %v1268
    %s1271 = sld [smem:[#allocation6 + $0x7a]]
    %v1272 = vstv %s1271
    %v1273 = vmul.f32 %v1272, %v1257
    %v1274 = vmul.f32 %v1272, %v1258
    %v1275 = vadd.f32 %v1243, %v1273
    %v1276 = vadd.f32 %v1244, %v1274
    %s1277 = sld [smem:[#allocation6 + $0x7b]]
    %v1278 = vstv %s1277
    %v1279 = vmul.f32 %v1278, %v1257
    %v1280 = vmul.f32 %v1278, %v1258
    %v1281 = vadd.f32 %v1249, %v1279
    %v1282 = vadd.f32 %v1250, %v1280
    %1283 = vrot.lane.b32.xlu0 %v225, 112
    %v1284 = vpop.permute.xlu0 %1283
    %1285 = vrot.lane.b32.xlu0 %v226, 112
    %v1286 = vpop.permute.xlu0 %1285
    %v1287 = vsel %vm1186, %v1284, %v1286
    %v1288 = vsel %vm1186, %v1286, %v1284
    %v1289 = vsel %vm1191, %v1287, 0.0
    %v1290 = vsel %vm1192, %v1288, 0.0
    %s1291 = sld [smem:[#allocation6 + $0x7c]]
    %v1292 = vstv %s1291
    %v1293 = vmul.f32 %v1292, %v1289
    %v1294 = vmul.f32 %v1292, %v1290
    %v1295 = vadd.f32 %v1263, %v1293
    %v1296 = vadd.f32 %v1264, %v1294
    %s1297 = sld [smem:[#allocation6 + $0x7d]]
    %v1298 = vstv %s1297
    %v1299 = vmul.f32 %v1298, %v1289
    %v1300 = vmul.f32 %v1298, %v1290
    %v1301 = vadd.f32 %v1269, %v1299
    %v1302 = vadd.f32 %v1270, %v1300
    %s1303 = sld [smem:[#allocation6 + $0x7e]]
    %v1304 = vstv %s1303
    %v1305 = vmul.f32 %v1304, %v1289
    %v1306 = vmul.f32 %v1304, %v1290
    %v1307 = vadd.f32 %v1275, %v1305
    %v1308 = vadd.f32 %v1276, %v1306
    %s1309 = sld [smem:[#allocation6 + $0x7f]]
    %v1310 = vstv %s1309
    %v1311 = vmul.f32 %v1310, %v1289
    %v1312 = vmul.f32 %v1310, %v1290
    %v1313 = vadd.f32 %v1281, %v1311
    %v1314 = vadd.f32 %v1282, %v1312
    %1315 = vrot.lane.b32.xlu0 %v91, 111
    %v1316 = vpop.permute.xlu0 %1315
    %1317 = vrot.lane.b32.xlu0 %v92, 111
    %v1318 = vpop.permute.xlu0 %1317
    %vm1319 = vcmp.lt.s32.totalorder %v55, 111
    %v1320 = vsel %vm1319, %v1316, %v1318
    %v1321 = vsel %vm1319, %v1318, %v1316
    %v1322 = vsel %vm75, 1, 0
    %v1323 = vsel %vm76, 1, 0
    %vm1324 = vcmp.eq.s32.totalorder %v1322, 1
    %vm1325 = vcmp.eq.s32.totalorder %v1323, 1
    %v1326 = vsel %vm1324, %v1320, 0.0
    %v1327 = vsel %vm1325, %v1321, 0.0
    %s1328 = sld [smem:[#allocation6 + $0x80]]
    %v1329 = vstv %s1328
    %v1330 = vmul.f32 %v1329, %v1326
    %v1331 = vmul.f32 %v1329, %v1327
    %v1332 = vadd.f32 %v1295, %v1330
    %v1333 = vadd.f32 %v1296, %v1331
    %s1334 = sld [smem:[#allocation6 + $0x81]]
    %v1335 = vstv %s1334
    %v1336 = vmul.f32 %v1335, %v1326
    %v1337 = vmul.f32 %v1335, %v1327
    %v1338 = vadd.f32 %v1301, %v1336
    %v1339 = vadd.f32 %v1302, %v1337
    %s1340 = sld [smem:[#allocation6 + $0x82]]
    %v1341 = vstv %s1340
    %v1342 = vmul.f32 %v1341, %v1326
    %v1343 = vmul.f32 %v1341, %v1327
    %v1344 = vadd.f32 %v1307, %v1342
    %v1345 = vadd.f32 %v1308, %v1343
    %s1346 = sld [smem:[#allocation6 + $0x83]]
    %v1347 = vstv %s1346
    %v1348 = vmul.f32 %v1347, %v1326
    %v1349 = vmul.f32 %v1347, %v1327
    %v1350 = vadd.f32 %v1313, %v1348
    %v1351 = vadd.f32 %v1314, %v1349
    %1352 = vrot.lane.b32.xlu0 %v139, 111
    %v1353 = vpop.permute.xlu0 %1352
    %1354 = vrot.lane.b32.xlu0 %v140, 111
    %v1355 = vpop.permute.xlu0 %1354
    %v1356 = vsel %vm1319, %v1353, %v1355
    %v1357 = vsel %vm1319, %v1355, %v1353
    %v1358 = vsel %vm1324, %v1356, 0.0
    %v1359 = vsel %vm1325, %v1357, 0.0
    %s1360 = sld [smem:[#allocation6 + $0x84]]
    %v1361 = vstv %s1360
    %v1362 = vmul.f32 %v1361, %v1358
    %v1363 = vmul.f32 %v1361, %v1359
    %v1364 = vadd.f32 %v1332, %v1362
    %v1365 = vadd.f32 %v1333, %v1363
    %s1366 = sld [smem:[#allocation6 + $0x85]]
    %v1367 = vstv %s1366
    %v1368 = vmul.f32 %v1367, %v1358
    %v1369 = vmul.f32 %v1367, %v1359
    %v1370 = vadd.f32 %v1338, %v1368
    %v1371 = vadd.f32 %v1339, %v1369
    %s1372 = sld [smem:[#allocation6 + $0x86]]
    %v1373 = vstv %s1372
    %v1374 = vmul.f32 %v1373, %v1358
    %v1375 = vmul.f32 %v1373, %v1359
    %v1376 = vadd.f32 %v1344, %v1374
    %v1377 = vadd.f32 %v1345, %v1375
    %s1378 = sld [smem:[#allocation6 + $0x87]]
    %v1379 = vstv %s1378
    %v1380 = vmul.f32 %v1379, %v1358
    %v1381 = vmul.f32 %v1379, %v1359
    %v1382 = vadd.f32 %v1350, %v1380
    %v1383 = vadd.f32 %v1351, %v1381
    %1384 = vrot.lane.b32.xlu0 %v182, 111
    %v1385 = vpop.permute.xlu0 %1384
    %1386 = vrot.lane.b32.xlu0 %v183, 111
    %v1387 = vpop.permute.xlu0 %1386
    %v1388 = vsel %vm1319, %v1385, %v1387
    %v1389 = vsel %vm1319, %v1387, %v1385
    %v1390 = vsel %vm1324, %v1388, 0.0
    %v1391 = vsel %vm1325, %v1389, 0.0
    %s1392 = sld [smem:[#allocation6 + $0x88]]
    %v1393 = vstv %s1392
    %v1394 = vmul.f32 %v1393, %v1390
    %v1395 = vmul.f32 %v1393, %v1391
    %v1396 = vadd.f32 %v1364, %v1394
    %v1397 = vadd.f32 %v1365, %v1395
    %s1398 = sld [smem:[#allocation6 + $0x89]]
    %v1399 = vstv %s1398
    %v1400 = vmul.f32 %v1399, %v1390
    %v1401 = vmul.f32 %v1399, %v1391
    %v1402 = vadd.f32 %v1370, %v1400
    %v1403 = vadd.f32 %v1371, %v1401
    %s1404 = sld [smem:[#allocation6 + $0x8a]]
    %v1405 = vstv %s1404
    %v1406 = vmul.f32 %v1405, %v1390
    %v1407 = vmul.f32 %v1405, %v1391
    %v1408 = vadd.f32 %v1376, %v1406
    %v1409 = vadd.f32 %v1377, %v1407
    %s1410 = sld [smem:[#allocation6 + $0x8b]]
    %v1411 = vstv %s1410
    %v1412 = vmul.f32 %v1411, %v1390
    %v1413 = vmul.f32 %v1411, %v1391
    %v1414 = vadd.f32 %v1382, %v1412
    %v1415 = vadd.f32 %v1383, %v1413
    %1416 = vrot.lane.b32.xlu0 %v225, 111
    %v1417 = vpop.permute.xlu0 %1416
    %1418 = vrot.lane.b32.xlu0 %v226, 111
    %v1419 = vpop.permute.xlu0 %1418
    %v1420 = vsel %vm1319, %v1417, %v1419
    %v1421 = vsel %vm1319, %v1419, %v1417
    %v1422 = vsel %vm1324, %v1420, 0.0
    %v1423 = vsel %vm1325, %v1421, 0.0
    %s1424 = sld [smem:[#allocation6 + $0x8c]]
    %v1425 = vstv %s1424
    %v1426 = vmul.f32 %v1425, %v1422
    %v1427 = vmul.f32 %v1425, %v1423
    %v1428 = vadd.f32 %v1396, %v1426
    %v1429 = vadd.f32 %v1397, %v1427
    %s1430 = sld [smem:[#allocation6 + $0x8d]]
    %v1431 = vstv %s1430
    %v1432 = vmul.f32 %v1431, %v1422
    %v1433 = vmul.f32 %v1431, %v1423
    %v1434 = vadd.f32 %v1402, %v1432
    %v1435 = vadd.f32 %v1403, %v1433
    %s1436 = sld [smem:[#allocation6 + $0x8e]]
    %v1437 = vstv %s1436
    %v1438 = vmul.f32 %v1437, %v1422
    %v1439 = vmul.f32 %v1437, %v1423
    %v1440 = vadd.f32 %v1408, %v1438
    %v1441 = vadd.f32 %v1409, %v1439
    %s1442 = sld [smem:[#allocation6 + $0x8f]]
    %v1443 = vstv %s1442
    %v1444 = vmul.f32 %v1443, %v1422
    %v1445 = vmul.f32 %v1443, %v1423
    %v1446 = vadd.f32 %v1414, %v1444
    %v1447 = vadd.f32 %v1415, %v1445
    %v1448 = vmax.f32 %v1428, 0.0
    %v1449 = vmax.f32 %v1429, 0.0
    %v1450 = vmax.f32 %v1434, 0.0
    %v1451 = vmax.f32 %v1435, 0.0
    %v1452 = vmax.f32 %v1440, 0.0
    %v1453 = vmax.f32 %v1441, 0.0
    %v1454 = vmax.f32 %v1446, 0.0
    %v1455 = vmax.f32 %v1447, 0.0
    %1456 = vrot.lane.b32.xlu0 %v1448, 17
    %v1457 = vpop.permute.xlu0 %1456
    %1458 = vrot.lane.b32.xlu0 %v1449, 17
    %v1459 = vpop.permute.xlu0 %1458
    %v1460 = vsel %vm99, %v1457, %v1459
    %v1461 = vsel %vm99, %v1459, %v1457
    %v1462 = vsel %vm104, %v1461, 0.0
    %v1463 = vsel %vm105, %v1460, 0.0
    %s1464 = sld [smem:[#allocation7]]
    %v1465 = vstv %s1464
    %v1466 = vmul.f32 %v1465, %v1462
    %v1467 = vmul.f32 %v1465, %v1463
    %v1468 = vadd.f32 %v1466, 0.0
    %v1469 = vadd.f32 %v1467, 0.0
    %s1470 = sld [smem:[#allocation7 + $0x1]]
    %v1471 = vstv %s1470
    %v1472 = vmul.f32 %v1471, %v1462
    %v1473 = vmul.f32 %v1471, %v1463
    %v1474 = vadd.f32 %v1472, 0.0
    %v1475 = vadd.f32 %v1473, 0.0
    %s1476 = sld [smem:[#allocation7 + $0x2]]
    %v1477 = vstv %s1476
    %v1478 = vmul.f32 %v1477, %v1462
    %v1479 = vmul.f32 %v1477, %v1463
    %v1480 = vadd.f32 %v1478, 0.0
    %v1481 = vadd.f32 %v1479, 0.0
    %s1482 = sld [smem:[#allocation7 + $0x3]]
    %v1483 = vstv %s1482
    %v1484 = vmul.f32 %v1483, %v1462
    %v1485 = vmul.f32 %v1483, %v1463
    %v1486 = vadd.f32 %v1484, 0.0
    %v1487 = vadd.f32 %v1485, 0.0
    %1488 = vrot.lane.b32.xlu0 %v1450, 17
    %v1489 = vpop.permute.xlu0 %1488
    %1490 = vrot.lane.b32.xlu0 %v1451, 17
    %v1491 = vpop.permute.xlu0 %1490
    %v1492 = vsel %vm99, %v1489, %v1491
    %v1493 = vsel %vm99, %v1491, %v1489
    %v1494 = vsel %vm104, %v1493, 0.0
    %v1495 = vsel %vm105, %v1492, 0.0
    %s1496 = sld [smem:[#allocation7 + $0x4]]
    %v1497 = vstv %s1496
    %v1498 = vmul.f32 %v1497, %v1494
    %v1499 = vmul.f32 %v1497, %v1495
    %v1500 = vadd.f32 %v1468, %v1498
    %v1501 = vadd.f32 %v1469, %v1499
    %s1502 = sld [smem:[#allocation7 + $0x5]]
    %v1503 = vstv %s1502
    %v1504 = vmul.f32 %v1503, %v1494
    %v1505 = vmul.f32 %v1503, %v1495
    %v1506 = vadd.f32 %v1474, %v1504
    %v1507 = vadd.f32 %v1475, %v1505
    %s1508 = sld [smem:[#allocation7 + $0x6]]
    %v1509 = vstv %s1508
    %v1510 = vmul.f32 %v1509, %v1494
    %v1511 = vmul.f32 %v1509, %v1495
    %v1512 = vadd.f32 %v1480, %v1510
    %v1513 = vadd.f32 %v1481, %v1511
    %s1514 = sld [smem:[#allocation7 + $0x7]]
    %v1515 = vstv %s1514
    %v1516 = vmul.f32 %v1515, %v1494
    %v1517 = vmul.f32 %v1515, %v1495
    %v1518 = vadd.f32 %v1486, %v1516
    %v1519 = vadd.f32 %v1487, %v1517
    %1520 = vrot.lane.b32.xlu0 %v1452, 17
    %v1521 = vpop.permute.xlu0 %1520
    %1522 = vrot.lane.b32.xlu0 %v1453, 17
    %v1523 = vpop.permute.xlu0 %1522
    %v1524 = vsel %vm99, %v1521, %v1523
    %v1525 = vsel %vm99, %v1523, %v1521
    %v1526 = vsel %vm104, %v1525, 0.0
    %v1527 = vsel %vm105, %v1524, 0.0
    %s1528 = sld [smem:[#allocation7 + $0x8]]
    %v1529 = vstv %s1528
    %v1530 = vmul.f32 %v1529, %v1526
    %v1531 = vmul.f32 %v1529, %v1527
    %v1532 = vadd.f32 %v1500, %v1530
    %v1533 = vadd.f32 %v1501, %v1531
    %s1534 = sld [smem:[#allocation7 + $0x9]]
    %v1535 = vstv %s1534
    %v1536 = vmul.f32 %v1535, %v1526
    %v1537 = vmul.f32 %v1535, %v1527
    %v1538 = vadd.f32 %v1506, %v1536
    %v1539 = vadd.f32 %v1507, %v1537
    %s1540 = sld [smem:[#allocation7 + $0xa]]
    %v1541 = vstv %s1540
    %v1542 = vmul.f32 %v1541, %v1526
    %v1543 = vmul.f32 %v1541, %v1527
    %v1544 = vadd.f32 %v1512, %v1542
    %v1545 = vadd.f32 %v1513, %v1543
    %s1546 = sld [smem:[#allocation7 + $0xb]]
    %v1547 = vstv %s1546
    %v1548 = vmul.f32 %v1547, %v1526
    %v1549 = vmul.f32 %v1547, %v1527
    %v1550 = vadd.f32 %v1518, %v1548
    %v1551 = vadd.f32 %v1519, %v1549
    %1552 = vrot.lane.b32.xlu0 %v1454, 17
    %v1553 = vpop.permute.xlu0 %1552
    %1554 = vrot.lane.b32.xlu0 %v1455, 17
    %v1555 = vpop.permute.xlu0 %1554
    %v1556 = vsel %vm99, %v1553, %v1555
    %v1557 = vsel %vm99, %v1555, %v1553
    %v1558 = vsel %vm104, %v1557, 0.0
    %v1559 = vsel %vm105, %v1556, 0.0
    %s1560 = sld [smem:[#allocation7 + $0xc]]
    %v1561 = vstv %s1560
    %v1562 = vmul.f32 %v1561, %v1558
    %v1563 = vmul.f32 %v1561, %v1559
    %v1564 = vadd.f32 %v1532, %v1562
    %v1565 = vadd.f32 %v1533, %v1563
    %s1566 = sld [smem:[#allocation7 + $0xd]]
    %v1567 = vstv %s1566
    %v1568 = vmul.f32 %v1567, %v1558
    %v1569 = vmul.f32 %v1567, %v1559
    %v1570 = vadd.f32 %v1538, %v1568
    %v1571 = vadd.f32 %v1539, %v1569
    %s1572 = sld [smem:[#allocation7 + $0xe]]
    %v1573 = vstv %s1572
    %v1574 = vmul.f32 %v1573, %v1558
    %v1575 = vmul.f32 %v1573, %v1559
    %v1576 = vadd.f32 %v1544, %v1574
    %v1577 = vadd.f32 %v1545, %v1575
    %s1578 = sld [smem:[#allocation7 + $0xf]]
    %v1579 = vstv %s1578
    %v1580 = vmul.f32 %v1579, %v1558
    %v1581 = vmul.f32 %v1579, %v1559
    %v1582 = vadd.f32 %v1550, %v1580
    %v1583 = vadd.f32 %v1551, %v1581
    %1584 = vrot.lane.b32.xlu0 %v1448, 16
    %v1585 = vpop.permute.xlu0 %1584
    %1586 = vrot.lane.b32.xlu0 %v1449, 16
    %v1587 = vpop.permute.xlu0 %1586
    %v1588 = vsel %vm265, %v1585, %v1587
    %v1589 = vsel %vm265, %v1587, %v1585
    %v1590 = vsel %vm270, %v1589, 0.0
    %v1591 = vsel %vm271, %v1588, 0.0
    %s1592 = sld [smem:[#allocation7 + $0x10]]
    %v1593 = vstv %s1592
    %v1594 = vmul.f32 %v1593, %v1590
    %v1595 = vmul.f32 %v1593, %v1591
    %v1596 = vadd.f32 %v1564, %v1594
    %v1597 = vadd.f32 %v1565, %v1595
    %s1598 = sld [smem:[#allocation7 + $0x11]]
    %v1599 = vstv %s1598
    %v1600 = vmul.f32 %v1599, %v1590
    %v1601 = vmul.f32 %v1599, %v1591
    %v1602 = vadd.f32 %v1570, %v1600
    %v1603 = vadd.f32 %v1571, %v1601
    %s1604 = sld [smem:[#allocation7 + $0x12]]
    %v1605 = vstv %s1604
    %v1606 = vmul.f32 %v1605, %v1590
    %v1607 = vmul.f32 %v1605, %v1591
    %v1608 = vadd.f32 %v1576, %v1606
    %v1609 = vadd.f32 %v1577, %v1607
    %s1610 = sld [smem:[#allocation7 + $0x13]]
    %v1611 = vstv %s1610
    %v1612 = vmul.f32 %v1611, %v1590
    %v1613 = vmul.f32 %v1611, %v1591
    %v1614 = vadd.f32 %v1582, %v1612
    %v1615 = vadd.f32 %v1583, %v1613
    %1616 = vrot.lane.b32.xlu0 %v1450, 16
    %v1617 = vpop.permute.xlu0 %1616
    %1618 = vrot.lane.b32.xlu0 %v1451, 16
    %v1619 = vpop.permute.xlu0 %1618
    %v1620 = vsel %vm265, %v1617, %v1619
    %v1621 = vsel %vm265, %v1619, %v1617
    %v1622 = vsel %vm270, %v1621, 0.0
    %v1623 = vsel %vm271, %v1620, 0.0
    %s1624 = sld [smem:[#allocation7 + $0x14]]
    %v1625 = vstv %s1624
    %v1626 = vmul.f32 %v1625, %v1622
    %v1627 = vmul.f32 %v1625, %v1623
    %v1628 = vadd.f32 %v1596, %v1626
    %v1629 = vadd.f32 %v1597, %v1627
    %s1630 = sld [smem:[#allocation7 + $0x15]]
    %v1631 = vstv %s1630
    %v1632 = vmul.f32 %v1631, %v1622
    %v1633 = vmul.f32 %v1631, %v1623
    %v1634 = vadd.f32 %v1602, %v1632
    %v1635 = vadd.f32 %v1603, %v1633
    %s1636 = sld [smem:[#allocation7 + $0x16]]
    %v1637 = vstv %s1636
    %v1638 = vmul.f32 %v1637, %v1622
    %v1639 = vmul.f32 %v1637, %v1623
    %v1640 = vadd.f32 %v1608, %v1638
    %v1641 = vadd.f32 %v1609, %v1639
    %s1642 = sld [smem:[#allocation7 + $0x17]]
    %v1643 = vstv %s1642
    %v1644 = vmul.f32 %v1643, %v1622
    %v1645 = vmul.f32 %v1643, %v1623
    %v1646 = vadd.f32 %v1614, %v1644
    %v1647 = vadd.f32 %v1615, %v1645
    %1648 = vrot.lane.b32.xlu0 %v1452, 16
    %v1649 = vpop.permute.xlu0 %1648
    %1650 = vrot.lane.b32.xlu0 %v1453, 16
    %v1651 = vpop.permute.xlu0 %1650
    %v1652 = vsel %vm265, %v1649, %v1651
    %v1653 = vsel %vm265, %v1651, %v1649
    %v1654 = vsel %vm270, %v1653, 0.0
    %v1655 = vsel %vm271, %v1652, 0.0
    %s1656 = sld [smem:[#allocation7 + $0x18]]
    %v1657 = vstv %s1656
    %v1658 = vmul.f32 %v1657, %v1654
    %v1659 = vmul.f32 %v1657, %v1655
    %v1660 = vadd.f32 %v1628, %v1658
    %v1661 = vadd.f32 %v1629, %v1659
    %s1662 = sld [smem:[#allocation7 + $0x19]]
    %v1663 = vstv %s1662
    %v1664 = vmul.f32 %v1663, %v1654
    %v1665 = vmul.f32 %v1663, %v1655
    %v1666 = vadd.f32 %v1634, %v1664
    %v1667 = vadd.f32 %v1635, %v1665
    %s1668 = sld [smem:[#allocation7 + $0x1a]]
    %v1669 = vstv %s1668
    %v1670 = vmul.f32 %v1669, %v1654
    %v1671 = vmul.f32 %v1669, %v1655
    %v1672 = vadd.f32 %v1640, %v1670
    %v1673 = vadd.f32 %v1641, %v1671
    %s1674 = sld [smem:[#allocation7 + $0x1b]]
    %v1675 = vstv %s1674
    %v1676 = vmul.f32 %v1675, %v1654
    %v1677 = vmul.f32 %v1675, %v1655
    %v1678 = vadd.f32 %v1646, %v1676
    %v1679 = vadd.f32 %v1647, %v1677
    %1680 = vrot.lane.b32.xlu0 %v1454, 16
    %v1681 = vpop.permute.xlu0 %1680
    %1682 = vrot.lane.b32.xlu0 %v1455, 16
    %v1683 = vpop.permute.xlu0 %1682
    %v1684 = vsel %vm265, %v1681, %v1683
    %v1685 = vsel %vm265, %v1683, %v1681
    %v1686 = vsel %vm270, %v1685, 0.0
    %v1687 = vsel %vm271, %v1684, 0.0
    %s1688 = sld [smem:[#allocation7 + $0x1c]]
    %v1689 = vstv %s1688
    %v1690 = vmul.f32 %v1689, %v1686
    %v1691 = vmul.f32 %v1689, %v1687
    %v1692 = vadd.f32 %v1660, %v1690
    %v1693 = vadd.f32 %v1661, %v1691
    %s1694 = sld [smem:[#allocation7 + $0x1d]]
    %v1695 = vstv %s1694
    %v1696 = vmul.f32 %v1695, %v1686
    %v1697 = vmul.f32 %v1695, %v1687
    %v1698 = vadd.f32 %v1666, %v1696
    %v1699 = vadd.f32 %v1667, %v1697
    %s1700 = sld [smem:[#allocation7 + $0x1e]]
    %v1701 = vstv %s1700
    %v1702 = vmul.f32 %v1701, %v1686
    %v1703 = vmul.f32 %v1701, %v1687
    %v1704 = vadd.f32 %v1672, %v1702
    %v1705 = vadd.f32 %v1673, %v1703
    %s1706 = sld [smem:[#allocation7 + $0x1f]]
    %v1707 = vstv %s1706
    %v1708 = vmul.f32 %v1707, %v1686
    %v1709 = vmul.f32 %v1707, %v1687
    %v1710 = vadd.f32 %v1678, %v1708
    %v1711 = vadd.f32 %v1679, %v1709
    %1712 = vrot.lane.b32.xlu0 %v1448, 15
    %v1713 = vpop.permute.xlu0 %1712
    %1714 = vrot.lane.b32.xlu0 %v1449, 15
    %v1715 = vpop.permute.xlu0 %1714
    %v1716 = vsel %vm398, %v1713, %v1715
    %v1717 = vsel %vm398, %v1715, %v1713
    %v1718 = vsel %vm403, %v1717, 0.0
    %v1719 = vsel %vm404, %v1716, 0.0
    %s1720 = sld [smem:[#allocation7 + $0x20]]
    %v1721 = vstv %s1720
    %v1722 = vmul.f32 %v1721, %v1718
    %v1723 = vmul.f32 %v1721, %v1719
    %v1724 = vadd.f32 %v1692, %v1722
    %v1725 = vadd.f32 %v1693, %v1723
    %s1726 = sld [smem:[#allocation7 + $0x21]]
    %v1727 = vstv %s1726
    %v1728 = vmul.f32 %v1727, %v1718
    %v1729 = vmul.f32 %v1727, %v1719
    %v1730 = vadd.f32 %v1698, %v1728
    %v1731 = vadd.f32 %v1699, %v1729
    %s1732 = sld [smem:[#allocation7 + $0x22]]
    %v1733 = vstv %s1732
    %v1734 = vmul.f32 %v1733, %v1718
    %v1735 = vmul.f32 %v1733, %v1719
    %v1736 = vadd.f32 %v1704, %v1734
    %v1737 = vadd.f32 %v1705, %v1735
    %s1738 = sld [smem:[#allocation7 + $0x23]]
    %v1739 = vstv %s1738
    %v1740 = vmul.f32 %v1739, %v1718
    %v1741 = vmul.f32 %v1739, %v1719
    %v1742 = vadd.f32 %v1710, %v1740
    %v1743 = vadd.f32 %v1711, %v1741
    %1744 = vrot.lane.b32.xlu0 %v1450, 15
    %v1745 = vpop.permute.xlu0 %1744
    %1746 = vrot.lane.b32.xlu0 %v1451, 15
    %v1747 = vpop.permute.xlu0 %1746
    %v1748 = vsel %vm398, %v1745, %v1747
    %v1749 = vsel %vm398, %v1747, %v1745
    %v1750 = vsel %vm403, %v1749, 0.0
    %v1751 = vsel %vm404, %v1748, 0.0
    %s1752 = sld [smem:[#allocation7 + $0x24]]
    %v1753 = vstv %s1752
    %v1754 = vmul.f32 %v1753, %v1750
    %v1755 = vmul.f32 %v1753, %v1751
    %v1756 = vadd.f32 %v1724, %v1754
    %v1757 = vadd.f32 %v1725, %v1755
    %s1758 = sld [smem:[#allocation7 + $0x25]]
    %v1759 = vstv %s1758
    %v1760 = vmul.f32 %v1759, %v1750
    %v1761 = vmul.f32 %v1759, %v1751
    %v1762 = vadd.f32 %v1730, %v1760
    %v1763 = vadd.f32 %v1731, %v1761
    %s1764 = sld [smem:[#allocation7 + $0x26]]
    %v1765 = vstv %s1764
    %v1766 = vmul.f32 %v1765, %v1750
    %v1767 = vmul.f32 %v1765, %v1751
    %v1768 = vadd.f32 %v1736, %v1766
    %v1769 = vadd.f32 %v1737, %v1767
    %s1770 = sld [smem:[#allocation7 + $0x27]]
    %v1771 = vstv %s1770
    %v1772 = vmul.f32 %v1771, %v1750
    %v1773 = vmul.f32 %v1771, %v1751
    %v1774 = vadd.f32 %v1742, %v1772
    %v1775 = vadd.f32 %v1743, %v1773
    %1776 = vrot.lane.b32.xlu0 %v1452, 15
    %v1777 = vpop.permute.xlu0 %1776
    %1778 = vrot.lane.b32.xlu0 %v1453, 15
    %v1779 = vpop.permute.xlu0 %1778
    %v1780 = vsel %vm398, %v1777, %v1779
    %v1781 = vsel %vm398, %v1779, %v1777
    %v1782 = vsel %vm403, %v1781, 0.0
    %v1783 = vsel %vm404, %v1780, 0.0
    %s1784 = sld [smem:[#allocation7 + $0x28]]
    %v1785 = vstv %s1784
    %v1786 = vmul.f32 %v1785, %v1782
    %v1787 = vmul.f32 %v1785, %v1783
    %v1788 = vadd.f32 %v1756, %v1786
    %v1789 = vadd.f32 %v1757, %v1787
    %s1790 = sld [smem:[#allocation7 + $0x29]]
    %v1791 = vstv %s1790
    %v1792 = vmul.f32 %v1791, %v1782
    %v1793 = vmul.f32 %v1791, %v1783
    %v1794 = vadd.f32 %v1762, %v1792
    %v1795 = vadd.f32 %v1763, %v1793
    %s1796 = sld [smem:[#allocation7 + $0x2a]]
    %v1797 = vstv %s1796
    %v1798 = vmul.f32 %v1797, %v1782
    %v1799 = vmul.f32 %v1797, %v1783
    %v1800 = vadd.f32 %v1768, %v1798
    %v1801 = vadd.f32 %v1769, %v1799
    %s1802 = sld [smem:[#allocation7 + $0x2b]]
    %v1803 = vstv %s1802
    %v1804 = vmul.f32 %v1803, %v1782
    %v1805 = vmul.f32 %v1803, %v1783
    %v1806 = vadd.f32 %v1774, %v1804
    %v1807 = vadd.f32 %v1775, %v1805
    %1808 = vrot.lane.b32.xlu0 %v1454, 15
    %v1809 = vpop.permute.xlu0 %1808
    %1810 = vrot.lane.b32.xlu0 %v1455, 15
    %v1811 = vpop.permute.xlu0 %1810
    %v1812 = vsel %vm398, %v1809, %v1811
    %v1813 = vsel %vm398, %v1811, %v1809
    %v1814 = vsel %vm403, %v1813, 0.0
    %v1815 = vsel %vm404, %v1812, 0.0
    %s1816 = sld [smem:[#allocation7 + $0x2c]]
    %v1817 = vstv %s1816
    %v1818 = vmul.f32 %v1817, %v1814
    %v1819 = vmul.f32 %v1817, %v1815
    %v1820 = vadd.f32 %v1788, %v1818
    %v1821 = vadd.f32 %v1789, %v1819
    %s1822 = sld [smem:[#allocation7 + $0x2d]]
    %v1823 = vstv %s1822
    %v1824 = vmul.f32 %v1823, %v1814
    %v1825 = vmul.f32 %v1823, %v1815
    %v1826 = vadd.f32 %v1794, %v1824
    %v1827 = vadd.f32 %v1795, %v1825
    %s1828 = sld [smem:[#allocation7 + $0x2e]]
    %v1829 = vstv %s1828
    %v1830 = vmul.f32 %v1829, %v1814
    %v1831 = vmul.f32 %v1829, %v1815
    %v1832 = vadd.f32 %v1800, %v1830
    %v1833 = vadd.f32 %v1801, %v1831
    %s1834 = sld [smem:[#allocation7 + $0x2f]]
    %v1835 = vstv %s1834
    %v1836 = vmul.f32 %v1835, %v1814
    %v1837 = vmul.f32 %v1835, %v1815
    %v1838 = vadd.f32 %v1806, %v1836
    %v1839 = vadd.f32 %v1807, %v1837
    %1840 = vrot.lane.b32.xlu0 %v1448, 1
    %v1841 = vpop.permute.xlu0 %1840
    %1842 = vrot.lane.b32.xlu0 %v1449, 1
    %v1843 = vpop.permute.xlu0 %1842
    %v1844 = vsel %vm531, %v1841, %v1843
    %v1845 = vsel %vm531, %v1843, %v1841
    %v1846 = vsel %vm536, %v1845, 0.0
    %v1847 = vsel %vm537, %v1844, 0.0
    %s1848 = sld [smem:[#allocation7 + $0x30]]
    %v1849 = vstv %s1848
    %v1850 = vmul.f32 %v1849, %v1846
    %v1851 = vmul.f32 %v1849, %v1847
    %v1852 = vadd.f32 %v1820, %v1850
    %v1853 = vadd.f32 %v1821, %v1851
    %s1854 = sld [smem:[#allocation7 + $0x31]]
    %v1855 = vstv %s1854
    %v1856 = vmul.f32 %v1855, %v1846
    %v1857 = vmul.f32 %v1855, %v1847
    %v1858 = vadd.f32 %v1826, %v1856
    %v1859 = vadd.f32 %v1827, %v1857
    %s1860 = sld [smem:[#allocation7 + $0x32]]
    %v1861 = vstv %s1860
    %v1862 = vmul.f32 %v1861, %v1846
    %v1863 = vmul.f32 %v1861, %v1847
    %v1864 = vadd.f32 %v1832, %v1862
    %v1865 = vadd.f32 %v1833, %v1863
    %s1866 = sld [smem:[#allocation7 + $0x33]]
    %v1867 = vstv %s1866
    %v1868 = vmul.f32 %v1867, %v1846
    %v1869 = vmul.f32 %v1867, %v1847
    %v1870 = vadd.f32 %v1838, %v1868
    %v1871 = vadd.f32 %v1839, %v1869
    %1872 = vrot.lane.b32.xlu0 %v1450, 1
    %v1873 = vpop.permute.xlu0 %1872
    %1874 = vrot.lane.b32.xlu0 %v1451, 1
    %v1875 = vpop.permute.xlu0 %1874
    %v1876 = vsel %vm531, %v1873, %v1875
    %v1877 = vsel %vm531, %v1875, %v1873
    %v1878 = vsel %vm536, %v1877, 0.0
    %v1879 = vsel %vm537, %v1876, 0.0
    %s1880 = sld [smem:[#allocation7 + $0x34]]
    %v1881 = vstv %s1880
    %v1882 = vmul.f32 %v1881, %v1878
    %v1883 = vmul.f32 %v1881, %v1879
    %v1884 = vadd.f32 %v1852, %v1882
    %v1885 = vadd.f32 %v1853, %v1883
    %s1886 = sld [smem:[#allocation7 + $0x35]]
    %v1887 = vstv %s1886
    %v1888 = vmul.f32 %v1887, %v1878
    %v1889 = vmul.f32 %v1887, %v1879
    %v1890 = vadd.f32 %v1858, %v1888
    %v1891 = vadd.f32 %v1859, %v1889
    %s1892 = sld [smem:[#allocation7 + $0x36]]
    %v1893 = vstv %s1892
    %v1894 = vmul.f32 %v1893, %v1878
    %v1895 = vmul.f32 %v1893, %v1879
    %v1896 = vadd.f32 %v1864, %v1894
    %v1897 = vadd.f32 %v1865, %v1895
    %s1898 = sld [smem:[#allocation7 + $0x37]]
    %v1899 = vstv %s1898
    %v1900 = vmul.f32 %v1899, %v1878
    %v1901 = vmul.f32 %v1899, %v1879
    %v1902 = vadd.f32 %v1870, %v1900
    %v1903 = vadd.f32 %v1871, %v1901
    %1904 = vrot.lane.b32.xlu0 %v1452, 1
    %v1905 = vpop.permute.xlu0 %1904
    %1906 = vrot.lane.b32.xlu0 %v1453, 1
    %v1907 = vpop.permute.xlu0 %1906
    %v1908 = vsel %vm531, %v1905, %v1907
    %v1909 = vsel %vm531, %v1907, %v1905
    %v1910 = vsel %vm536, %v1909, 0.0
    %v1911 = vsel %vm537, %v1908, 0.0
    %s1912 = sld [smem:[#allocation7 + $0x38]]
    %v1913 = vstv %s1912
    %v1914 = vmul.f32 %v1913, %v1910
    %v1915 = vmul.f32 %v1913, %v1911
    %v1916 = vadd.f32 %v1884, %v1914
    %v1917 = vadd.f32 %v1885, %v1915
    %s1918 = sld [smem:[#allocation7 + $0x39]]
    %v1919 = vstv %s1918
    %v1920 = vmul.f32 %v1919, %v1910
    %v1921 = vmul.f32 %v1919, %v1911
    %v1922 = vadd.f32 %v1890, %v1920
    %v1923 = vadd.f32 %v1891, %v1921
    %s1924 = sld [smem:[#allocation7 + $0x3a]]
    %v1925 = vstv %s1924
    %v1926 = vmul.f32 %v1925, %v1910
    %v1927 = vmul.f32 %v1925, %v1911
    %v1928 = vadd.f32 %v1896, %v1926
    %v1929 = vadd.f32 %v1897, %v1927
    %s1930 = sld [smem:[#allocation7 + $0x3b]]
    %v1931 = vstv %s1930
    %v1932 = vmul.f32 %v1931, %v1910
    %v1933 = vmul.f32 %v1931, %v1911
    %v1934 = vadd.f32 %v1902, %v1932
    %v1935 = vadd.f32 %v1903, %v1933
    %1936 = vrot.lane.b32.xlu0 %v1454, 1
    %v1937 = vpop.permute.xlu0 %1936
    %1938 = vrot.lane.b32.xlu0 %v1455, 1
    %v1939 = vpop.permute.xlu0 %1938
    %v1940 = vsel %vm531, %v1937, %v1939
    %v1941 = vsel %vm531, %v1939, %v1937
    %v1942 = vsel %vm536, %v1941, 0.0
    %v1943 = vsel %vm537, %v1940, 0.0
    %s1944 = sld [smem:[#allocation7 + $0x3c]]
    %v1945 = vstv %s1944
    %v1946 = vmul.f32 %v1945, %v1942
    %v1947 = vmul.f32 %v1945, %v1943
    %v1948 = vadd.f32 %v1916, %v1946
    %v1949 = vadd.f32 %v1917, %v1947
    %s1950 = sld [smem:[#allocation7 + $0x3d]]
    %v1951 = vstv %s1950
    %v1952 = vmul.f32 %v1951, %v1942
    %v1953 = vmul.f32 %v1951, %v1943
    %v1954 = vadd.f32 %v1922, %v1952
    %v1955 = vadd.f32 %v1923, %v1953
    %s1956 = sld [smem:[#allocation7 + $0x3e]]
    %v1957 = vstv %s1956
    %v1958 = vmul.f32 %v1957, %v1942
    %v1959 = vmul.f32 %v1957, %v1943
    %v1960 = vadd.f32 %v1928, %v1958
    %v1961 = vadd.f32 %v1929, %v1959
    %s1962 = sld [smem:[#allocation7 + $0x3f]]
    %v1963 = vstv %s1962
    %v1964 = vmul.f32 %v1963, %v1942
    %v1965 = vmul.f32 %v1963, %v1943
    %v1966 = vadd.f32 %v1934, %v1964
    %v1967 = vadd.f32 %v1935, %v1965
    %s1968 = sld [smem:[#allocation7 + $0x40]]
    %v1969 = vstv %s1968
    %v1970 = vmul.f32 %v1969, %v1448
    %v1971 = vmul.f32 %v1969, %v1449
    %v1972 = vadd.f32 %v1948, %v1970
    %v1973 = vadd.f32 %v1949, %v1971
    %s1974 = sld [smem:[#allocation7 + $0x41]]
    %v1975 = vstv %s1974
    %v1976 = vmul.f32 %v1975, %v1448
    %v1977 = vmul.f32 %v1975, %v1449
    %v1978 = vadd.f32 %v1954, %v1976
    %v1979 = vadd.f32 %v1955, %v1977
    %s1980 = sld [smem:[#allocation7 + $0x42]]
    %v1981 = vstv %s1980
    %v1982 = vmul.f32 %v1981, %v1448
    %v1983 = vmul.f32 %v1981, %v1449
    %v1984 = vadd.f32 %v1960, %v1982
    %v1985 = vadd.f32 %v1961, %v1983
    %s1986 = sld [smem:[#allocation7 + $0x43]]
    %v1987 = vstv %s1986
    %v1988 = vmul.f32 %v1987, %v1448
    %v1989 = vmul.f32 %v1987, %v1449
    %v1990 = vadd.f32 %v1966, %v1988
    %v1991 = vadd.f32 %v1967, %v1989
    %s1992 = sld [smem:[#allocation7 + $0x44]]
    %v1993 = vstv %s1992
    %v1994 = vmul.f32 %v1993, %v1450
    %v1995 = vmul.f32 %v1993, %v1451
    %v1996 = vadd.f32 %v1972, %v1994
    %v1997 = vadd.f32 %v1973, %v1995
    %s1998 = sld [smem:[#allocation7 + $0x45]]
    %v1999 = vstv %s1998
    %v2000 = vmul.f32 %v1999, %v1450
    %v2001 = vmul.f32 %v1999, %v1451
    %v2002 = vadd.f32 %v1978, %v2000
    %v2003 = vadd.f32 %v1979, %v2001
    %s2004 = sld [smem:[#allocation7 + $0x46]]
    %v2005 = vstv %s2004
    %v2006 = vmul.f32 %v2005, %v1450
    %v2007 = vmul.f32 %v2005, %v1451
    %v2008 = vadd.f32 %v1984, %v2006
    %v2009 = vadd.f32 %v1985, %v2007
    %s2010 = sld [smem:[#allocation7 + $0x47]]
    %v2011 = vstv %s2010
    %v2012 = vmul.f32 %v2011, %v1450
    %v2013 = vmul.f32 %v2011, %v1451
    %v2014 = vadd.f32 %v1990, %v2012
    %v2015 = vadd.f32 %v1991, %v2013
    %s2016 = sld [smem:[#allocation7 + $0x48]]
    %v2017 = vstv %s2016
    %v2018 = vmul.f32 %v2017, %v1452
    %v2019 = vmul.f32 %v2017, %v1453
    %v2020 = vadd.f32 %v1996, %v2018
    %v2021 = vadd.f32 %v1997, %v2019
    %s2022 = sld [smem:[#allocation7 + $0x49]]
    %v2023 = vstv %s2022
    %v2024 = vmul.f32 %v2023, %v1452
    %v2025 = vmul.f32 %v2023, %v1453
    %v2026 = vadd.f32 %v2002, %v2024
    %v2027 = vadd.f32 %v2003, %v2025
    %s2028 = sld [smem:[#allocation7 + $0x4a]]
    %v2029 = vstv %s2028
    %v2030 = vmul.f32 %v2029, %v1452
    %v2031 = vmul.f32 %v2029, %v1453
    %v2032 = vadd.f32 %v2008, %v2030
    %v2033 = vadd.f32 %v2009, %v2031
    %s2034 = sld [smem:[#allocation7 + $0x4b]]
    %v2035 = vstv %s2034
    %v2036 = vmul.f32 %v2035, %v1452
    %v2037 = vmul.f32 %v2035, %v1453
    %v2038 = vadd.f32 %v2014, %v2036
    %v2039 = vadd.f32 %v2015, %v2037
    %s2040 = sld [smem:[#allocation7 + $0x4c]]
    %v2041 = vstv %s2040
    %v2042 = vmul.f32 %v2041, %v1454
    %v2043 = vmul.f32 %v2041, %v1455
    %v2044 = vadd.f32 %v2020, %v2042
    %v2045 = vadd.f32 %v2021, %v2043
    %s2046 = sld [smem:[#allocation7 + $0x4d]]
    %v2047 = vstv %s2046
    %v2048 = vmul.f32 %v2047, %v1454
    %v2049 = vmul.f32 %v2047, %v1455
    %v2050 = vadd.f32 %v2026, %v2048
    %v2051 = vadd.f32 %v2027, %v2049
    %s2052 = sld [smem:[#allocation7 + $0x4e]]
    %v2053 = vstv %s2052
    %v2054 = vmul.f32 %v2053, %v1454
    %v2055 = vmul.f32 %v2053, %v1455
    %v2056 = vadd.f32 %v2032, %v2054
    %v2057 = vadd.f32 %v2033, %v2055
    %s2058 = sld [smem:[#allocation7 + $0x4f]]
    %v2059 = vstv %s2058
    %v2060 = vmul.f32 %v2059, %v1454
    %v2061 = vmul.f32 %v2059, %v1455
    %v2062 = vadd.f32 %v2038, %v2060
    %v2063 = vadd.f32 %v2039, %v2061
    %2064 = vrot.lane.b32.xlu0 %v1448, 127
    %v2065 = vpop.permute.xlu0 %2064
    %2066 = vrot.lane.b32.xlu0 %v1449, 127
    %v2067 = vpop.permute.xlu0 %2066
    %v2068 = vsel %vm920, %v2065, %v2067
    %v2069 = vsel %vm920, %v2067, %v2065
    %v2070 = vsel %vm925, %v2068, 0.0
    %v2071 = vsel %vm926, %v2069, 0.0
    %s2072 = sld [smem:[#allocation7 + $0x50]]
    %v2073 = vstv %s2072
    %v2074 = vmul.f32 %v2073, %v2070
    %v2075 = vmul.f32 %v2073, %v2071
    %v2076 = vadd.f32 %v2044, %v2074
    %v2077 = vadd.f32 %v2045, %v2075
    %s2078 = sld [smem:[#allocation7 + $0x51]]
    %v2079 = vstv %s2078
    %v2080 = vmul.f32 %v2079, %v2070
    %v2081 = vmul.f32 %v2079, %v2071
    %v2082 = vadd.f32 %v2050, %v2080
    %v2083 = vadd.f32 %v2051, %v2081
    %s2084 = sld [smem:[#allocation7 + $0x52]]
    %v2085 = vstv %s2084
    %v2086 = vmul.f32 %v2085, %v2070
    %v2087 = vmul.f32 %v2085, %v2071
    %v2088 = vadd.f32 %v2056, %v2086
    %v2089 = vadd.f32 %v2057, %v2087
    %s2090 = sld [smem:[#allocation7 + $0x53]]
    %v2091 = vstv %s2090
    %v2092 = vmul.f32 %v2091, %v2070
    %v2093 = vmul.f32 %v2091, %v2071
    %v2094 = vadd.f32 %v2062, %v2092
    %v2095 = vadd.f32 %v2063, %v2093
    %2096 = vrot.lane.b32.xlu0 %v1450, 127
    %v2097 = vpop.permute.xlu0 %2096
    %2098 = vrot.lane.b32.xlu0 %v1451, 127
    %v2099 = vpop.permute.xlu0 %2098
    %v2100 = vsel %vm920, %v2097, %v2099
    %v2101 = vsel %vm920, %v2099, %v2097
    %v2102 = vsel %vm925, %v2100, 0.0
    %v2103 = vsel %vm926, %v2101, 0.0
    %s2104 = sld [smem:[#allocation7 + $0x54]]
    %v2105 = vstv %s2104
    %v2106 = vmul.f32 %v2105, %v2102
    %v2107 = vmul.f32 %v2105, %v2103
    %v2108 = vadd.f32 %v2076, %v2106
    %v2109 = vadd.f32 %v2077, %v2107
    %s2110 = sld [smem:[#allocation7 + $0x55]]
    %v2111 = vstv %s2110
    %v2112 = vmul.f32 %v2111, %v2102
    %v2113 = vmul.f32 %v2111, %v2103
    %v2114 = vadd.f32 %v2082, %v2112
    %v2115 = vadd.f32 %v2083, %v2113
    %s2116 = sld [smem:[#allocation7 + $0x56]]
    %v2117 = vstv %s2116
    %v2118 = vmul.f32 %v2117, %v2102
    %v2119 = vmul.f32 %v2117, %v2103
    %v2120 = vadd.f32 %v2088, %v2118
    %v2121 = vadd.f32 %v2089, %v2119
    %s2122 = sld [smem:[#allocation7 + $0x57]]
    %v2123 = vstv %s2122
    %v2124 = vmul.f32 %v2123, %v2102
    %v2125 = vmul.f32 %v2123, %v2103
    %v2126 = vadd.f32 %v2094, %v2124
    %v2127 = vadd.f32 %v2095, %v2125
    %2128 = vrot.lane.b32.xlu0 %v1452, 127
    %v2129 = vpop.permute.xlu0 %2128
    %2130 = vrot.lane.b32.xlu0 %v1453, 127
    %v2131 = vpop.permute.xlu0 %2130
    %v2132 = vsel %vm920, %v2129, %v2131
    %v2133 = vsel %vm920, %v2131, %v2129
    %v2134 = vsel %vm925, %v2132, 0.0
    %v2135 = vsel %vm926, %v2133, 0.0
    %s2136 = sld [smem:[#allocation7 + $0x58]]
    %v2137 = vstv %s2136
    %v2138 = vmul.f32 %v2137, %v2134
    %v2139 = vmul.f32 %v2137, %v2135
    %v2140 = vadd.f32 %v2108, %v2138
    %v2141 = vadd.f32 %v2109, %v2139
    %s2142 = sld [smem:[#allocation7 + $0x59]]
    %v2143 = vstv %s2142
    %v2144 = vmul.f32 %v2143, %v2134
    %v2145 = vmul.f32 %v2143, %v2135
    %v2146 = vadd.f32 %v2114, %v2144
    %v2147 = vadd.f32 %v2115, %v2145
    %s2148 = sld [smem:[#allocation7 + $0x5a]]
    %v2149 = vstv %s2148
    %v2150 = vmul.f32 %v2149, %v2134
    %v2151 = vmul.f32 %v2149, %v2135
    %v2152 = vadd.f32 %v2120, %v2150
    %v2153 = vadd.f32 %v2121, %v2151
    %s2154 = sld [smem:[#allocation7 + $0x5b]]
    %v2155 = vstv %s2154
    %v2156 = vmul.f32 %v2155, %v2134
    %v2157 = vmul.f32 %v2155, %v2135
    %v2158 = vadd.f32 %v2126, %v2156
    %v2159 = vadd.f32 %v2127, %v2157
    %2160 = vrot.lane.b32.xlu0 %v1454, 127
    %v2161 = vpop.permute.xlu0 %2160
    %2162 = vrot.lane.b32.xlu0 %v1455, 127
    %v2163 = vpop.permute.xlu0 %2162
    %v2164 = vsel %vm920, %v2161, %v2163
    %v2165 = vsel %vm920, %v2163, %v2161
    %v2166 = vsel %vm925, %v2164, 0.0
    %v2167 = vsel %vm926, %v2165, 0.0
    %s2168 = sld [smem:[#allocation7 + $0x5c]]
    %v2169 = vstv %s2168
    %v2170 = vmul.f32 %v2169, %v2166
    %v2171 = vmul.f32 %v2169, %v2167
    %v2172 = vadd.f32 %v2140, %v2170
    %v2173 = vadd.f32 %v2141, %v2171
    %s2174 = sld [smem:[#allocation7 + $0x5d]]
    %v2175 = vstv %s2174
    %v2176 = vmul.f32 %v2175, %v2166
    %v2177 = vmul.f32 %v2175, %v2167
    %v2178 = vadd.f32 %v2146, %v2176
    %v2179 = vadd.f32 %v2147, %v2177
    %s2180 = sld [smem:[#allocation7 + $0x5e]]
    %v2181 = vstv %s2180
    %v2182 = vmul.f32 %v2181, %v2166
    %v2183 = vmul.f32 %v2181, %v2167
    %v2184 = vadd.f32 %v2152, %v2182
    %v2185 = vadd.f32 %v2153, %v2183
    %s2186 = sld [smem:[#allocation7 + $0x5f]]
    %v2187 = vstv %s2186
    %v2188 = vmul.f32 %v2187, %v2166
    %v2189 = vmul.f32 %v2187, %v2167
    %v2190 = vadd.f32 %v2158, %v2188
    %v2191 = vadd.f32 %v2159, %v2189
    %2192 = vrot.lane.b32.xlu0 %v1448, 113
    %v2193 = vpop.permute.xlu0 %2192
    %2194 = vrot.lane.b32.xlu0 %v1449, 113
    %v2195 = vpop.permute.xlu0 %2194
    %v2196 = vsel %vm1053, %v2193, %v2195
    %v2197 = vsel %vm1053, %v2195, %v2193
    %v2198 = vsel %vm1058, %v2196, 0.0
    %v2199 = vsel %vm1059, %v2197, 0.0
    %s2200 = sld [smem:[#allocation7 + $0x60]]
    %v2201 = vstv %s2200
    %v2202 = vmul.f32 %v2201, %v2198
    %v2203 = vmul.f32 %v2201, %v2199
    %v2204 = vadd.f32 %v2172, %v2202
    %v2205 = vadd.f32 %v2173, %v2203
    %s2206 = sld [smem:[#allocation7 + $0x61]]
    %v2207 = vstv %s2206
    %v2208 = vmul.f32 %v2207, %v2198
    %v2209 = vmul.f32 %v2207, %v2199
    %v2210 = vadd.f32 %v2178, %v2208
    %v2211 = vadd.f32 %v2179, %v2209
    %s2212 = sld [smem:[#allocation7 + $0x62]]
    %v2213 = vstv %s2212
    %v2214 = vmul.f32 %v2213, %v2198
    %v2215 = vmul.f32 %v2213, %v2199
    %v2216 = vadd.f32 %v2184, %v2214
    %v2217 = vadd.f32 %v2185, %v2215
    %s2218 = sld [smem:[#allocation7 + $0x63]]
    %v2219 = vstv %s2218
    %v2220 = vmul.f32 %v2219, %v2198
    %v2221 = vmul.f32 %v2219, %v2199
    %v2222 = vadd.f32 %v2190, %v2220
    %v2223 = vadd.f32 %v2191, %v2221
    %2224 = vrot.lane.b32.xlu0 %v1450, 113
    %v2225 = vpop.permute.xlu0 %2224
    %2226 = vrot.lane.b32.xlu0 %v1451, 113
    %v2227 = vpop.permute.xlu0 %2226
    %v2228 = vsel %vm1053, %v2225, %v2227
    %v2229 = vsel %vm1053, %v2227, %v2225
    %v2230 = vsel %vm1058, %v2228, 0.0
    %v2231 = vsel %vm1059, %v2229, 0.0
    %s2232 = sld [smem:[#allocation7 + $0x64]]
    %v2233 = vstv %s2232
    %v2234 = vmul.f32 %v2233, %v2230
    %v2235 = vmul.f32 %v2233, %v2231
    %v2236 = vadd.f32 %v2204, %v2234
    %v2237 = vadd.f32 %v2205, %v2235
    %s2238 = sld [smem:[#allocation7 + $0x65]]
    %v2239 = vstv %s2238
    %v2240 = vmul.f32 %v2239, %v2230
    %v2241 = vmul.f32 %v2239, %v2231
    %v2242 = vadd.f32 %v2210, %v2240
    %v2243 = vadd.f32 %v2211, %v2241
    %s2244 = sld [smem:[#allocation7 + $0x66]]
    %v2245 = vstv %s2244
    %v2246 = vmul.f32 %v2245, %v2230
    %v2247 = vmul.f32 %v2245, %v2231
    %v2248 = vadd.f32 %v2216, %v2246
    %v2249 = vadd.f32 %v2217, %v2247
    %s2250 = sld [smem:[#allocation7 + $0x67]]
    %v2251 = vstv %s2250
    %v2252 = vmul.f32 %v2251, %v2230
    %v2253 = vmul.f32 %v2251, %v2231
    %v2254 = vadd.f32 %v2222, %v2252
    %v2255 = vadd.f32 %v2223, %v2253
    %2256 = vrot.lane.b32.xlu0 %v1452, 113
    %v2257 = vpop.permute.xlu0 %2256
    %2258 = vrot.lane.b32.xlu0 %v1453, 113
    %v2259 = vpop.permute.xlu0 %2258
    %v2260 = vsel %vm1053, %v2257, %v2259
    %v2261 = vsel %vm1053, %v2259, %v2257
    %v2262 = vsel %vm1058, %v2260, 0.0
    %v2263 = vsel %vm1059, %v2261, 0.0
    %s2264 = sld [smem:[#allocation7 + $0x68]]
    %v2265 = vstv %s2264
    %v2266 = vmul.f32 %v2265, %v2262
    %v2267 = vmul.f32 %v2265, %v2263
    %v2268 = vadd.f32 %v2236, %v2266
    %v2269 = vadd.f32 %v2237, %v2267
    %s2270 = sld [smem:[#allocation7 + $0x69]]
    %v2271 = vstv %s2270
    %v2272 = vmul.f32 %v2271, %v2262
    %v2273 = vmul.f32 %v2271, %v2263
    %v2274 = vadd.f32 %v2242, %v2272
    %v2275 = vadd.f32 %v2243, %v2273
    %s2276 = sld [smem:[#allocation7 + $0x6a]]
    %v2277 = vstv %s2276
    %v2278 = vmul.f32 %v2277, %v2262
    %v2279 = vmul.f32 %v2277, %v2263
    %v2280 = vadd.f32 %v2248, %v2278
    %v2281 = vadd.f32 %v2249, %v2279
    %s2282 = sld [smem:[#allocation7 + $0x6b]]
    %v2283 = vstv %s2282
    %v2284 = vmul.f32 %v2283, %v2262
    %v2285 = vmul.f32 %v2283, %v2263
    %v2286 = vadd.f32 %v2254, %v2284
    %v2287 = vadd.f32 %v2255, %v2285
    %2288 = vrot.lane.b32.xlu0 %v1454, 113
    %v2289 = vpop.permute.xlu0 %2288
    %2290 = vrot.lane.b32.xlu0 %v1455, 113
    %v2291 = vpop.permute.xlu0 %2290
    %v2292 = vsel %vm1053, %v2289, %v2291
    %v2293 = vsel %vm1053, %v2291, %v2289
    %v2294 = vsel %vm1058, %v2292, 0.0
    %v2295 = vsel %vm1059, %v2293, 0.0
    %s2296 = sld [smem:[#allocation7 + $0x6c]]
    %v2297 = vstv %s2296
    %v2298 = vmul.f32 %v2297, %v2294
    %v2299 = vmul.f32 %v2297, %v2295
    %v2300 = vadd.f32 %v2268, %v2298
    %v2301 = vadd.f32 %v2269, %v2299
    %s2302 = sld [smem:[#allocation7 + $0x6d]]
    %v2303 = vstv %s2302
    %v2304 = vmul.f32 %v2303, %v2294
    %v2305 = vmul.f32 %v2303, %v2295
    %v2306 = vadd.f32 %v2274, %v2304
    %v2307 = vadd.f32 %v2275, %v2305
    %s2308 = sld [smem:[#allocation7 + $0x6e]]
    %v2309 = vstv %s2308
    %v2310 = vmul.f32 %v2309, %v2294
    %v2311 = vmul.f32 %v2309, %v2295
    %v2312 = vadd.f32 %v2280, %v2310
    %v2313 = vadd.f32 %v2281, %v2311
    %s2314 = sld [smem:[#allocation7 + $0x6f]]
    %v2315 = vstv %s2314
    %v2316 = vmul.f32 %v2315, %v2294
    %v2317 = vmul.f32 %v2315, %v2295
    %v2318 = vadd.f32 %v2286, %v2316
    %v2319 = vadd.f32 %v2287, %v2317
    %2320 = vrot.lane.b32.xlu0 %v1448, 112
    %v2321 = vpop.permute.xlu0 %2320
    %2322 = vrot.lane.b32.xlu0 %v1449, 112
    %v2323 = vpop.permute.xlu0 %2322
    %v2324 = vsel %vm1186, %v2321, %v2323
    %v2325 = vsel %vm1186, %v2323, %v2321
    %v2326 = vsel %vm1191, %v2324, 0.0
    %v2327 = vsel %vm1192, %v2325, 0.0
    %s2328 = sld [smem:[#allocation7 + $0x70]]
    %v2329 = vstv %s2328
    %v2330 = vmul.f32 %v2329, %v2326
    %v2331 = vmul.f32 %v2329, %v2327
    %v2332 = vadd.f32 %v2300, %v2330
    %v2333 = vadd.f32 %v2301, %v2331
    %s2334 = sld [smem:[#allocation7 + $0x71]]
    %v2335 = vstv %s2334
    %v2336 = vmul.f32 %v2335, %v2326
    %v2337 = vmul.f32 %v2335, %v2327
    %v2338 = vadd.f32 %v2306, %v2336
    %v2339 = vadd.f32 %v2307, %v2337
    %s2340 = sld [smem:[#allocation7 + $0x72]]
    %v2341 = vstv %s2340
    %v2342 = vmul.f32 %v2341, %v2326
    %v2343 = vmul.f32 %v2341, %v2327
    %v2344 = vadd.f32 %v2312, %v2342
    %v2345 = vadd.f32 %v2313, %v2343
    %s2346 = sld [smem:[#allocation7 + $0x73]]
    %v2347 = vstv %s2346
    %v2348 = vmul.f32 %v2347, %v2326
    %v2349 = vmul.f32 %v2347, %v2327
    %v2350 = vadd.f32 %v2318, %v2348
    %v2351 = vadd.f32 %v2319, %v2349
    %2352 = vrot.lane.b32.xlu0 %v1450, 112
    %v2353 = vpop.permute.xlu0 %2352
    %2354 = vrot.lane.b32.xlu0 %v1451, 112
    %v2355 = vpop.permute.xlu0 %2354
    %v2356 = vsel %vm1186, %v2353, %v2355
    %v2357 = vsel %vm1186, %v2355, %v2353
    %v2358 = vsel %vm1191, %v2356, 0.0
    %v2359 = vsel %vm1192, %v2357, 0.0
    %s2360 = sld [smem:[#allocation7 + $0x74]]
    %v2361 = vstv %s2360
    %v2362 = vmul.f32 %v2361, %v2358
    %v2363 = vmul.f32 %v2361, %v2359
    %v2364 = vadd.f32 %v2332, %v2362
    %v2365 = vadd.f32 %v2333, %v2363
    %s2366 = sld [smem:[#allocation7 + $0x75]]
    %v2367 = vstv %s2366
    %v2368 = vmul.f32 %v2367, %v2358
    %v2369 = vmul.f32 %v2367, %v2359
    %v2370 = vadd.f32 %v2338, %v2368
    %v2371 = vadd.f32 %v2339, %v2369
    %s2372 = sld [smem:[#allocation7 + $0x76]]
    %v2373 = vstv %s2372
    %v2374 = vmul.f32 %v2373, %v2358
    %v2375 = vmul.f32 %v2373, %v2359
    %v2376 = vadd.f32 %v2344, %v2374
    %v2377 = vadd.f32 %v2345, %v2375
    %s2378 = sld [smem:[#allocation7 + $0x77]]
    %v2379 = vstv %s2378
    %v2380 = vmul.f32 %v2379, %v2358
    %v2381 = vmul.f32 %v2379, %v2359
    %v2382 = vadd.f32 %v2350, %v2380
    %v2383 = vadd.f32 %v2351, %v2381
    %2384 = vrot.lane.b32.xlu0 %v1452, 112
    %v2385 = vpop.permute.xlu0 %2384
    %2386 = vrot.lane.b32.xlu0 %v1453, 112
    %v2387 = vpop.permute.xlu0 %2386
    %v2388 = vsel %vm1186, %v2385, %v2387
    %v2389 = vsel %vm1186, %v2387, %v2385
    %v2390 = vsel %vm1191, %v2388, 0.0
    %v2391 = vsel %vm1192, %v2389, 0.0
    %s2392 = sld [smem:[#allocation7 + $0x78]]
    %v2393 = vstv %s2392
    %v2394 = vmul.f32 %v2393, %v2390
    %v2395 = vmul.f32 %v2393, %v2391
    %v2396 = vadd.f32 %v2364, %v2394
    %v2397 = vadd.f32 %v2365, %v2395
    %s2398 = sld [smem:[#allocation7 + $0x79]]
    %v2399 = vstv %s2398
    %v2400 = vmul.f32 %v2399, %v2390
    %v2401 = vmul.f32 %v2399, %v2391
    %v2402 = vadd.f32 %v2370, %v2400
    %v2403 = vadd.f32 %v2371, %v2401
    %s2404 = sld [smem:[#allocation7 + $0x7a]]
    %v2405 = vstv %s2404
    %v2406 = vmul.f32 %v2405, %v2390
    %v2407 = vmul.f32 %v2405, %v2391
    %v2408 = vadd.f32 %v2376, %v2406
    %v2409 = vadd.f32 %v2377, %v2407
    %s2410 = sld [smem:[#allocation7 + $0x7b]]
    %v2411 = vstv %s2410
    %v2412 = vmul.f32 %v2411, %v2390
    %v2413 = vmul.f32 %v2411, %v2391
    %v2414 = vadd.f32 %v2382, %v2412
    %v2415 = vadd.f32 %v2383, %v2413
    %2416 = vrot.lane.b32.xlu0 %v1454, 112
    %v2417 = vpop.permute.xlu0 %2416
    %2418 = vrot.lane.b32.xlu0 %v1455, 112
    %v2419 = vpop.permute.xlu0 %2418
    %v2420 = vsel %vm1186, %v2417, %v2419
    %v2421 = vsel %vm1186, %v2419, %v2417
    %v2422 = vsel %vm1191, %v2420, 0.0
    %v2423 = vsel %vm1192, %v2421, 0.0
    %s2424 = sld [smem:[#allocation7 + $0x7c]]
    %v2425 = vstv %s2424
    %v2426 = vmul.f32 %v2425, %v2422
    %v2427 = vmul.f32 %v2425, %v2423
    %v2428 = vadd.f32 %v2396, %v2426
    %v2429 = vadd.f32 %v2397, %v2427
    %s2430 = sld [smem:[#allocation7 + $0x7d]]
    %v2431 = vstv %s2430
    %v2432 = vmul.f32 %v2431, %v2422
    %v2433 = vmul.f32 %v2431, %v2423
    %v2434 = vadd.f32 %v2402, %v2432
    %v2435 = vadd.f32 %v2403, %v2433
    %s2436 = sld [smem:[#allocation7 + $0x7e]]
    %v2437 = vstv %s2436
    %v2438 = vmul.f32 %v2437, %v2422
    %v2439 = vmul.f32 %v2437, %v2423
    %v2440 = vadd.f32 %v2408, %v2438
    %v2441 = vadd.f32 %v2409, %v2439
    %s2442 = sld [smem:[#allocation7 + $0x7f]]
    %v2443 = vstv %s2442
    %v2444 = vmul.f32 %v2443, %v2422
    %v2445 = vmul.f32 %v2443, %v2423
    %v2446 = vadd.f32 %v2414, %v2444
    %v2447 = vadd.f32 %v2415, %v2445
    %2448 = vrot.lane.b32.xlu0 %v1448, 111
    %v2449 = vpop.permute.xlu0 %2448
    %2450 = vrot.lane.b32.xlu0 %v1449, 111
    %v2451 = vpop.permute.xlu0 %2450
    %v2452 = vsel %vm1319, %v2449, %v2451
    %v2453 = vsel %vm1319, %v2451, %v2449
    %v2454 = vsel %vm1324, %v2452, 0.0
    %v2455 = vsel %vm1325, %v2453, 0.0
    %s2456 = sld [smem:[#allocation7 + $0x80]]
    %v2457 = vstv %s2456
    %v2458 = vmul.f32 %v2457, %v2454
    %v2459 = vmul.f32 %v2457, %v2455
    %v2460 = vadd.f32 %v2428, %v2458
    %v2461 = vadd.f32 %v2429, %v2459
    %s2462 = sld [smem:[#allocation7 + $0x81]]
    %v2463 = vstv %s2462
    %v2464 = vmul.f32 %v2463, %v2454
    %v2465 = vmul.f32 %v2463, %v2455
    %v2466 = vadd.f32 %v2434, %v2464
    %v2467 = vadd.f32 %v2435, %v2465
    %s2468 = sld [smem:[#allocation7 + $0x82]]
    %v2469 = vstv %s2468
    %v2470 = vmul.f32 %v2469, %v2454
    %v2471 = vmul.f32 %v2469, %v2455
    %v2472 = vadd.f32 %v2440, %v2470
    %v2473 = vadd.f32 %v2441, %v2471
    %s2474 = sld [smem:[#allocation7 + $0x83]]
    %v2475 = vstv %s2474
    %v2476 = vmul.f32 %v2475, %v2454
    %v2477 = vmul.f32 %v2475, %v2455
    %v2478 = vadd.f32 %v2446, %v2476
    %v2479 = vadd.f32 %v2447, %v2477
    %2480 = vrot.lane.b32.xlu0 %v1450, 111
    %v2481 = vpop.permute.xlu0 %2480
    %2482 = vrot.lane.b32.xlu0 %v1451, 111
    %v2483 = vpop.permute.xlu0 %2482
    %v2484 = vsel %vm1319, %v2481, %v2483
    %v2485 = vsel %vm1319, %v2483, %v2481
    %v2486 = vsel %vm1324, %v2484, 0.0
    %v2487 = vsel %vm1325, %v2485, 0.0
    %s2488 = sld [smem:[#allocation7 + $0x84]]
    %v2489 = vstv %s2488
    %v2490 = vmul.f32 %v2489, %v2486
    %v2491 = vmul.f32 %v2489, %v2487
    %v2492 = vadd.f32 %v2460, %v2490
    %v2493 = vadd.f32 %v2461, %v2491
    %s2494 = sld [smem:[#allocation7 + $0x85]]
    %v2495 = vstv %s2494
    %v2496 = vmul.f32 %v2495, %v2486
    %v2497 = vmul.f32 %v2495, %v2487
    %v2498 = vadd.f32 %v2466, %v2496
    %v2499 = vadd.f32 %v2467, %v2497
    %s2500 = sld [smem:[#allocation7 + $0x86]]
    %v2501 = vstv %s2500
    %v2502 = vmul.f32 %v2501, %v2486
    %v2503 = vmul.f32 %v2501, %v2487
    %v2504 = vadd.f32 %v2472, %v2502
    %v2505 = vadd.f32 %v2473, %v2503
    %s2506 = sld [smem:[#allocation7 + $0x87]]
    %v2507 = vstv %s2506
    %v2508 = vmul.f32 %v2507, %v2486
    %v2509 = vmul.f32 %v2507, %v2487
    %v2510 = vadd.f32 %v2478, %v2508
    %v2511 = vadd.f32 %v2479, %v2509
    %2512 = vrot.lane.b32.xlu0 %v1452, 111
    %v2513 = vpop.permute.xlu0 %2512
    %2514 = vrot.lane.b32.xlu0 %v1453, 111
    %v2515 = vpop.permute.xlu0 %2514
    %v2516 = vsel %vm1319, %v2513, %v2515
    %v2517 = vsel %vm1319, %v2515, %v2513
    %v2518 = vsel %vm1324, %v2516, 0.0
    %v2519 = vsel %vm1325, %v2517, 0.0
    %s2520 = sld [smem:[#allocation7 + $0x88]]
    %v2521 = vstv %s2520
    %v2522 = vmul.f32 %v2521, %v2518
    %v2523 = vmul.f32 %v2521, %v2519
    %v2524 = vadd.f32 %v2492, %v2522
    %v2525 = vadd.f32 %v2493, %v2523
    %s2526 = sld [smem:[#allocation7 + $0x89]]
    %v2527 = vstv %s2526
    %v2528 = vmul.f32 %v2527, %v2518
    %v2529 = vmul.f32 %v2527, %v2519
    %v2530 = vadd.f32 %v2498, %v2528
    %v2531 = vadd.f32 %v2499, %v2529
    %s2532 = sld [smem:[#allocation7 + $0x8a]]
    %v2533 = vstv %s2532
    %v2534 = vmul.f32 %v2533, %v2518
    %v2535 = vmul.f32 %v2533, %v2519
    %v2536 = vadd.f32 %v2504, %v2534
    %v2537 = vadd.f32 %v2505, %v2535
    %s2538 = sld [smem:[#allocation7 + $0x8b]]
    %v2539 = vstv %s2538
    %v2540 = vmul.f32 %v2539, %v2518
    %v2541 = vmul.f32 %v2539, %v2519
    %v2542 = vadd.f32 %v2510, %v2540
    %v2543 = vadd.f32 %v2511, %v2541
    %2544 = vrot.lane.b32.xlu0 %v1454, 111
    %v2545 = vpop.permute.xlu0 %2544
    %2546 = vrot.lane.b32.xlu0 %v1455, 111
    %v2547 = vpop.permute.xlu0 %2546
    %v2548 = vsel %vm1319, %v2545, %v2547
    %v2549 = vsel %vm1319, %v2547, %v2545
    %v2550 = vsel %vm1324, %v2548, 0.0
    %v2551 = vsel %vm1325, %v2549, 0.0
    %s2552 = sld [smem:[#allocation7 + $0x8c]]
    %v2553 = vstv %s2552
    %v2554 = vmul.f32 %v2553, %v2550
    %v2555 = vmul.f32 %v2553, %v2551
    %v2556 = vadd.f32 %v2524, %v2554
    %v2557 = vadd.f32 %v2525, %v2555
    %s2558 = sld [smem:[#allocation7 + $0x8d]]
    %v2559 = vstv %s2558
    %v2560 = vmul.f32 %v2559, %v2550
    %v2561 = vmul.f32 %v2559, %v2551
    %v2562 = vadd.f32 %v2530, %v2560
    %v2563 = vadd.f32 %v2531, %v2561
    %s2564 = sld [smem:[#allocation7 + $0x8e]]
    %v2565 = vstv %s2564
    %v2566 = vmul.f32 %v2565, %v2550
    %v2567 = vmul.f32 %v2565, %v2551
    %v2568 = vadd.f32 %v2536, %v2566
    %v2569 = vadd.f32 %v2537, %v2567
    %s2570 = sld [smem:[#allocation7 + $0x8f]]
    %v2571 = vstv %s2570
    %v2572 = vmul.f32 %v2571, %v2550
    %v2573 = vmul.f32 %v2571, %v2551
    %v2574 = vadd.f32 %v2542, %v2572
    %v2575 = vadd.f32 %v2543, %v2573
    %v2576 = vadd.f32 %v2556, %v91
    %v2577 = vadd.f32 %v2557, %v92
    %v2580 = vcombine.low %v2576, %v2577
    %v2582 = vunpack.c.l.s4 1983009808
    %v2583 = vunpack.c.0.s8 %v2582
    %v2584 = vlaneseq
    %v2585 = vshrl.u32 %v2584, 7
    %v2586 = vsub.s32 %v2583, %v2585
    %v2587 = vrot.slane %v2580, %v2586
    %2589 = vst [vmem:[#allocation9] sm:$0xf] %v2587
    %v2590 = vadd.f32 %v2562, %v139
    %v2591 = vadd.f32 %v2563, %v140
    %v2594 = vcombine.low %v2590, %v2591
    %v2596 = vunpack.c.l.s4 1983009808
    %v2597 = vunpack.c.0.s8 %v2596
    %v2598 = vlaneseq
    %v2599 = vshrl.u32 %v2598, 7
    %v2600 = vsub.s32 %v2597, %v2599
    %v2601 = vrot.slane %v2594, %v2600
    %s2603 = scalar_lea.vmem [#allocation9], 4
    %2604 = vst [vmem:[%s2603] sm:$0xf] %v2601
    %v2605 = vadd.f32 %v2568, %v182
    %v2606 = vadd.f32 %v2569, %v183
    %v2609 = vcombine.low %v2605, %v2606
    %v2611 = vunpack.c.l.s4 1983009808
    %v2612 = vunpack.c.0.s8 %v2611
    %v2613 = vlaneseq
    %v2614 = vshrl.u32 %v2613, 7
    %v2615 = vsub.s32 %v2612, %v2614
    %v2616 = vrot.slane %v2609, %v2615
    %s2618 = scalar_lea.vmem [#allocation9], 8
    %2619 = vst [vmem:[%s2618] sm:$0xf] %v2616
    %v2620 = vadd.f32 %v2574, %v225
    %v2621 = vadd.f32 %v2575, %v226
    %v2624 = vcombine.low %v2620, %v2621
    %v2626 = vunpack.c.l.s4 1983009808
    %v2627 = vunpack.c.0.s8 %v2626
    %v2628 = vlaneseq
    %v2629 = vshrl.u32 %v2628, 7
    %v2630 = vsub.s32 %v2627, %v2629
    %v2631 = vrot.slane %v2624, %v2630
    %s2633 = scalar_lea.vmem [#allocation9], 12
    %2634 = vst [vmem:[%s2633] sm:$0xf] %v2631
    // Predicated region
    $region26: #{tpu_custom_call.1} parent=1 // pred_check
      _
    $region27: #{tpu_custom_call.1} parent=1 // pred_check_branch
      %2636 = sbr.rel (0) target = $region29
    $region28: #{tpu_custom_call.1} parent=1 // pred_region
      %s2638 = ssub.s32 256, 256
      %2639 = vsyncadd [#allocation4], %s2638
      %s2640 = sshll.u32 [#allocation9], 4
      %s2641 = int_to_ptr.vmem [resolvable:$true] %s2640
      %2646 = dma.vmem_to_hbm [thread:$0]  %s2641, 256, %s3, [#allocation4], 64, 64, 4
    $region29: #{tpu_custom_call.1} parent=1 // pred_fallthru
      _
    // Predicated region
    $region30: #{tpu_custom_call.1} parent=1 // pred_check
      _
    $region31: #{tpu_custom_call.1} parent=1 // pred_check_branch
      %2648 = sbr.rel (0) target = $region33
    $region32: #{tpu_custom_call.1} parent=1 // pred_region
      %2649 = dma.done [#allocation4], 256
    $region33: #{tpu_custom_call.1} parent=1 // pred_fallthru
      _
    %2650 = vsyncpa [#allocation3], 1
    %2651 = vsyncpa [#allocation4], 1
    %2652 = vsyncpa [#allocation5], 1
    %2653 = vsyncpa [#allocation8], 1

</llo_original>
